<compile_context>
chip_gen: v7x
topology: tpu7x:2x2x1
jax: 0.10.0
libtpu: 0.0.40
codegen_flags: <defaults>
</compile_context>

<pallas_src>
import functools

import jax
import jax.numpy as jnp
from jax.experimental import pallas as pl
from jax.experimental.pallas import tpu as pltpu

NEG_INF = -1e30
BN_EPS = 1e-5
VMEM_LIMIT = 32 * 1024 * 1024  # explicit; well under v7x's 64 MiB physical VMEM


# ----------------------------------------------------------------------------
# Kernel 1: fused projection  zcat = h @ [W | W_res | wr | wl]
# ----------------------------------------------------------------------------
def project_kernel(h_ref, w_ref, z_ref):
    z_ref[...] = jnp.dot(h_ref[...], w_ref[...],
                         preferred_element_type=jnp.float32).astype(z_ref.dtype)


def gat_project(h, w_cat, *, tile_n):
    N, c_in = h.shape
    dz = w_cat.shape[1]
    flops = 2 * N * c_in * dz
    bytes_acc = 4 * (N * c_in + c_in * dz + N * dz)
    return pl.pallas_call(
        project_kernel,
        out_shape=jax.ShapeDtypeStruct((N, dz), jnp.float32),
        grid_spec=pltpu.PrefetchScalarGridSpec(
            num_scalar_prefetch=0,
            grid=(N // tile_n,),
            in_specs=[
                pl.BlockSpec((tile_n, c_in), lambda i: (i, 0)),  # node tile
                pl.BlockSpec((c_in, dz), lambda i: (0, 0)),      # weights, resident
            ],
            out_specs=pl.BlockSpec((tile_n, dz), lambda i: (i, 0)),
        ),
        compiler_params=pltpu.CompilerParams(
            dimension_semantics=("parallel",),
            vmem_limit_bytes=VMEM_LIMIT),
        cost_estimate=pl.CostEstimate(flops=flops, transcendentals=0,
                                      bytes_accessed=bytes_acc),
    )(h, w_cat)


# ----------------------------------------------------------------------------
# Kernel 2: masked softmax attention + aggregation over a dst-node tile
# ----------------------------------------------------------------------------
def gat_attention_kernel(*refs, num_heads, out_feats, tile_m, mean_heads, bn_relu):
    it = iter(refs)
    z_ref = next(it)       # (N, Dz)  [feat' | res | er | el] for ALL src nodes (resident)
    elt_ref = next(it)     # (H, N)   el with src along lanes
    adj_ref = next(it)     # (TM, N)  int8 adjacency rows of this dst tile
    bias_ref = next(it)    # (1, H*F)
    if bn_relu:
        scale_ref = next(it)   # (1, H*F)  gamma * rsqrt(var+eps)
        shift_ref = next(it)   # (1, H*F)  beta - mean*scale
    o_ref = next(it)       # (TM, H*F) or (TM, F)
    acc_ref = next(it)     # VMEM scratch (TM, H*F)

    H, F = num_heads, out_feats
    HF = H * F
    OFF_RES, OFF_ER = HF, 2 * HF

    i = pl.program_id(0)
    start = pl.multiple_of(i * tile_m, tile_m)
    z_dst = z_ref[pl.ds(start, tile_m), :]          # (TM, Dz) rows of this dst tile

    feat_src = z_ref[:, :HF]                         # (N, H*F) projected src features
    el_t = elt_ref[...]                              # (H, N)
    bias = bias_ref[...]                             # (1, H*F)

    # Additive edge mask built in-kernel from the int8 adjacency tile.
    neg = jnp.where(adj_ref[...].astype(jnp.float32) > 0.0, 0.0, NEG_INF)   # (TM, N)

    mean_acc = jnp.zeros((tile_m, F), jnp.float32) if mean_heads else None

    for hh in range(H):                              # H is tiny & static
        fh = feat_src[:, hh * F:(hh + 1) * F]                         # (N, F)
        rh = z_dst[:, OFF_RES + hh * F: OFF_RES + (hh + 1) * F]       # (TM, F) residual
        er = z_dst[:, OFF_ER + hh: OFF_ER + hh + 1]                   # (TM, 1)
        el = el_t[hh:hh + 1, :]                                       # (1, N)

        e = el + er                                  # e[dst, src] = el[src] + er[dst]
        e = jnp.where(e > 0.0, e, 0.2 * e)           # leaky_relu(., 0.2) in f32
        e = e + neg                                  # mask non-edges

        m = jnp.max(e, axis=1, keepdims=True)        # masked softmax over sources
        p = jnp.exp(e - m)
        s = jnp.sum(p, axis=1, keepdims=True)
        alpha = p * pl.reciprocal(s, approx=True)    # ~1e-3 rel. err, acceptable here

        # bf16 MXU operands, f32 accumulation.
        oh = jnp.dot(alpha.astype(jnp.bfloat16), fh.astype(jnp.bfloat16),
                     preferred_element_type=jnp.float32)              # (TM, F)
        oh = oh + rh + bias[:, hh * F:(hh + 1) * F]

        if mean_heads:
            mean_acc = mean_acc + oh
        else:
            acc_ref[:, hh * F:(hh + 1) * F] = oh     # assemble lane-dense output slab

    if mean_heads:
        o_ref[...] = (mean_acc * (1.0 / H)).astype(o_ref.dtype)       # (TM, F)
    else:
        y = acc_ref[...]                             # (TM, H*F), flatten(1) layout
        if bn_relu:                                  # fused BatchNorm1d(eval) + ReLU
            y = y * scale_ref[...] + shift_ref[...]
            y = jnp.maximum(y, 0.0)
        o_ref[...] = y.astype(o_ref.dtype)           # single lane-dense store


def gat_attention(adj_i8, z_cat, el_t, bias, *, num_heads, out_feats, tile_m,
                  bn_scale=None, bn_shift=None, mean_heads=False):
    N = adj_i8.shape[0]
    dz = z_cat.shape[1]
    H, F = num_heads, out_feats
    HF = H * F
    bn_relu = bn_scale is not None
    out_dim = F if mean_heads else HF

    inputs = [z_cat, el_t, adj_i8, bias.reshape(1, HF)]
    in_specs = [
        pl.BlockSpec((N, dz), lambda i: (0, 0)),      # all-src projections, loaded once
        pl.BlockSpec((H, N), lambda i: (0, 0)),       # el transposed, loaded once
        pl.BlockSpec((tile_m, N), lambda i: (i, 0)),  # int8 adjacency rows (tiled, dbl-buffered)
        pl.BlockSpec((1, HF), lambda i: (0, 0)),
    ]
    if bn_relu:
        inputs += [bn_scale.reshape(1, HF), bn_shift.reshape(1, HF)]
        in_specs += [pl.BlockSpec((1, HF), lambda i: (0, 0)),
                     pl.BlockSpec((1, HF), lambda i: (0, 0))]

    kernel = functools.partial(gat_attention_kernel, num_heads=H, out_feats=F,
                               tile_m=tile_m, mean_heads=mean_heads, bn_relu=bn_relu)

    flops = H * N * N * (6 + 2 * F)
    bytes_acc = N * N + 4 * (N * dz + H * N + N * out_dim + 3 * HF)
    return pl.pallas_call(
        kernel,
        out_shape=jax.ShapeDtypeStruct((N, out_dim), jnp.float32),
        grid_spec=pltpu.PrefetchScalarGridSpec(
            num_scalar_prefetch=0,
            grid=(N // tile_m,),
            in_specs=in_specs,
            out_specs=pl.BlockSpec((tile_m, out_dim), lambda i: (i, 0)),
            scratch_shapes=[pltpu.VMEM((tile_m, HF), jnp.float32)],
        ),
        compiler_params=pltpu.CompilerParams(
            dimension_semantics=("parallel",),
            vmem_limit_bytes=VMEM_LIMIT),
        cost_estimate=pl.CostEstimate(flops=flops, transcendentals=H * N * N,
                                      bytes_accessed=bytes_acc),
    )(*inputs)


# ----------------------------------------------------------------------------
# One GATConv layer (+ fused BN/ReLU or head-mean epilogue)
# ----------------------------------------------------------------------------
def build_wcat(p, c_in, H, F):
    """[W | W_res(or I) | wr | wl]: el/er are linear in h, so they are extra columns."""
    HF = H * F
    W = p["W"]                                                    # (c_in, H*F)
    Wres = p["W_res"] if p["W_res"] is not None else jnp.eye(c_in, HF, dtype=jnp.float32)
    Wh = W.reshape(c_in, H, F)
    wl = jnp.einsum("chf,hf->ch", Wh, p["attn_l"])                # el = h @ wl
    wr = jnp.einsum("chf,hf->ch", Wh, p["attn_r"])                # er = h @ wr
    return jnp.concatenate([W, Wres, wr, wl], axis=1)             # (c_in, 2*H*F + 2*H)


def gat_conv(adj_i8, h, p, *, num_heads, out_feats, tile_m, bn=None, mean_heads=False):
    H, F = num_heads, out_feats
    HF = H * F
    c_in = h.shape[1]

    w_cat = build_wcat(p, c_in, H, F)
    z = gat_project(h, w_cat, tile_n=tile_m)                      # (N, 2*H*F + 2*H)

    # Tiny (N, H) -> (H, N) transpose of the el columns (weight-scale glue; the src
    # axis must lie on lanes for the in-kernel broadcast el[src] + er[dst]).
    el_t = jnp.transpose(z[:, 2 * HF + H: 2 * HF + 2 * H])        # (H, N)

    if bn is not None:   # BatchNorm1d eval-mode affine folded into scale/shift
        scale = bn["gamma"] * jax.lax.rsqrt(bn["var"] + BN_EPS)
        shift = bn["beta"] - bn["mean"] * scale
    else:
        scale = shift = None

    return gat_attention(adj_i8, z, el_t, p["bias"], num_heads=H, out_feats=F,
                         tile_m=tile_m, bn_scale=scale, bn_shift=shift,
                         mean_heads=mean_heads)


# ----------------------------------------------------------------------------
# Full GAT forward (n_layers = 2, eval mode)
# ----------------------------------------------------------------------------
def gat_forward(adj_i8, feat, params, *, num_heads, n_hidden, out_feats, tile_m=32):
    h = feat  # input_drop: eval-mode no-op
    # conv0 -> flatten(1) -> BatchNorm1d -> ReLU (epilogue fused in-kernel)
    h = gat_conv(adj_i8, h, params["conv0"], num_heads=num_heads, out_feats=n_hidden,
                 tile_m=tile_m, bn=params["bn0"], mean_heads=False)   # (N, H*hid)
    # dropout: eval-mode no-op
    # last conv -> mean over heads (fused)
    h = gat_conv(adj_i8, h, params["conv1"], num_heads=num_heads, out_feats=out_feats,
                 tile_m=tile_m, bn=None, mean_heads=True)             # (N, out)
    return h


# ----------------------------------------------------------------------------
# Deterministic parameter init
# ----------------------------------------------------------------------------
def xavier_uniform(key, shape, fan_in, fan_out, gain=1.0):
    limit = gain * (6.0 / (fan_in + fan_out)) ** 0.5
    return jax.random.uniform(key, shape, jnp.float32, -limit, limit)


def make_params(key, in_feats, n_hidden, out_feats, num_heads):
    ks = jax.random.split(key, 12)
    gain = 2.0 ** 0.5  # relu gain, as in DGL reset_parameters
    mid = num_heads * n_hidden
    conv0 = {
        "W": xavier_uniform(ks[0], (in_feats, mid), in_feats, mid, gain),
        "attn_l": xavier_uniform(ks[1], (num_heads, n_hidden), n_hidden, 1, gain),
        "attn_r": xavier_uniform(ks[2], (num_heads, n_hidden), n_hidden, 1, gain),
        "W_res": xavier_uniform(ks[3], (in_feats, mid), in_feats, mid, gain),
        "bias": 0.01 * jax.random.normal(ks[4], (mid,), jnp.float32),
    }
    conv1 = {
        "W": xavier_uniform(ks[5], (mid, num_heads * out_feats),
                            mid, num_heads * out_feats, gain),
        "attn_l": xavier_uniform(ks[6], (num_heads, out_feats), out_feats, 1, gain),
        "attn_r": xavier_uniform(ks[7], (num_heads, out_feats), out_feats, 1, gain),
        "W_res": None,  # mid == num_heads * out_feats -> identity residual
        "bias": 0.01 * jax.random.normal(ks[8], (num_heads * out_feats,), jnp.float32),
    }
    bn0 = {
        "gamma": 1.0 + 0.1 * jax.random.normal(ks[9], (mid,), jnp.float32),
        "beta": 0.1 * jax.random.normal(ks[10], (mid,), jnp.float32),
        "mean": jnp.zeros((mid,), jnp.float32),
        "var": jnp.ones((mid,), jnp.float32),
    }
    return {"conv0": conv0, "conv1": conv1, "bn0": bn0}


# ----------------------------------------------------------------------------
# Main
# ----------------------------------------------------------------------------
if __name__ == "__main__":
    N = 64            # nodes (2 dst tiles -> exercises the grid / double-buffering)
    IN_FEATS = 16
    N_HIDDEN = 8
    OUT_FEATS = 8
    NUM_HEADS = 4
    TILE_M = 32       # dst-node tile (multiple of 32 for the int8 adjacency tiling)

    key = jax.random.PRNGKey(0)
    k_feat, k_adj, k_par = jax.random.split(key, 3)

    feat = jax.random.normal(k_feat, (N, IN_FEATS), jnp.float32)

    # adjacency adj[dst, src] as int8, with self-loops so every softmax row is valid
    adj = jax.random.uniform(k_adj, (N, N)) < 0.3
    adj = jnp.logical_or(adj, jnp.eye(N, dtype=bool)).astype(jnp.int8)

    params = make_params(k_par, IN_FEATS, N_HIDDEN, OUT_FEATS, NUM_HEADS)

    fwd = jax.jit(functools.partial(
        gat_forward, num_heads=NUM_HEADS, n_hidden=N_HIDDEN,
        out_feats=OUT_FEATS, tile_m=TILE_M))
    out = fwd(adj, feat, params)
    out = jax.block_until_ready(out)

    assert out.shape == (N, OUT_FEATS), out.shape
    assert bool(jnp.all(jnp.isfinite(out)))
    print("KERNEL_OK")
</pallas_src>

<mosaic_0001>
module attributes {stable_mosaic.version = 11 : i64} {
  func.func @project_kernel(%arg0: i32, %arg1: memref<32x16xf32, #tpu.memory_space<vmem>>, %arg2: memref<16x72xf32, #tpu.memory_space<vmem>>, %arg3: memref<32x72xf32, #tpu.memory_space<vmem>>) attributes {dimension_semantics = [#tpu.dimension_semantics<parallel>], iteration_bounds = array<i64: 2>, scalar_prefetch = 0 : i64, scratch_operands = 0 : i64, tpu.core_type = #tpu.core_type<tc>, window_params = [{transform_indices = @transform_0, window_bounds = array<i64: 32, 16>}, {pipeline_mode = #tpu.pipeline_mode<synchronous>, transform_indices = @transform_1, window_bounds = array<i64: 16, 72>}, {transform_indices = @transform_2, window_bounds = array<i64: 32, 72>}]} {
    %c0 = arith.constant 0 : index
    %c0_0 = arith.constant 0 : index
    %0 = vector.load %arg1[%c0, %c0_0] : memref<32x16xf32, #tpu.memory_space<vmem>>, vector<32x16xf32>
    %c0_1 = arith.constant 0 : index
    %c0_2 = arith.constant 0 : index
    %1 = vector.load %arg2[%c0_1, %c0_2] : memref<16x72xf32, #tpu.memory_space<vmem>>, vector<16x72xf32>
    %cst = arith.constant dense<0.000000e+00> : vector<32x72xf32>
    %2 = tpu.matmul %0, %1, %cst {dimension_numbers = #tpu.dot_dimension_numbers<[1], [0], [0], [1], [0, 0, 1, 1], [], []>} : vector<32x16xf32>, vector<16x72xf32>, vector<32x72xf32> -> vector<32x72xf32>
    %c0_3 = arith.constant 0 : index
    %c0_4 = arith.constant 0 : index
    %3 = vector.load %arg3[%c0_3, %c0_4] : memref<32x72xf32, #tpu.memory_space<vmem>>, vector<32x72xf32>
    tpu.vector_store %arg3[%c0_3, %c0_4], %2 {strides = array<i32>} : memref<32x72xf32, #tpu.memory_space<vmem>>, vector<32x72xf32>,
    return
  }
  func.func @transform_0(%arg0: i32) -> (i32, i32) {
    %c0_i32 = arith.constant 0 : i32
    %c0_i32_0 = arith.constant 0 : i32
    return %arg0, %c0_i32 : i32, i32
  }
  func.func @transform_1(%arg0: i32) -> (i32, i32) {
    %c0_i32 = arith.constant 0 : i32
    %c0_i32_0 = arith.constant 0 : i32
    %c0_i32_1 = arith.constant 0 : i32
    return %c0_i32, %c0_i32_0 : i32, i32
  }
  func.func @transform_2(%arg0: i32) -> (i32, i32) {
    %c0_i32 = arith.constant 0 : i32
    %c0_i32_0 = arith.constant 0 : i32
    return %arg0, %c0_i32 : i32, i32
  }
}

module attributes {stable_mosaic.version = 11 : i64} {
  func.func @project_kernel(%arg0: i32, %arg1: memref<32x32xf32, #tpu.memory_space<vmem>>, %arg2: memref<32x72xf32, #tpu.memory_space<vmem>>, %arg3: memref<32x72xf32, #tpu.memory_space<vmem>>) attributes {dimension_semantics = [#tpu.dimension_semantics<parallel>], iteration_bounds = array<i64: 2>, scalar_prefetch = 0 : i64, scratch_operands = 0 : i64, tpu.core_type = #tpu.core_type<tc>, window_params = [{transform_indices = @transform_0, window_bounds = array<i64: 32, 32>}, {pipeline_mode = #tpu.pipeline_mode<synchronous>, transform_indices = @transform_1, window_bounds = array<i64: 32, 72>}, {transform_indices = @transform_2, window_bounds = array<i64: 32, 72>}]} {
    %c0 = arith.constant 0 : index
    %c0_0 = arith.constant 0 : index
    %0 = vector.load %arg1[%c0, %c0_0] : memref<32x32xf32, #tpu.memory_space<vmem>>, vector<32x32xf32>
    %c0_1 = arith.constant 0 : index
    %c0_2 = arith.constant 0 : index
    %1 = vector.load %arg2[%c0_1, %c0_2] : memref<32x72xf32, #tpu.memory_space<vmem>>, vector<32x72xf32>
    %cst = arith.constant dense<0.000000e+00> : vector<32x72xf32>
    %2 = tpu.matmul %0, %1, %cst {dimension_numbers = #tpu.dot_dimension_numbers<[1], [0], [0], [1], [0, 0, 1, 1], [], []>} : vector<32x32xf32>, vector<32x72xf32>, vector<32x72xf32> -> vector<32x72xf32>
    %c0_3 = arith.constant 0 : index
    %c0_4 = arith.constant 0 : index
    %3 = vector.load %arg3[%c0_3, %c0_4] : memref<32x72xf32, #tpu.memory_space<vmem>>, vector<32x72xf32>
    tpu.vector_store %arg3[%c0_3, %c0_4], %2 {strides = array<i32>} : memref<32x72xf32, #tpu.memory_space<vmem>>, vector<32x72xf32>,
    return
  }
  func.func @transform_0(%arg0: i32) -> (i32, i32) {
    %c0_i32 = arith.constant 0 : i32
    %c0_i32_0 = arith.constant 0 : i32
    return %arg0, %c0_i32 : i32, i32
  }
  func.func @transform_1(%arg0: i32) -> (i32, i32) {
    %c0_i32 = arith.constant 0 : i32
    %c0_i32_0 = arith.constant 0 : i32
    %c0_i32_1 = arith.constant 0 : i32
    return %c0_i32, %c0_i32_0 : i32, i32
  }
  func.func @transform_2(%arg0: i32) -> (i32, i32) {
    %c0_i32 = arith.constant 0 : i32
    %c0_i32_0 = arith.constant 0 : i32
    return %arg0, %c0_i32 : i32, i32
  }
}

module attributes {stable_mosaic.version = 11 : i64} {
  func.func @gat_attention_kernel(%arg0: i32, %arg1: memref<64x72xf32, #tpu.memory_space<vmem>>, %arg2: memref<4x64xf32, #tpu.memory_space<vmem>>, %arg3: memref<32x64xi8, #tpu.memory_space<vmem>>, %arg4: memref<1x32xf32, #tpu.memory_space<vmem>>, %arg5: memref<32x8xf32, #tpu.memory_space<vmem>>, %arg6: memref<32x32xf32, #tpu.memory_space<vmem>>) attributes {dimension_semantics = [#tpu.dimension_semantics<parallel>], iteration_bounds = array<i64: 2>, scalar_prefetch = 0 : i64, scratch_operands = 1 : i64, tpu.core_type = #tpu.core_type<tc>, window_params = [{pipeline_mode = #tpu.pipeline_mode<synchronous>, transform_indices = @transform_0, window_bounds = array<i64: 64, 72>}, {pipeline_mode = #tpu.pipeline_mode<synchronous>, transform_indices = @transform_1, window_bounds = array<i64: 4, 64>}, {transform_indices = @transform_2, window_bounds = array<i64: 32, 64>}, {pipeline_mode = #tpu.pipeline_mode<synchronous>, transform_indices = @transform_3, window_bounds = array<i64: 1, 32>}, {transform_indices = @transform_4, window_bounds = array<i64: 32, 8>}]} {
    %c32_i32 = arith.constant 32 : i32
    %0 = arith.muli %arg0, %c32_i32 : i32
    %1 = tpu.assume_multiple %0, 32 : i32
    %2 = arith.index_cast %1 : i32 to index
    %c0 = arith.constant 0 : index
    %3 = vector.load %arg1[%2, %c0] : memref<64x72xf32, #tpu.memory_space<vmem>>, vector<32x72xf32>
    %c0_0 = arith.constant 0 : index
    %c0_1 = arith.constant 0 : index
    %4 = vector.load %arg1[%c0_0, %c0_1] : memref<64x72xf32, #tpu.memory_space<vmem>>, vector<64x32xf32>
    %c0_2 = arith.constant 0 : index
    %c0_3 = arith.constant 0 : index
    %5 = vector.load %arg2[%c0_2, %c0_3] : memref<4x64xf32, #tpu.memory_space<vmem>>, vector<4x64xf32>
    %c0_4 = arith.constant 0 : index
    %c0_5 = arith.constant 0 : index
    %6 = vector.load %arg4[%c0_4, %c0_5] : memref<1x32xf32, #tpu.memory_space<vmem>>, vector<1x32xf32>
    %c0_6 = arith.constant 0 : index
    %c0_7 = arith.constant 0 : index
    %7 = vector.load %arg3[%c0_6, %c0_7] : memref<32x64xi8, #tpu.memory_space<vmem>>, vector<32x64xi8>
    %8 = arith.sitofp %7 : vector<32x64xi8> to vector<32x64xf32>
    %cst = arith.constant 0.000000e+00 : f32
    %9 = vector.broadcast %cst : f32 to vector<32x64xf32>
    %10 = arith.cmpf ogt, %8, %9 : vector<32x64xf32>
    %cst_8 = arith.constant 0.000000e+00 : f32
    %cst_9 = arith.constant -1.000000e+30 : f32
    %11 = vector.broadcast %cst_8 : f32 to vector<32x64xf32>
    %12 = vector.broadcast %cst_9 : f32 to vector<32x64xf32>
    %13 = arith.select %10, %11, %12 : vector<32x64xi1>, vector<32x64xf32>
    %cst_10 = arith.constant 0.000000e+00 : f32
    %14 = vector.broadcast %cst_10 : f32 to vector<32x8xf32>
    %15 = vector.extract_strided_slice %4 {offsets = [0, 0], sizes = [64, 8], strides = [1, 1]} : vector<64x32xf32> to vector<64x8xf32>
    %16 = vector.extract_strided_slice %3 {offsets = [0, 32], sizes = [32, 8], strides = [1, 1]} : vector<32x72xf32> to vector<32x8xf32>
    %17 = vector.extract_strided_slice %3 {offsets = [0, 64], sizes = [32, 1], strides = [1, 1]} : vector<32x72xf32> to vector<32x1xf32>
    %18 = vector.extract_strided_slice %5 {offsets = [0, 0], sizes = [1, 64], strides = [1, 1]} : vector<4x64xf32> to vector<1x64xf32>
    %19 = vector.broadcast %18 : vector<1x64xf32> to vector<32x64xf32>
    %20 = vector.broadcast %17 : vector<32x1xf32> to vector<32x64xf32>
    %21 = arith.addf %19, %20 : vector<32x64xf32>
    %cst_11 = arith.constant 0.000000e+00 : f32
    %22 = vector.broadcast %cst_11 : f32 to vector<32x64xf32>
    %23 = arith.cmpf ogt, %21, %22 : vector<32x64xf32>
    %cst_12 = arith.constant 2.000000e-01 : f32
    %24 = vector.broadcast %cst_12 : f32 to vector<32x64xf32>
    %25 = arith.mulf %24, %21 : vector<32x64xf32>
    %26 = arith.select %23, %21, %25 : vector<32x64xi1>, vector<32x64xf32>
    %27 = arith.addf %26, %13 : vector<32x64xf32>
    %cst_13 = arith.constant dense<0xFF800000> : vector<32xf32>
    %28 = vector.multi_reduction <maximumf>, %27, %cst_13 [1] : vector<32x64xf32> to vector<32xf32>
    %29 = vector.shape_cast %28 : vector<32xf32> to vector<32x1xf32>
    %30 = vector.broadcast %29 : vector<32x1xf32> to vector<32x64xf32>
    %31 = arith.subf %27, %30 : vector<32x64xf32>
    %32 = math.exp %31 : vector<32x64xf32>
    %cst_14 = arith.constant dense<0.000000e+00> : vector<32xf32>
    %33 = vector.multi_reduction <add>, %32, %cst_14 [1] : vector<32x64xf32> to vector<32xf32>
    %34 = vector.shape_cast %33 : vector<32xf32> to vector<32x1xf32>
    %35 = tpu.reciprocal %34 {approx = true} : vector<32x1xf32> -> vector<32x1xf32>
    %36 = vector.broadcast %35 : vector<32x1xf32> to vector<32x64xf32>
    %37 = arith.mulf %32, %36 : vector<32x64xf32>
    %38 = arith.truncf %37 : vector<32x64xf32> to vector<32x64xbf16>
    %39 = arith.truncf %15 : vector<64x8xf32> to vector<64x8xbf16>
    %cst_15 = arith.constant dense<0.000000e+00> : vector<32x8xf32>
    %40 = tpu.matmul %38, %39, %cst_15 {dimension_numbers = #tpu.dot_dimension_numbers<[1], [0], [0], [1], [0, 0, 1, 1], [], []>} : vector<32x64xbf16>, vector<64x8xbf16>, vector<32x8xf32> -> vector<32x8xf32>
    %41 = arith.addf %40, %16 : vector<32x8xf32>
    %42 = vector.extract_strided_slice %6 {offsets = [0, 0], sizes = [1, 8], strides = [1, 1]} : vector<1x32xf32> to vector<1x8xf32>
    %43 = vector.broadcast %42 : vector<1x8xf32> to vector<32x8xf32>
    %44 = arith.addf %41, %43 : vector<32x8xf32>
    %45 = arith.addf %14, %44 : vector<32x8xf32>
    %46 = vector.extract_strided_slice %4 {offsets = [0, 8], sizes = [64, 8], strides = [1, 1]} : vector<64x32xf32> to vector<64x8xf32>
    %47 = vector.extract_strided_slice %3 {offsets = [0, 40], sizes = [32, 8], strides = [1, 1]} : vector<32x72xf32> to vector<32x8xf32>
    %48 = vector.extract_strided_slice %3 {offsets = [0, 65], sizes = [32, 1], strides = [1, 1]} : vector<32x72xf32> to vector<32x1xf32>
    %49 = vector.extract_strided_slice %5 {offsets = [1, 0], sizes = [1, 64], strides = [1, 1]} : vector<4x64xf32> to vector<1x64xf32>
    %50 = vector.broadcast %49 : vector<1x64xf32> to vector<32x64xf32>
    %51 = vector.broadcast %48 : vector<32x1xf32> to vector<32x64xf32>
    %52 = arith.addf %50, %51 : vector<32x64xf32>
    %cst_16 = arith.constant 0.000000e+00 : f32
    %53 = vector.broadcast %cst_16 : f32 to vector<32x64xf32>
    %54 = arith.cmpf ogt, %52, %53 : vector<32x64xf32>
    %cst_17 = arith.constant 2.000000e-01 : f32
    %55 = vector.broadcast %cst_17 : f32 to vector<32x64xf32>
    %56 = arith.mulf %55, %52 : vector<32x64xf32>
    %57 = arith.select %54, %52, %56 : vector<32x64xi1>, vector<32x64xf32>
    %58 = arith.addf %57, %13 : vector<32x64xf32>
    %cst_18 = arith.constant dense<0xFF800000> : vector<32xf32>
    %59 = vector.multi_reduction <maximumf>, %58, %cst_18 [1] : vector<32x64xf32> to vector<32xf32>
    %60 = vector.shape_cast %59 : vector<32xf32> to vector<32x1xf32>
    %61 = vector.broadcast %60 : vector<32x1xf32> to vector<32x64xf32>
    %62 = arith.subf %58, %61 : vector<32x64xf32>
    %63 = math.exp %62 : vector<32x64xf32>
    %cst_19 = arith.constant dense<0.000000e+00> : vector<32xf32>
    %64 = vector.multi_reduction <add>, %63, %cst_19 [1] : vector<32x64xf32> to vector<32xf32>
    %65 = vector.shape_cast %64 : vector<32xf32> to vector<32x1xf32>
    %66 = tpu.reciprocal %65 {approx = true} : vector<32x1xf32> -> vector<32x1xf32>
    %67 = vector.broadcast %66 : vector<32x1xf32> to vector<32x64xf32>
    %68 = arith.mulf %63, %67 : vector<32x64xf32>
    %69 = arith.truncf %68 : vector<32x64xf32> to vector<32x64xbf16>
    %70 = arith.truncf %46 : vector<64x8xf32> to vector<64x8xbf16>
    %cst_20 = arith.constant dense<0.000000e+00> : vector<32x8xf32>
    %71 = tpu.matmul %69, %70, %cst_20 {dimension_numbers = #tpu.dot_dimension_numbers<[1], [0], [0], [1], [0, 0, 1, 1], [], []>} : vector<32x64xbf16>, vector<64x8xbf16>, vector<32x8xf32> -> vector<32x8xf32>
    %72 = arith.addf %71, %47 : vector<32x8xf32>
    %73 = vector.extract_strided_slice %6 {offsets = [0, 8], sizes = [1, 8], strides = [1, 1]} : vector<1x32xf32> to vector<1x8xf32>
    %74 = vector.broadcast %73 : vector<1x8xf32> to vector<32x8xf32>
    %75 = arith.addf %72, %74 : vector<32x8xf32>
    %76 = arith.addf %45, %75 : vector<32x8xf32>
    %77 = vector.extract_strided_slice %4 {offsets = [0, 16], sizes = [64, 8], strides = [1, 1]} : vector<64x32xf32> to vector<64x8xf32>
    %78 = vector.extract_strided_slice %3 {offsets = [0, 48], sizes = [32, 8], strides = [1, 1]} : vector<32x72xf32> to vector<32x8xf32>
    %79 = vector.extract_strided_slice %3 {offsets = [0, 66], sizes = [32, 1], strides = [1, 1]} : vector<32x72xf32> to vector<32x1xf32>
    %80 = vector.extract_strided_slice %5 {offsets = [2, 0], sizes = [1, 64], strides = [1, 1]} : vector<4x64xf32> to vector<1x64xf32>
    %81 = vector.broadcast %80 : vector<1x64xf32> to vector<32x64xf32>
    %82 = vector.broadcast %79 : vector<32x1xf32> to vector<32x64xf32>
    %83 = arith.addf %81, %82 : vector<32x64xf32>
    %cst_21 = arith.constant 0.000000e+00 : f32
    %84 = vector.broadcast %cst_21 : f32 to vector<32x64xf32>
    %85 = arith.cmpf ogt, %83, %84 : vector<32x64xf32>
    %cst_22 = arith.constant 2.000000e-01 : f32
    %86 = vector.broadcast %cst_22 : f32 to vector<32x64xf32>
    %87 = arith.mulf %86, %83 : vector<32x64xf32>
    %88 = arith.select %85, %83, %87 : vector<32x64xi1>, vector<32x64xf32>
    %89 = arith.addf %88, %13 : vector<32x64xf32>
    %cst_23 = arith.constant dense<0xFF800000> : vector<32xf32>
    %90 = vector.multi_reduction <maximumf>, %89, %cst_23 [1] : vector<32x64xf32> to vector<32xf32>
    %91 = vector.shape_cast %90 : vector<32xf32> to vector<32x1xf32>
    %92 = vector.broadcast %91 : vector<32x1xf32> to vector<32x64xf32>
    %93 = arith.subf %89, %92 : vector<32x64xf32>
    %94 = math.exp %93 : vector<32x64xf32>
    %cst_24 = arith.constant dense<0.000000e+00> : vector<32xf32>
    %95 = vector.multi_reduction <add>, %94, %cst_24 [1] : vector<32x64xf32> to vector<32xf32>
    %96 = vector.shape_cast %95 : vector<32xf32> to vector<32x1xf32>
    %97 = tpu.reciprocal %96 {approx = true} : vector<32x1xf32> -> vector<32x1xf32>
    %98 = vector.broadcast %97 : vector<32x1xf32> to vector<32x64xf32>
    %99 = arith.mulf %94, %98 : vector<32x64xf32>
    %100 = arith.truncf %99 : vector<32x64xf32> to vector<32x64xbf16>
    %101 = arith.truncf %77 : vector<64x8xf32> to vector<64x8xbf16>
    %cst_25 = arith.constant dense<0.000000e+00> : vector<32x8xf32>
    %102 = tpu.matmul %100, %101, %cst_25 {dimension_numbers = #tpu.dot_dimension_numbers<[1], [0], [0], [1], [0, 0, 1, 1], [], []>} : vector<32x64xbf16>, vector<64x8xbf16>, vector<32x8xf32> -> vector<32x8xf32>
    %103 = arith.addf %102, %78 : vector<32x8xf32>
    %104 = vector.extract_strided_slice %6 {offsets = [0, 16], sizes = [1, 8], strides = [1, 1]} : vector<1x32xf32> to vector<1x8xf32>
    %105 = vector.broadcast %104 : vector<1x8xf32> to vector<32x8xf32>
    %106 = arith.addf %103, %105 : vector<32x8xf32>
    %107 = arith.addf %76, %106 : vector<32x8xf32>
    %108 = vector.extract_strided_slice %4 {offsets = [0, 24], sizes = [64, 8], strides = [1, 1]} : vector<64x32xf32> to vector<64x8xf32>
    %109 = vector.extract_strided_slice %3 {offsets = [0, 56], sizes = [32, 8], strides = [1, 1]} : vector<32x72xf32> to vector<32x8xf32>
    %110 = vector.extract_strided_slice %3 {offsets = [0, 67], sizes = [32, 1], strides = [1, 1]} : vector<32x72xf32> to vector<32x1xf32>
    %111 = vector.extract_strided_slice %5 {offsets = [3, 0], sizes = [1, 64], strides = [1, 1]} : vector<4x64xf32> to vector<1x64xf32>
    %112 = vector.broadcast %111 : vector<1x64xf32> to vector<32x64xf32>
    %113 = vector.broadcast %110 : vector<32x1xf32> to vector<32x64xf32>
    %114 = arith.addf %112, %113 : vector<32x64xf32>
    %cst_26 = arith.constant 0.000000e+00 : f32
    %115 = vector.broadcast %cst_26 : f32 to vector<32x64xf32>
    %116 = arith.cmpf ogt, %114, %115 : vector<32x64xf32>
    %cst_27 = arith.constant 2.000000e-01 : f32
    %117 = vector.broadcast %cst_27 : f32 to vector<32x64xf32>
    %118 = arith.mulf %117, %114 : vector<32x64xf32>
    %119 = arith.select %116, %114, %118 : vector<32x64xi1>, vector<32x64xf32>
    %120 = arith.addf %119, %13 : vector<32x64xf32>
    %cst_28 = arith.constant dense<0xFF800000> : vector<32xf32>
    %121 = vector.multi_reduction <maximumf>, %120, %cst_28 [1] : vector<32x64xf32> to vector<32xf32>
    %122 = vector.shape_cast %121 : vector<32xf32> to vector<32x1xf32>
    %123 = vector.broadcast %122 : vector<32x1xf32> to vector<32x64xf32>
    %124 = arith.subf %120, %123 : vector<32x64xf32>
    %125 = math.exp %124 : vector<32x64xf32>
    %cst_29 = arith.constant dense<0.000000e+00> : vector<32xf32>
    %126 = vector.multi_reduction <add>, %125, %cst_29 [1] : vector<32x64xf32> to vector<32xf32>
    %127 = vector.shape_cast %126 : vector<32xf32> to vector<32x1xf32>
    %128 = tpu.reciprocal %127 {approx = true} : vector<32x1xf32> -> vector<32x1xf32>
    %129 = vector.broadcast %128 : vector<32x1xf32> to vector<32x64xf32>
    %130 = arith.mulf %125, %129 : vector<32x64xf32>
    %131 = arith.truncf %130 : vector<32x64xf32> to vector<32x64xbf16>
    %132 = arith.truncf %108 : vector<64x8xf32> to vector<64x8xbf16>
    %cst_30 = arith.constant dense<0.000000e+00> : vector<32x8xf32>
    %133 = tpu.matmul %131, %132, %cst_30 {dimension_numbers = #tpu.dot_dimension_numbers<[1], [0], [0], [1], [0, 0, 1, 1], [], []>} : vector<32x64xbf16>, vector<64x8xbf16>, vector<32x8xf32> -> vector<32x8xf32>
    %134 = arith.addf %133, %109 : vector<32x8xf32>
    %135 = vector.extract_strided_slice %6 {offsets = [0, 24], sizes = [1, 8], strides = [1, 1]} : vector<1x32xf32> to vector<1x8xf32>
    %136 = vector.broadcast %135 : vector<1x8xf32> to vector<32x8xf32>
    %137 = arith.addf %134, %136 : vector<32x8xf32>
    %138 = arith.addf %107, %137 : vector<32x8xf32>
    %cst_31 = arith.constant 2.500000e-01 : f32
    %139 = vector.broadcast %cst_31 : f32 to vector<32x8xf32>
    %140 = arith.mulf %138, %139 : vector<32x8xf32>
    %c0_32 = arith.constant 0 : index
    %c0_33 = arith.constant 0 : index
    %141 = vector.load %arg5[%c0_32, %c0_33] : memref<32x8xf32, #tpu.memory_space<vmem>>, vector<32x8xf32>
    tpu.vector_store %arg5[%c0_32, %c0_33], %140 {strides = array<i32>} : memref<32x8xf32, #tpu.memory_space<vmem>>, vector<32x8xf32>,
    return
  }
  func.func @transform_0(%arg0: i32) -> (i32, i32) {
    %c0_i32 = arith.constant 0 : i32
    %c0_i32_0 = arith.constant 0 : i32
    %c0_i32_1 = arith.constant 0 : i32
    return %c0_i32, %c0_i32_0 : i32, i32
  }
  func.func @transform_1(%arg0: i32) -> (i32, i32) {
    %c0_i32 = arith.constant 0 : i32
    %c0_i32_0 = arith.constant 0 : i32
    %c0_i32_1 = arith.constant 0 : i32
    return %c0_i32, %c0_i32_0 : i32, i32
  }
  func.func @transform_2(%arg0: i32) -> (i32, i32) {
    %c0_i32 = arith.constant 0 : i32
    %c0_i32_0 = arith.constant 0 : i32
    return %arg0, %c0_i32 : i32, i32
  }
  func.func @transform_3(%arg0: i32) -> (i32, i32) {
    %c0_i32 = arith.constant 0 : i32
    %c0_i32_0 = arith.constant 0 : i32
    %c0_i32_1 = arith.constant 0 : i32
    return %c0_i32, %c0_i32_0 : i32, i32
  }
  func.func @transform_4(%arg0: i32) -> (i32, i32) {
    %c0_i32 = arith.constant 0 : i32
    %c0_i32_0 = arith.constant 0 : i32
    return %arg0, %c0_i32 : i32, i32
  }
}

module attributes {stable_mosaic.version = 11 : i64} {
  func.func @gat_attention_kernel(%arg0: i32, %arg1: memref<64x72xf32, #tpu.memory_space<vmem>>, %arg2: memref<4x64xf32, #tpu.memory_space<vmem>>, %arg3: memref<32x64xi8, #tpu.memory_space<vmem>>, %arg4: memref<1x32xf32, #tpu.memory_space<vmem>>, %arg5: memref<1x32xf32, #tpu.memory_space<vmem>>, %arg6: memref<1x32xf32, #tpu.memory_space<vmem>>, %arg7: memref<32x32xf32, #tpu.memory_space<vmem>>, %arg8: memref<32x32xf32, #tpu.memory_space<vmem>>) attributes {dimension_semantics = [#tpu.dimension_semantics<parallel>], iteration_bounds = array<i64: 2>, scalar_prefetch = 0 : i64, scratch_operands = 1 : i64, tpu.core_type = #tpu.core_type<tc>, window_params = [{pipeline_mode = #tpu.pipeline_mode<synchronous>, transform_indices = @transform_0, window_bounds = array<i64: 64, 72>}, {pipeline_mode = #tpu.pipeline_mode<synchronous>, transform_indices = @transform_1, window_bounds = array<i64: 4, 64>}, {transform_indices = @transform_2, window_bounds = array<i64: 32, 64>}, {pipeline_mode = #tpu.pipeline_mode<synchronous>, transform_indices = @transform_3, window_bounds = array<i64: 1, 32>}, {pipeline_mode = #tpu.pipeline_mode<synchronous>, transform_indices = @transform_4, window_bounds = array<i64: 1, 32>}, {pipeline_mode = #tpu.pipeline_mode<synchronous>, transform_indices = @transform_5, window_bounds = array<i64: 1, 32>}, {transform_indices = @transform_6, window_bounds = array<i64: 32, 32>}]} {
    %c32_i32 = arith.constant 32 : i32
    %0 = arith.muli %arg0, %c32_i32 : i32
    %1 = tpu.assume_multiple %0, 32 : i32
    %2 = arith.index_cast %1 : i32 to index
    %c0 = arith.constant 0 : index
    %3 = vector.load %arg1[%2, %c0] : memref<64x72xf32, #tpu.memory_space<vmem>>, vector<32x72xf32>
    %c0_0 = arith.constant 0 : index
    %c0_1 = arith.constant 0 : index
    %4 = vector.load %arg1[%c0_0, %c0_1] : memref<64x72xf32, #tpu.memory_space<vmem>>, vector<64x32xf32>
    %c0_2 = arith.constant 0 : index
    %c0_3 = arith.constant 0 : index
    %5 = vector.load %arg2[%c0_2, %c0_3] : memref<4x64xf32, #tpu.memory_space<vmem>>, vector<4x64xf32>
    %c0_4 = arith.constant 0 : index
    %c0_5 = arith.constant 0 : index
    %6 = vector.load %arg4[%c0_4, %c0_5] : memref<1x32xf32, #tpu.memory_space<vmem>>, vector<1x32xf32>
    %c0_6 = arith.constant 0 : index
    %c0_7 = arith.constant 0 : index
    %7 = vector.load %arg3[%c0_6, %c0_7] : memref<32x64xi8, #tpu.memory_space<vmem>>, vector<32x64xi8>
    %8 = arith.sitofp %7 : vector<32x64xi8> to vector<32x64xf32>
    %cst = arith.constant 0.000000e+00 : f32
    %9 = vector.broadcast %cst : f32 to vector<32x64xf32>
    %10 = arith.cmpf ogt, %8, %9 : vector<32x64xf32>
    %cst_8 = arith.constant 0.000000e+00 : f32
    %cst_9 = arith.constant -1.000000e+30 : f32
    %11 = vector.broadcast %cst_8 : f32 to vector<32x64xf32>
    %12 = vector.broadcast %cst_9 : f32 to vector<32x64xf32>
    %13 = arith.select %10, %11, %12 : vector<32x64xi1>, vector<32x64xf32>
    %14 = vector.extract_strided_slice %4 {offsets = [0, 0], sizes = [64, 8], strides = [1, 1]} : vector<64x32xf32> to vector<64x8xf32>
    %15 = vector.extract_strided_slice %3 {offsets = [0, 32], sizes = [32, 8], strides = [1, 1]} : vector<32x72xf32> to vector<32x8xf32>
    %16 = vector.extract_strided_slice %3 {offsets = [0, 64], sizes = [32, 1], strides = [1, 1]} : vector<32x72xf32> to vector<32x1xf32>
    %17 = vector.extract_strided_slice %5 {offsets = [0, 0], sizes = [1, 64], strides = [1, 1]} : vector<4x64xf32> to vector<1x64xf32>
    %18 = vector.broadcast %17 : vector<1x64xf32> to vector<32x64xf32>
    %19 = vector.broadcast %16 : vector<32x1xf32> to vector<32x64xf32>
    %20 = arith.addf %18, %19 : vector<32x64xf32>
    %cst_10 = arith.constant 0.000000e+00 : f32
    %21 = vector.broadcast %cst_10 : f32 to vector<32x64xf32>
    %22 = arith.cmpf ogt, %20, %21 : vector<32x64xf32>
    %cst_11 = arith.constant 2.000000e-01 : f32
    %23 = vector.broadcast %cst_11 : f32 to vector<32x64xf32>
    %24 = arith.mulf %23, %20 : vector<32x64xf32>
    %25 = arith.select %22, %20, %24 : vector<32x64xi1>, vector<32x64xf32>
    %26 = arith.addf %25, %13 : vector<32x64xf32>
    %cst_12 = arith.constant dense<0xFF800000> : vector<32xf32>
    %27 = vector.multi_reduction <maximumf>, %26, %cst_12 [1] : vector<32x64xf32> to vector<32xf32>
    %28 = vector.shape_cast %27 : vector<32xf32> to vector<32x1xf32>
    %29 = vector.broadcast %28 : vector<32x1xf32> to vector<32x64xf32>
    %30 = arith.subf %26, %29 : vector<32x64xf32>
    %31 = math.exp %30 : vector<32x64xf32>
    %cst_13 = arith.constant dense<0.000000e+00> : vector<32xf32>
    %32 = vector.multi_reduction <add>, %31, %cst_13 [1] : vector<32x64xf32> to vector<32xf32>
    %33 = vector.shape_cast %32 : vector<32xf32> to vector<32x1xf32>
    %34 = tpu.reciprocal %33 {approx = true} : vector<32x1xf32> -> vector<32x1xf32>
    %35 = vector.broadcast %34 : vector<32x1xf32> to vector<32x64xf32>
    %36 = arith.mulf %31, %35 : vector<32x64xf32>
    %37 = arith.truncf %36 : vector<32x64xf32> to vector<32x64xbf16>
    %38 = arith.truncf %14 : vector<64x8xf32> to vector<64x8xbf16>
    %cst_14 = arith.constant dense<0.000000e+00> : vector<32x8xf32>
    %39 = tpu.matmul %37, %38, %cst_14 {dimension_numbers = #tpu.dot_dimension_numbers<[1], [0], [0], [1], [0, 0, 1, 1], [], []>} : vector<32x64xbf16>, vector<64x8xbf16>, vector<32x8xf32> -> vector<32x8xf32>
    %40 = arith.addf %39, %15 : vector<32x8xf32>
    %41 = vector.extract_strided_slice %6 {offsets = [0, 0], sizes = [1, 8], strides = [1, 1]} : vector<1x32xf32> to vector<1x8xf32>
    %42 = vector.broadcast %41 : vector<1x8xf32> to vector<32x8xf32>
    %43 = arith.addf %40, %42 : vector<32x8xf32>
    %c0_15 = arith.constant 0 : index
    %c0_16 = arith.constant 0 : index
    %44 = vector.load %arg8[%c0_15, %c0_16] : memref<32x32xf32, #tpu.memory_space<vmem>>, vector<32x8xf32>
    tpu.vector_store %arg8[%c0_15, %c0_16], %43 {strides = array<i32>} : memref<32x32xf32, #tpu.memory_space<vmem>>, vector<32x8xf32>,
    %45 = vector.extract_strided_slice %4 {offsets = [0, 8], sizes = [64, 8], strides = [1, 1]} : vector<64x32xf32> to vector<64x8xf32>
    %46 = vector.extract_strided_slice %3 {offsets = [0, 40], sizes = [32, 8], strides = [1, 1]} : vector<32x72xf32> to vector<32x8xf32>
    %47 = vector.extract_strided_slice %3 {offsets = [0, 65], sizes = [32, 1], strides = [1, 1]} : vector<32x72xf32> to vector<32x1xf32>
    %48 = vector.extract_strided_slice %5 {offsets = [1, 0], sizes = [1, 64], strides = [1, 1]} : vector<4x64xf32> to vector<1x64xf32>
    %49 = vector.broadcast %48 : vector<1x64xf32> to vector<32x64xf32>
    %50 = vector.broadcast %47 : vector<32x1xf32> to vector<32x64xf32>
    %51 = arith.addf %49, %50 : vector<32x64xf32>
    %cst_17 = arith.constant 0.000000e+00 : f32
    %52 = vector.broadcast %cst_17 : f32 to vector<32x64xf32>
    %53 = arith.cmpf ogt, %51, %52 : vector<32x64xf32>
    %cst_18 = arith.constant 2.000000e-01 : f32
    %54 = vector.broadcast %cst_18 : f32 to vector<32x64xf32>
    %55 = arith.mulf %54, %51 : vector<32x64xf32>
    %56 = arith.select %53, %51, %55 : vector<32x64xi1>, vector<32x64xf32>
    %57 = arith.addf %56, %13 : vector<32x64xf32>
    %cst_19 = arith.constant dense<0xFF800000> : vector<32xf32>
    %58 = vector.multi_reduction <maximumf>, %57, %cst_19 [1] : vector<32x64xf32> to vector<32xf32>
    %59 = vector.shape_cast %58 : vector<32xf32> to vector<32x1xf32>
    %60 = vector.broadcast %59 : vector<32x1xf32> to vector<32x64xf32>
    %61 = arith.subf %57, %60 : vector<32x64xf32>
    %62 = math.exp %61 : vector<32x64xf32>
    %cst_20 = arith.constant dense<0.000000e+00> : vector<32xf32>
    %63 = vector.multi_reduction <add>, %62, %cst_20 [1] : vector<32x64xf32> to vector<32xf32>
    %64 = vector.shape_cast %63 : vector<32xf32> to vector<32x1xf32>
    %65 = tpu.reciprocal %64 {approx = true} : vector<32x1xf32> -> vector<32x1xf32>
    %66 = vector.broadcast %65 : vector<32x1xf32> to vector<32x64xf32>
    %67 = arith.mulf %62, %66 : vector<32x64xf32>
    %68 = arith.truncf %67 : vector<32x64xf32> to vector<32x64xbf16>
    %69 = arith.truncf %45 : vector<64x8xf32> to vector<64x8xbf16>
    %cst_21 = arith.constant dense<0.000000e+00> : vector<32x8xf32>
    %70 = tpu.matmul %68, %69, %cst_21 {dimension_numbers = #tpu.dot_dimension_numbers<[1], [0], [0], [1], [0, 0, 1, 1], [], []>} : vector<32x64xbf16>, vector<64x8xbf16>, vector<32x8xf32> -> vector<32x8xf32>
    %71 = arith.addf %70, %46 : vector<32x8xf32>
    %72 = vector.extract_strided_slice %6 {offsets = [0, 8], sizes = [1, 8], strides = [1, 1]} : vector<1x32xf32> to vector<1x8xf32>
    %73 = vector.broadcast %72 : vector<1x8xf32> to vector<32x8xf32>
    %74 = arith.addf %71, %73 : vector<32x8xf32>
    %c0_22 = arith.constant 0 : index
    %c8 = arith.constant 8 : index
    %75 = vector.load %arg8[%c0_22, %c8] : memref<32x32xf32, #tpu.memory_space<vmem>>, vector<32x8xf32>
    tpu.vector_store %arg8[%c0_22, %c8], %74 {strides = array<i32>} : memref<32x32xf32, #tpu.memory_space<vmem>>, vector<32x8xf32>,
    %76 = vector.extract_strided_slice %4 {offsets = [0, 16], sizes = [64, 8], strides = [1, 1]} : vector<64x32xf32> to vector<64x8xf32>
    %77 = vector.extract_strided_slice %3 {offsets = [0, 48], sizes = [32, 8], strides = [1, 1]} : vector<32x72xf32> to vector<32x8xf32>
    %78 = vector.extract_strided_slice %3 {offsets = [0, 66], sizes = [32, 1], strides = [1, 1]} : vector<32x72xf32> to vector<32x1xf32>
    %79 = vector.extract_strided_slice %5 {offsets = [2, 0], sizes = [1, 64], strides = [1, 1]} : vector<4x64xf32> to vector<1x64xf32>
    %80 = vector.broadcast %79 : vector<1x64xf32> to vector<32x64xf32>
    %81 = vector.broadcast %78 : vector<32x1xf32> to vector<32x64xf32>
    %82 = arith.addf %80, %81 : vector<32x64xf32>
    %cst_23 = arith.constant 0.000000e+00 : f32
    %83 = vector.broadcast %cst_23 : f32 to vector<32x64xf32>
    %84 = arith.cmpf ogt, %82, %83 : vector<32x64xf32>
    %cst_24 = arith.constant 2.000000e-01 : f32
    %85 = vector.broadcast %cst_24 : f32 to vector<32x64xf32>
    %86 = arith.mulf %85, %82 : vector<32x64xf32>
    %87 = arith.select %84, %82, %86 : vector<32x64xi1>, vector<32x64xf32>
    %88 = arith.addf %87, %13 : vector<32x64xf32>
    %cst_25 = arith.constant dense<0xFF800000> : vector<32xf32>
    %89 = vector.multi_reduction <maximumf>, %88, %cst_25 [1] : vector<32x64xf32> to vector<32xf32>
    %90 = vector.shape_cast %89 : vector<32xf32> to vector<32x1xf32>
    %91 = vector.broadcast %90 : vector<32x1xf32> to vector<32x64xf32>
    %92 = arith.subf %88, %91 : vector<32x64xf32>
    %93 = math.exp %92 : vector<32x64xf32>
    %cst_26 = arith.constant dense<0.000000e+00> : vector<32xf32>
    %94 = vector.multi_reduction <add>, %93, %cst_26 [1] : vector<32x64xf32> to vector<32xf32>
    %95 = vector.shape_cast %94 : vector<32xf32> to vector<32x1xf32>
    %96 = tpu.reciprocal %95 {approx = true} : vector<32x1xf32> -> vector<32x1xf32>
    %97 = vector.broadcast %96 : vector<32x1xf32> to vector<32x64xf32>
    %98 = arith.mulf %93, %97 : vector<32x64xf32>
    %99 = arith.truncf %98 : vector<32x64xf32> to vector<32x64xbf16>
    %100 = arith.truncf %76 : vector<64x8xf32> to vector<64x8xbf16>
    %cst_27 = arith.constant dense<0.000000e+00> : vector<32x8xf32>
    %101 = tpu.matmul %99, %100, %cst_27 {dimension_numbers = #tpu.dot_dimension_numbers<[1], [0], [0], [1], [0, 0, 1, 1], [], []>} : vector<32x64xbf16>, vector<64x8xbf16>, vector<32x8xf32> -> vector<32x8xf32>
    %102 = arith.addf %101, %77 : vector<32x8xf32>
    %103 = vector.extract_strided_slice %6 {offsets = [0, 16], sizes = [1, 8], strides = [1, 1]} : vector<1x32xf32> to vector<1x8xf32>
    %104 = vector.broadcast %103 : vector<1x8xf32> to vector<32x8xf32>
    %105 = arith.addf %102, %104 : vector<32x8xf32>
    %c0_28 = arith.constant 0 : index
    %c16 = arith.constant 16 : index
    %106 = vector.load %arg8[%c0_28, %c16] : memref<32x32xf32, #tpu.memory_space<vmem>>, vector<32x8xf32>
    tpu.vector_store %arg8[%c0_28, %c16], %105 {strides = array<i32>} : memref<32x32xf32, #tpu.memory_space<vmem>>, vector<32x8xf32>,
    %107 = vector.extract_strided_slice %4 {offsets = [0, 24], sizes = [64, 8], strides = [1, 1]} : vector<64x32xf32> to vector<64x8xf32>
    %108 = vector.extract_strided_slice %3 {offsets = [0, 56], sizes = [32, 8], strides = [1, 1]} : vector<32x72xf32> to vector<32x8xf32>
    %109 = vector.extract_strided_slice %3 {offsets = [0, 67], sizes = [32, 1], strides = [1, 1]} : vector<32x72xf32> to vector<32x1xf32>
    %110 = vector.extract_strided_slice %5 {offsets = [3, 0], sizes = [1, 64], strides = [1, 1]} : vector<4x64xf32> to vector<1x64xf32>
    %111 = vector.broadcast %110 : vector<1x64xf32> to vector<32x64xf32>
    %112 = vector.broadcast %109 : vector<32x1xf32> to vector<32x64xf32>
    %113 = arith.addf %111, %112 : vector<32x64xf32>
    %cst_29 = arith.constant 0.000000e+00 : f32
    %114 = vector.broadcast %cst_29 : f32 to vector<32x64xf32>
    %115 = arith.cmpf ogt, %113, %114 : vector<32x64xf32>
    %cst_30 = arith.constant 2.000000e-01 : f32
    %116 = vector.broadcast %cst_30 : f32 to vector<32x64xf32>
    %117 = arith.mulf %116, %113 : vector<32x64xf32>
    %118 = arith.select %115, %113, %117 : vector<32x64xi1>, vector<32x64xf32>
    %119 = arith.addf %118, %13 : vector<32x64xf32>
    %cst_31 = arith.constant dense<0xFF800000> : vector<32xf32>
    %120 = vector.multi_reduction <maximumf>, %119, %cst_31 [1] : vector<32x64xf32> to vector<32xf32>
    %121 = vector.shape_cast %120 : vector<32xf32> to vector<32x1xf32>
    %122 = vector.broadcast %121 : vector<32x1xf32> to vector<32x64xf32>
    %123 = arith.subf %119, %122 : vector<32x64xf32>
    %124 = math.exp %123 : vector<32x64xf32>
    %cst_32 = arith.constant dense<0.000000e+00> : vector<32xf32>
    %125 = vector.multi_reduction <add>, %124, %cst_32 [1] : vector<32x64xf32> to vector<32xf32>
    %126 = vector.shape_cast %125 : vector<32xf32> to vector<32x1xf32>
    %127 = tpu.reciprocal %126 {approx = true} : vector<32x1xf32> -> vector<32x1xf32>
    %128 = vector.broadcast %127 : vector<32x1xf32> to vector<32x64xf32>
    %129 = arith.mulf %124, %128 : vector<32x64xf32>
    %130 = arith.truncf %129 : vector<32x64xf32> to vector<32x64xbf16>
    %131 = arith.truncf %107 : vector<64x8xf32> to vector<64x8xbf16>
    %cst_33 = arith.constant dense<0.000000e+00> : vector<32x8xf32>
    %132 = tpu.matmul %130, %131, %cst_33 {dimension_numbers = #tpu.dot_dimension_numbers<[1], [0], [0], [1], [0, 0, 1, 1], [], []>} : vector<32x64xbf16>, vector<64x8xbf16>, vector<32x8xf32> -> vector<32x8xf32>
    %133 = arith.addf %132, %108 : vector<32x8xf32>
    %134 = vector.extract_strided_slice %6 {offsets = [0, 24], sizes = [1, 8], strides = [1, 1]} : vector<1x32xf32> to vector<1x8xf32>
    %135 = vector.broadcast %134 : vector<1x8xf32> to vector<32x8xf32>
    %136 = arith.addf %133, %135 : vector<32x8xf32>
    %c0_34 = arith.constant 0 : index
    %c24 = arith.constant 24 : index
    %137 = vector.load %arg8[%c0_34, %c24] : memref<32x32xf32, #tpu.memory_space<vmem>>, vector<32x8xf32>
    tpu.vector_store %arg8[%c0_34, %c24], %136 {strides = array<i32>} : memref<32x32xf32, #tpu.memory_space<vmem>>, vector<32x8xf32>,
    %c0_35 = arith.constant 0 : index
    %c0_36 = arith.constant 0 : index
    %138 = vector.load %arg8[%c0_35, %c0_36] : memref<32x32xf32, #tpu.memory_space<vmem>>, vector<32x32xf32>
    %c0_37 = arith.constant 0 : index
    %c0_38 = arith.constant 0 : index
    %139 = vector.load %arg5[%c0_37, %c0_38] : memref<1x32xf32, #tpu.memory_space<vmem>>, vector<1x32xf32>
    %140 = vector.broadcast %139 : vector<1x32xf32> to vector<32x32xf32>
    %141 = arith.mulf %138, %140 : vector<32x32xf32>
    %c0_39 = arith.constant 0 : index
    %c0_40 = arith.constant 0 : index
    %142 = vector.load %arg6[%c0_39, %c0_40] : memref<1x32xf32, #tpu.memory_space<vmem>>, vector<1x32xf32>
    %143 = vector.broadcast %142 : vector<1x32xf32> to vector<32x32xf32>
    %144 = arith.addf %141, %143 : vector<32x32xf32>
    %cst_41 = arith.constant 0.000000e+00 : f32
    %145 = vector.broadcast %cst_41 : f32 to vector<32x32xf32>
    %146 = arith.maximumf %144, %145 : vector<32x32xf32>
    %c0_42 = arith.constant 0 : index
    %c0_43 = arith.constant 0 : index
    %147 = vector.load %arg7[%c0_42, %c0_43] : memref<32x32xf32, #tpu.memory_space<vmem>>, vector<32x32xf32>
    tpu.vector_store %arg7[%c0_42, %c0_43], %146 {strides = array<i32>} : memref<32x32xf32, #tpu.memory_space<vmem>>, vector<32x32xf32>,
    return
  }
  func.func @transform_0(%arg0: i32) -> (i32, i32) {
    %c0_i32 = arith.constant 0 : i32
    %c0_i32_0 = arith.constant 0 : i32
    %c0_i32_1 = arith.constant 0 : i32
    return %c0_i32, %c0_i32_0 : i32, i32
  }
  func.func @transform_1(%arg0: i32) -> (i32, i32) {
    %c0_i32 = arith.constant 0 : i32
    %c0_i32_0 = arith.constant 0 : i32
    %c0_i32_1 = arith.constant 0 : i32
    return %c0_i32, %c0_i32_0 : i32, i32
  }
  func.func @transform_2(%arg0: i32) -> (i32, i32) {
    %c0_i32 = arith.constant 0 : i32
    %c0_i32_0 = arith.constant 0 : i32
    return %arg0, %c0_i32 : i32, i32
  }
  func.func @transform_3(%arg0: i32) -> (i32, i32) {
    %c0_i32 = arith.constant 0 : i32
    %c0_i32_0 = arith.constant 0 : i32
    %c0_i32_1 = arith.constant 0 : i32
    return %c0_i32, %c0_i32_0 : i32, i32
  }
  func.func @transform_4(%arg0: i32) -> (i32, i32) {
    %c0_i32 = arith.constant 0 : i32
    %c0_i32_0 = arith.constant 0 : i32
    %c0_i32_1 = arith.constant 0 : i32
    return %c0_i32, %c0_i32_0 : i32, i32
  }
  func.func @transform_5(%arg0: i32) -> (i32, i32) {
    %c0_i32 = arith.constant 0 : i32
    %c0_i32_0 = arith.constant 0 : i32
    %c0_i32_1 = arith.constant 0 : i32
    return %c0_i32, %c0_i32_0 : i32, i32
  }
  func.func @transform_6(%arg0: i32) -> (i32, i32) {
    %c0_i32 = arith.constant 0 : i32
    %c0_i32_0 = arith.constant 0 : i32
    return %arg0, %c0_i32 : i32, i32
  }
}

</mosaic_0001>

<llo_original>
// kernel: gat_forward.6
$region0: #{gat_forward.6}
  #allocation0 [shape = 'u32[]', space=smem, size = 0x4, offset = 0x4, fixed_abs, tag = 'smem constant byte address 0x4 - core index']
  #allocation1 [shape = 'u32[144,128]{1,0:T(1,128)}', space=vmem, size = 0x12000, scoped, tag = 'internal scratch']
  %s0 = inlined_call_operand.vmem [shape: f32[64,32], index: 0, kind: input, shape index: {}]
  %s1 = inlined_call_operand.vmem [shape: f32[32,72], index: 1, kind: input, shape index: {}]
  %s2 = inlined_call_operand.vmem [shape: f32[64,72], index: 2, kind: output, shape index: {}]
  %s3 = sld [smem:[#allocation0]]
  $region41: #{gat_forward.6} parent=0
    _
  %s5 = ssub.s32 1, %s3
  %s6 = scalar_select 0, %s5, %s3
  loop: start=0, step=1, limit=4
  $region2: #{gat_forward.6} parent=0 // loop_pre_header
    _
  $region3: #{gat_forward.6} parent=0 // loop_header
    %s8 = sphi 0, %s12
    %p9 = scmp.ge.s32.totalorder %s8, 4
    %s18 = sphi 0, %s20
    %s21 = sphi 0, %s18
    %s22 = sphi 0, %s21
    %s38 = sphi 0, %s22
    %s42 = sphi 0, %s42
    %s44 = sphi 0, %s42
    %s45 = sphi 0, %s44
    %s59 = sphi 0, %s45
    %s65 = sphi 0, %s67
    %s68 = sphi 0, %s65
    %s69 = sphi 0, %s68
    %s85 = sphi 0, %s69
  $region4: #{gat_forward.6} parent=0 // loop_header_branch
    %11 = sbr.rel (%p9) target = $region8
  $region5: #{gat_forward.6} parent=0 // loop_body
    %s13 = ssub.s32 %s8, 1
    %s14 = ssub.s32 %s8, 2
    %s15 = sadd.s32 %s8, 1
    %s16 = ssub.s32 %s8, %s15
    %p17 = scmp.eq.s32.totalorder %s16, 0
    %s19 = sadd.s32 %s18, 1
    %s20 = scalar_select %p17, %s18, %s19
    %p23 = pneg %p17
    %p24 = scmp.eq.s32.totalorder %s8, 1
    %p25 = por %p23, %p24
    %p26 = scmp.ne.s32.totalorder %s18, %s21
    %p27 = scmp.eq.s32.totalorder %s8, 0
    %p28 = por %p26, %p27
    %p29 = scmp.ne.s32.totalorder %s18, %s21
    %p30 = scmp.eq.s32.totalorder %s13, 1
    %p31 = por %p29, %p30
    %p32 = scmp.ne.s32.totalorder %s21, %s22
    %p33 = scmp.eq.s32.totalorder %s13, 0
    %p34 = por %p32, %p33
    %p35 = scmp.ne.s32.totalorder %s21, %s22
    %p36 = scmp.eq.s32.totalorder %s14, 1
    %p37 = por %p35, %p36
    %p39 = scmp.ne.s32.totalorder %s22, %s38
    %p40 = scmp.eq.s32.totalorder %s14, 0
    %p41 = por %p39, %p40
    %s43 = sadd.s32 %s42, 1
    %p46 = scmp.eq.s32.totalorder %s8, 1
    %p47 = scmp.ne.s32.totalorder %s42, %s44
    %p48 = scmp.eq.s32.totalorder %s8, 0
    %p49 = por %p47, %p48
    %p50 = scmp.ne.s32.totalorder %s42, %s44
    %p51 = scmp.eq.s32.totalorder %s13, 1
    %p52 = por %p50, %p51
    %p53 = scmp.ne.s32.totalorder %s44, %s45
    %p54 = scmp.eq.s32.totalorder %s13, 0
    %p55 = por %p53, %p54
    %p56 = scmp.ne.s32.totalorder %s44, %s45
    %p57 = scmp.eq.s32.totalorder %s14, 1
    %p58 = por %p56, %p57
    %p60 = scmp.ne.s32.totalorder %s45, %s59
    %p61 = scmp.eq.s32.totalorder %s14, 0
    %p62 = por %p60, %p61
    %s63 = ssub.s32 %s8, %s15
    %p64 = scmp.eq.s32.totalorder %s63, 0
    %s66 = sadd.s32 %s65, 1
    %s67 = scalar_select %p64, %s65, %s66
    %p70 = pneg %p64
    %p71 = scmp.eq.s32.totalorder %s8, 1
    %p72 = por %p70, %p71
    %p73 = scmp.ne.s32.totalorder %s65, %s68
    %p74 = scmp.eq.s32.totalorder %s8, 0
    %p75 = por %p73, %p74
    %p76 = scmp.ne.s32.totalorder %s65, %s68
    %p77 = scmp.eq.s32.totalorder %s13, 1
    %p78 = por %p76, %p77
    %p79 = scmp.ne.s32.totalorder %s68, %s69
    %p80 = scmp.eq.s32.totalorder %s13, 0
    %p81 = por %p79, %p80
    %p82 = scmp.ne.s32.totalorder %s68, %s69
    %p83 = scmp.eq.s32.totalorder %s14, 1
    %p84 = por %p82, %p83
    %p86 = scmp.ne.s32.totalorder %s69, %s85
    %p87 = scmp.eq.s32.totalorder %s14, 0
    %p88 = por %p86, %p87
    %p89 = scmp.le.s32.totalorder 1, %s8
    %p90 = scmp.lt.s32.totalorder %s8, 3
    %p91 = pnand %p89, %p90
    %p92 = pneg %p91
    // Predicated region
    $region9: #{gat_forward.6} parent=5 // pred_check
      _
    $region10: #{gat_forward.6} parent=5 // pred_check_branch
      %94 = sbr.rel (%p91) target = $region12
    $region11: #{gat_forward.6} parent=5 // pred_region
      %s95 = ssub.s32 %s8, 1
      // Predicated region
      $region13: #{gat_forward.6} parent=11 // pred_check
        %p96 = pneg %p55
      $region14: #{gat_forward.6} parent=11 // pred_check_branch
        %98 = sbr.rel (%p96) target = $region16
      $region15: #{gat_forward.6} parent=11 // pred_region
        _
      $region16: #{gat_forward.6} parent=11 // pred_fallthru
        _
    $region12: #{gat_forward.6} parent=5 // pred_fallthru
      _
    %p99 = scmp.lt.s32.totalorder %s8, 2
    // Predicated region
    $region17: #{gat_forward.6} parent=5 // pred_check
      %p100 = pneg %p99
    $region18: #{gat_forward.6} parent=5 // pred_check_branch
      %102 = sbr.rel (%p100) target = $region20
    $region19: #{gat_forward.6} parent=5 // pred_region
      // Predicated region
      $region21: #{gat_forward.6} parent=19 // pred_check
        %p103 = pneg %p28
      $region22: #{gat_forward.6} parent=19 // pred_check_branch
        %105 = sbr.rel (%p103) target = $region24
      $region23: #{gat_forward.6} parent=19 // pred_region
        %s106 = smul.u32 4, %s8
        %p107 = scmp.lt.s32.totalorder %s106, 7
        %s108 = scalar_select %p107, %s106, 7
        %s109 = smul.addr %s108, 8
        %s110 = scalar_lea.vmem %s0, %s109
        %s111 = smul.u32 4, %s8
      $region24: #{gat_forward.6} parent=19 // pred_fallthru
        _
    $region20: #{gat_forward.6} parent=5 // pred_fallthru
      _
    %p112 = scmp.le.s32.totalorder 1, %s8
    %p113 = scmp.lt.s32.totalorder %s8, 3
    %p114 = pnand %p112, %p113
    %p115 = pneg %p114
    // Predicated region
    $region25: #{gat_forward.6} parent=5 // pred_check
      _
    $region26: #{gat_forward.6} parent=5 // pred_check_branch
      %117 = sbr.rel (%p114) target = $region28
    $region27: #{gat_forward.6} parent=5 // pred_region
      %s118 = ssub.s32 %s8, 1
      %s119 = smul.u32 4, %s13
      %p120 = scmp.lt.s32.totalorder %s119, 7
      %s121 = scalar_select %p120, %s119, 7
      %s122 = smul.addr %s121, 8
      %s123 = scalar_lea.vmem %s0, %s122
      %p124 = pneg %p34
      %p125 = pneg %p31
      %p126 = pneg %p55
      %p127 = pneg %p52
      %p128 = pneg %p81
      %p129 = pneg %p78
      %s130 = smul.u32 4, %s13
      %p131 = scmp.lt.s32.totalorder %s130, 7
      %s132 = scalar_select %p131, %s130, 7
      %s133 = smul.addr %s132, 8
      %s134 = scalar_lea.vmem %s2, %s133
      %s135 = smul.u32 4, %s13
      %p136 = scmp.lt.s32.totalorder %s135, 7
      %s137 = scalar_select %p136, %s135, 7
      %s138 = smul.addr %s137, 8
      %s139 = scalar_lea.vmem %s0, %s138
      %s140 = smul.u32 4, %s13
      %s141 = smul.u32 4, %s13
      %p142 = scmp.lt.s32.totalorder %s141, 7
      %s143 = scalar_select %p142, %s141, 7
      %s144 = smul.addr %s143, 8
      %s145 = scalar_lea.vmem %s2, %s144
      %s146 = smul.u32 4, %s13
      %v147 = vld [vmem:[%s139] sm:$0xff]
      %v148 = vld [vmem:[%s139 + $0x8] sm:$0xff]
      %v149 = vld [vmem:[%s139 + $0x10] sm:$0xff]
      %v150 = vld [vmem:[%s139 + $0x18] sm:$0xff]
      %v151 = vld [vmem:[%s1] sm:$0xff]
      %v152 = vld [vmem:[%s1 + $0x8] sm:$0xff]
      %v153 = vld [vmem:[%s1 + $0x10] sm:$0xff]
      %v154 = vld [vmem:[%s1 + $0x18] sm:$0xff]
      %vm155 = vcmask 261120
      %v157 = vsel %vm155, %v147, 0
      %v160 = vsel %vm155, %v148, 0
      %v163 = vsel %vm155, %v149, 0
      %v166 = vsel %vm155, %v150, 0
      %168 = vmatprep.subr.mxu0 0.0
      %169 = vmatpush1.msra.mxu0 %v151
      %170 = vmatprep.subr.mxu0 0.0
      %171 = vmatpush1.msra.mxu0 %v152
      %172 = vmatprep.subr.mxu0 0.0
      %173 = vmatpush1.msra.mxu0 %v153
      %174 = vmatprep.subr.mxu0 0.0
      %175 = vmatpush1.msra.mxu0 %v154
      %176 = vmatprep.subr.mxu0 0.0
      %177 = vmatpush1.msra.mxu0 0.0
      %178 = vmatprep.subr.mxu0 0.0
      %179 = vmatpush1.msra.mxu0 0.0
      %180 = vmatprep.subr.mxu0 0.0
      %181 = vmatpush1.msra.mxu0 0.0
      %182 = vmatprep.subr.mxu0 0.0
      %183 = vmatpush1.msra.mxu0 0.0
      %184 = vmatprep.subr.mxu0 0.0
      %185 = vmatpush1.msra.mxu0 0.0
      %186 = vmatprep.subr.mxu0 0.0
      %187 = vmatpush1.msra.mxu0 0.0
      %188 = vmatprep.subr.mxu0 0.0
      %189 = vmatpush1.msra.mxu0 0.0
      %190 = vmatprep.subr.mxu0 0.0
      %191 = vmatpush1.msra.mxu0 0.0
      %192 = vmatprep.subr.mxu0 0.0
      %193 = vmatpush1.msra.mxu0 0.0
      %194 = vmatprep.subr.mxu0 0.0
      %195 = vmatpush1.msra.mxu0 0.0
      %196 = vmatprep.subr.mxu0 0.0
      %197 = vmatpush1.msra.mxu0 0.0
      %198 = vmatprep.subr.mxu0 0.0
      %199 = vmatpush1.msra.mxu0 0.0
      %200 = vmatprep.subr.mxu0 0.0
      %201 = vmatpush1.msra.mxu0 0.0
      %202 = vmatprep.subr.mxu0 0.0
      %203 = vmatpush1.msra.mxu0 0.0
      %204 = vmatprep.subr.mxu0 0.0
      %205 = vmatpush1.msra.mxu0 0.0
      %206 = vmatprep.subr.mxu0 0.0
      %207 = vmatpush1.msra.mxu0 0.0
      %208 = vmatprep.subr.mxu0 0.0
      %209 = vmatpush1.msra.mxu0 0.0
      %210 = vmatprep.subr.mxu0 0.0
      %211 = vmatpush1.msra.mxu0 0.0
      %212 = vmatprep.subr.mxu0 0.0
      %213 = vmatpush1.msra.mxu0 0.0
      %214 = vmatprep.subr.mxu0 0.0
      %215 = vmatpush1.msra.mxu0 0.0
      %216 = vmatprep.subr.mxu0 0.0
      %217 = vmatpush1.msra.mxu0 0.0
      %218 = vmatprep.subr.mxu0 0.0
      %219 = vmatpush1.msra.mxu0 0.0
      %220 = vmatprep.subr.mxu0 0.0
      %221 = vmatpush1.msra.mxu0 0.0
      %222 = vmatprep.subr.mxu0 0.0
      %223 = vmatpush1.msra.mxu0 0.0
      %224 = vmatprep.subr.mxu0 0.0
      %225 = vmatpush1.msra.mxu0 0.0
      %226 = vmatprep.subr.mxu0 0.0
      %227 = vmatpush1.msra.mxu0 0.0
      %228 = vmatprep.subr.mxu0 0.0
      %229 = vmatpush1.msra.mxu0 0.0
      %230 = vmatprep.subr.mxu0 0.0
      %231 = vmatpush1.msra.mxu0 0.0
      %232 = vmatprep.mubr.f32.mxu0 0.0
      %233 = vmatmul.mubr.f32.gmra.mrb[0].mxu0 %v157
      %v234 = vpop.f32.mrb[0].mxu0
      %v235 = vadd.f32 0.0, %v234
      %v236 = vpop.f32.mrb[0].mxu0
      %237 = vmatprep.mubr.f32.mxu0 0.0
      %238 = vmatmul.mubr.f32.gmra.mrb[0].mxu0 %v160
      %v239 = vpop.f32.mrb[0].mxu0
      %v240 = vadd.f32 0.0, %v239
      %v241 = vpop.f32.mrb[0].mxu0
      %242 = vmatprep.mubr.f32.mxu0 0.0
      %243 = vmatmul.mubr.f32.gmra.mrb[0].mxu0 %v163
      %v244 = vpop.f32.mrb[0].mxu0
      %v245 = vadd.f32 0.0, %v244
      %v246 = vpop.f32.mrb[0].mxu0
      %247 = vmatprep.mubr.f32.mxu0 0.0
      %248 = vmatmul.mubr.f32.gmra.mrb[0].mxu0 %v166
      %v249 = vpop.f32.mrb[0].mxu0
      %v250 = vadd.f32 0.0, %v249
      %v251 = vpop.f32.mrb[0].mxu0
      %252 = vdwg.mxu0
      %vm253 = vcmask 588800
      %254 = vst.msk [vmem:[%s145] sm:$0xff] %vm253, %v235
      %255 = vst.msk [vmem:[%s145 + $0x8] sm:$0xff] %vm253, %v240
      %256 = vst.msk [vmem:[%s145 + $0x10] sm:$0xff] %vm253, %v245
      %257 = vst.msk [vmem:[%s145 + $0x18] sm:$0xff] %vm253, %v250
      %s258 = smul.u32 4, %s13
      %p259 = scmp.lt.s32.totalorder %s258, 7
      %s260 = scalar_select %p259, %s258, 7
      %s261 = smul.addr %s260, 8
      %s262 = scalar_lea.vmem %s2, %s261
      // Predicated region
      $region29: #{gat_forward.6} parent=27 // pred_check
        %p263 = pneg %p78
      $region30: #{gat_forward.6} parent=27 // pred_check_branch
        %265 = sbr.rel (%p263) target = $region32
      $region31: #{gat_forward.6} parent=27 // pred_region
        %s266 = smul.u32 4, %s13
      $region32: #{gat_forward.6} parent=27 // pred_fallthru
        _
    $region28: #{gat_forward.6} parent=5 // pred_fallthru
      _
    %p267 = scmp.le.s32.totalorder 2, %s8
    // Predicated region
    $region33: #{gat_forward.6} parent=5 // pred_check
      %p268 = pneg %p267
    $region34: #{gat_forward.6} parent=5 // pred_check_branch
      %270 = sbr.rel (%p268) target = $region36
    $region35: #{gat_forward.6} parent=5 // pred_region
      %s271 = ssub.s32 %s8, 2
      // Predicated region
      $region37: #{gat_forward.6} parent=35 // pred_check
        %p272 = pneg %p84
      $region38: #{gat_forward.6} parent=35 // pred_check_branch
        %274 = sbr.rel (%p272) target = $region40
      $region39: #{gat_forward.6} parent=35 // pred_region
        %s275 = smul.u32 4, %s14
        %p276 = scmp.lt.s32.totalorder %s275, 7
        %s277 = scalar_select %p276, %s275, 7
        %s278 = smul.addr %s277, 8
        %s279 = scalar_lea.vmem %s2, %s278
      $region40: #{gat_forward.6} parent=35 // pred_fallthru
        _
    $region36: #{gat_forward.6} parent=5 // pred_fallthru
      _
  $region6: #{gat_forward.6} parent=0 // loop_footer
    %s12 = sadd.s32 1, %s8
  $region7: #{gat_forward.6} parent=0 // loop_footer_branch
    %7 = sbr.rel target = $region3
  $region8: #{gat_forward.6} parent=0 // loop_exit
    _

// kernel: gat_forward.4
$region0: #{gat_forward.4}
  #allocation0 [shape = 'u32[]', space=smem, size = 0x4, offset = 0x4, fixed_abs, tag = 'smem constant byte address 0x4 - core index']
  #allocation1 [shape = 'u32[144,128]{1,0:T(1,128)}', space=vmem, size = 0x12000, scoped, tag = 'internal scratch']
  %s0 = inlined_call_operand.vmem [shape: f32[64,16], index: 0, kind: input, shape index: {}]
  %s1 = inlined_call_operand.vmem [shape: f32[16,72], index: 1, kind: input, shape index: {}]
  %s2 = inlined_call_operand.vmem [shape: f32[64,72], index: 2, kind: output, shape index: {}]
  %s3 = sld [smem:[#allocation0]]
  $region41: #{gat_forward.4} parent=0
    _
  %s5 = ssub.s32 1, %s3
  %s6 = scalar_select 0, %s5, %s3
  loop: start=0, step=1, limit=4
  $region2: #{gat_forward.4} parent=0 // loop_pre_header
    _
  $region3: #{gat_forward.4} parent=0 // loop_header
    %s8 = sphi 0, %s12
    %p9 = scmp.ge.s32.totalorder %s8, 4
    %s18 = sphi 0, %s20
    %s21 = sphi 0, %s18
    %s22 = sphi 0, %s21
    %s38 = sphi 0, %s22
    %s42 = sphi 0, %s42
    %s44 = sphi 0, %s42
    %s45 = sphi 0, %s44
    %s59 = sphi 0, %s45
    %s65 = sphi 0, %s67
    %s68 = sphi 0, %s65
    %s69 = sphi 0, %s68
    %s85 = sphi 0, %s69
  $region4: #{gat_forward.4} parent=0 // loop_header_branch
    %11 = sbr.rel (%p9) target = $region8
  $region5: #{gat_forward.4} parent=0 // loop_body
    %s13 = ssub.s32 %s8, 1
    %s14 = ssub.s32 %s8, 2
    %s15 = sadd.s32 %s8, 1
    %s16 = ssub.s32 %s8, %s15
    %p17 = scmp.eq.s32.totalorder %s16, 0
    %s19 = sadd.s32 %s18, 1
    %s20 = scalar_select %p17, %s18, %s19
    %p23 = pneg %p17
    %p24 = scmp.eq.s32.totalorder %s8, 1
    %p25 = por %p23, %p24
    %p26 = scmp.ne.s32.totalorder %s18, %s21
    %p27 = scmp.eq.s32.totalorder %s8, 0
    %p28 = por %p26, %p27
    %p29 = scmp.ne.s32.totalorder %s18, %s21
    %p30 = scmp.eq.s32.totalorder %s13, 1
    %p31 = por %p29, %p30
    %p32 = scmp.ne.s32.totalorder %s21, %s22
    %p33 = scmp.eq.s32.totalorder %s13, 0
    %p34 = por %p32, %p33
    %p35 = scmp.ne.s32.totalorder %s21, %s22
    %p36 = scmp.eq.s32.totalorder %s14, 1
    %p37 = por %p35, %p36
    %p39 = scmp.ne.s32.totalorder %s22, %s38
    %p40 = scmp.eq.s32.totalorder %s14, 0
    %p41 = por %p39, %p40
    %s43 = sadd.s32 %s42, 1
    %p46 = scmp.eq.s32.totalorder %s8, 1
    %p47 = scmp.ne.s32.totalorder %s42, %s44
    %p48 = scmp.eq.s32.totalorder %s8, 0
    %p49 = por %p47, %p48
    %p50 = scmp.ne.s32.totalorder %s42, %s44
    %p51 = scmp.eq.s32.totalorder %s13, 1
    %p52 = por %p50, %p51
    %p53 = scmp.ne.s32.totalorder %s44, %s45
    %p54 = scmp.eq.s32.totalorder %s13, 0
    %p55 = por %p53, %p54
    %p56 = scmp.ne.s32.totalorder %s44, %s45
    %p57 = scmp.eq.s32.totalorder %s14, 1
    %p58 = por %p56, %p57
    %p60 = scmp.ne.s32.totalorder %s45, %s59
    %p61 = scmp.eq.s32.totalorder %s14, 0
    %p62 = por %p60, %p61
    %s63 = ssub.s32 %s8, %s15
    %p64 = scmp.eq.s32.totalorder %s63, 0
    %s66 = sadd.s32 %s65, 1
    %s67 = scalar_select %p64, %s65, %s66
    %p70 = pneg %p64
    %p71 = scmp.eq.s32.totalorder %s8, 1
    %p72 = por %p70, %p71
    %p73 = scmp.ne.s32.totalorder %s65, %s68
    %p74 = scmp.eq.s32.totalorder %s8, 0
    %p75 = por %p73, %p74
    %p76 = scmp.ne.s32.totalorder %s65, %s68
    %p77 = scmp.eq.s32.totalorder %s13, 1
    %p78 = por %p76, %p77
    %p79 = scmp.ne.s32.totalorder %s68, %s69
    %p80 = scmp.eq.s32.totalorder %s13, 0
    %p81 = por %p79, %p80
    %p82 = scmp.ne.s32.totalorder %s68, %s69
    %p83 = scmp.eq.s32.totalorder %s14, 1
    %p84 = por %p82, %p83
    %p86 = scmp.ne.s32.totalorder %s69, %s85
    %p87 = scmp.eq.s32.totalorder %s14, 0
    %p88 = por %p86, %p87
    %p89 = scmp.le.s32.totalorder 1, %s8
    %p90 = scmp.lt.s32.totalorder %s8, 3
    %p91 = pnand %p89, %p90
    %p92 = pneg %p91
    // Predicated region
    $region9: #{gat_forward.4} parent=5 // pred_check
      _
    $region10: #{gat_forward.4} parent=5 // pred_check_branch
      %94 = sbr.rel (%p91) target = $region12
    $region11: #{gat_forward.4} parent=5 // pred_region
      %s95 = ssub.s32 %s8, 1
      // Predicated region
      $region13: #{gat_forward.4} parent=11 // pred_check
        %p96 = pneg %p55
      $region14: #{gat_forward.4} parent=11 // pred_check_branch
        %98 = sbr.rel (%p96) target = $region16
      $region15: #{gat_forward.4} parent=11 // pred_region
        _
      $region16: #{gat_forward.4} parent=11 // pred_fallthru
        _
    $region12: #{gat_forward.4} parent=5 // pred_fallthru
      _
    %p99 = scmp.lt.s32.totalorder %s8, 2
    // Predicated region
    $region17: #{gat_forward.4} parent=5 // pred_check
      %p100 = pneg %p99
    $region18: #{gat_forward.4} parent=5 // pred_check_branch
      %102 = sbr.rel (%p100) target = $region20
    $region19: #{gat_forward.4} parent=5 // pred_region
      // Predicated region
      $region21: #{gat_forward.4} parent=19 // pred_check
        %p103 = pneg %p28
      $region22: #{gat_forward.4} parent=19 // pred_check_branch
        %105 = sbr.rel (%p103) target = $region24
      $region23: #{gat_forward.4} parent=19 // pred_region
        %s106 = smul.u32 4, %s8
        %p107 = scmp.lt.s32.totalorder %s106, 7
        %s108 = scalar_select %p107, %s106, 7
        %s109 = smul.addr %s108, 8
        %s110 = scalar_lea.vmem %s0, %s109
        %s111 = smul.u32 4, %s8
      $region24: #{gat_forward.4} parent=19 // pred_fallthru
        _
    $region20: #{gat_forward.4} parent=5 // pred_fallthru
      _
    %p112 = scmp.le.s32.totalorder 1, %s8
    %p113 = scmp.lt.s32.totalorder %s8, 3
    %p114 = pnand %p112, %p113
    %p115 = pneg %p114
    // Predicated region
    $region25: #{gat_forward.4} parent=5 // pred_check
      _
    $region26: #{gat_forward.4} parent=5 // pred_check_branch
      %117 = sbr.rel (%p114) target = $region28
    $region27: #{gat_forward.4} parent=5 // pred_region
      %s118 = ssub.s32 %s8, 1
      %s119 = smul.u32 4, %s13
      %p120 = scmp.lt.s32.totalorder %s119, 7
      %s121 = scalar_select %p120, %s119, 7
      %s122 = smul.addr %s121, 8
      %s123 = scalar_lea.vmem %s0, %s122
      %p124 = pneg %p34
      %p125 = pneg %p31
      %p126 = pneg %p55
      %p127 = pneg %p52
      %p128 = pneg %p81
      %p129 = pneg %p78
      %s130 = smul.u32 4, %s13
      %p131 = scmp.lt.s32.totalorder %s130, 7
      %s132 = scalar_select %p131, %s130, 7
      %s133 = smul.addr %s132, 8
      %s134 = scalar_lea.vmem %s2, %s133
      %s135 = smul.u32 4, %s13
      %p136 = scmp.lt.s32.totalorder %s135, 7
      %s137 = scalar_select %p136, %s135, 7
      %s138 = smul.addr %s137, 8
      %s139 = scalar_lea.vmem %s0, %s138
      %s140 = smul.u32 4, %s13
      %s141 = smul.u32 4, %s13
      %p142 = scmp.lt.s32.totalorder %s141, 7
      %s143 = scalar_select %p142, %s141, 7
      %s144 = smul.addr %s143, 8
      %s145 = scalar_lea.vmem %s2, %s144
      %s146 = smul.u32 4, %s13
      %v147 = vld [vmem:[%s139] sm:$0xff]
      %v148 = vld [vmem:[%s139 + $0x8] sm:$0xff]
      %v149 = vld [vmem:[%s139 + $0x10] sm:$0xff]
      %v150 = vld [vmem:[%s139 + $0x18] sm:$0xff]
      %v151 = vld [vmem:[%s1] sm:$0xff]
      %v152 = vld [vmem:[%s1 + $0x8] sm:$0xff]
      %vm153 = vcmask 130048
      %v155 = vsel %vm153, %v147, 0
      %v158 = vsel %vm153, %v148, 0
      %v161 = vsel %vm153, %v149, 0
      %v164 = vsel %vm153, %v150, 0
      %166 = vmatprep.subr.mxu0 0.0
      %167 = vmatpush1.msra.mxu0 %v151
      %168 = vmatprep.subr.mxu0 0.0
      %169 = vmatpush1.msra.mxu0 %v152
      %170 = vmatprep.subr.mxu0 0.0
      %171 = vmatpush1.msra.mxu0 0.0
      %172 = vmatprep.subr.mxu0 0.0
      %173 = vmatpush1.msra.mxu0 0.0
      %174 = vmatprep.subr.mxu0 0.0
      %175 = vmatpush1.msra.mxu0 0.0
      %176 = vmatprep.subr.mxu0 0.0
      %177 = vmatpush1.msra.mxu0 0.0
      %178 = vmatprep.subr.mxu0 0.0
      %179 = vmatpush1.msra.mxu0 0.0
      %180 = vmatprep.subr.mxu0 0.0
      %181 = vmatpush1.msra.mxu0 0.0
      %182 = vmatprep.subr.mxu0 0.0
      %183 = vmatpush1.msra.mxu0 0.0
      %184 = vmatprep.subr.mxu0 0.0
      %185 = vmatpush1.msra.mxu0 0.0
      %186 = vmatprep.subr.mxu0 0.0
      %187 = vmatpush1.msra.mxu0 0.0
      %188 = vmatprep.subr.mxu0 0.0
      %189 = vmatpush1.msra.mxu0 0.0
      %190 = vmatprep.subr.mxu0 0.0
      %191 = vmatpush1.msra.mxu0 0.0
      %192 = vmatprep.subr.mxu0 0.0
      %193 = vmatpush1.msra.mxu0 0.0
      %194 = vmatprep.subr.mxu0 0.0
      %195 = vmatpush1.msra.mxu0 0.0
      %196 = vmatprep.subr.mxu0 0.0
      %197 = vmatpush1.msra.mxu0 0.0
      %198 = vmatprep.subr.mxu0 0.0
      %199 = vmatpush1.msra.mxu0 0.0
      %200 = vmatprep.subr.mxu0 0.0
      %201 = vmatpush1.msra.mxu0 0.0
      %202 = vmatprep.subr.mxu0 0.0
      %203 = vmatpush1.msra.mxu0 0.0
      %204 = vmatprep.subr.mxu0 0.0
      %205 = vmatpush1.msra.mxu0 0.0
      %206 = vmatprep.subr.mxu0 0.0
      %207 = vmatpush1.msra.mxu0 0.0
      %208 = vmatprep.subr.mxu0 0.0
      %209 = vmatpush1.msra.mxu0 0.0
      %210 = vmatprep.subr.mxu0 0.0
      %211 = vmatpush1.msra.mxu0 0.0
      %212 = vmatprep.subr.mxu0 0.0
      %213 = vmatpush1.msra.mxu0 0.0
      %214 = vmatprep.subr.mxu0 0.0
      %215 = vmatpush1.msra.mxu0 0.0
      %216 = vmatprep.subr.mxu0 0.0
      %217 = vmatpush1.msra.mxu0 0.0
      %218 = vmatprep.subr.mxu0 0.0
      %219 = vmatpush1.msra.mxu0 0.0
      %220 = vmatprep.subr.mxu0 0.0
      %221 = vmatpush1.msra.mxu0 0.0
      %222 = vmatprep.subr.mxu0 0.0
      %223 = vmatpush1.msra.mxu0 0.0
      %224 = vmatprep.subr.mxu0 0.0
      %225 = vmatpush1.msra.mxu0 0.0
      %226 = vmatprep.subr.mxu0 0.0
      %227 = vmatpush1.msra.mxu0 0.0
      %228 = vmatprep.subr.mxu0 0.0
      %229 = vmatpush1.msra.mxu0 0.0
      %230 = vmatprep.mubr.f32.mxu0 0.0
      %231 = vmatmul.mubr.f32.gmra.mrb[0].mxu0 %v155
      %v232 = vpop.f32.mrb[0].mxu0
      %v233 = vadd.f32 0.0, %v232
      %v234 = vpop.f32.mrb[0].mxu0
      %235 = vmatprep.mubr.f32.mxu0 0.0
      %236 = vmatmul.mubr.f32.gmra.mrb[0].mxu0 %v158
      %v237 = vpop.f32.mrb[0].mxu0
      %v238 = vadd.f32 0.0, %v237
      %v239 = vpop.f32.mrb[0].mxu0
      %240 = vmatprep.mubr.f32.mxu0 0.0
      %241 = vmatmul.mubr.f32.gmra.mrb[0].mxu0 %v161
      %v242 = vpop.f32.mrb[0].mxu0
      %v243 = vadd.f32 0.0, %v242
      %v244 = vpop.f32.mrb[0].mxu0
      %245 = vmatprep.mubr.f32.mxu0 0.0
      %246 = vmatmul.mubr.f32.gmra.mrb[0].mxu0 %v164
      %v247 = vpop.f32.mrb[0].mxu0
      %v248 = vadd.f32 0.0, %v247
      %v249 = vpop.f32.mrb[0].mxu0
      %250 = vdwg.mxu0
      %vm251 = vcmask 588800
      %252 = vst.msk [vmem:[%s145] sm:$0xff] %vm251, %v233
      %253 = vst.msk [vmem:[%s145 + $0x8] sm:$0xff] %vm251, %v238
      %254 = vst.msk [vmem:[%s145 + $0x10] sm:$0xff] %vm251, %v243
      %255 = vst.msk [vmem:[%s145 + $0x18] sm:$0xff] %vm251, %v248
      %s256 = smul.u32 4, %s13
      %p257 = scmp.lt.s32.totalorder %s256, 7
      %s258 = scalar_select %p257, %s256, 7
      %s259 = smul.addr %s258, 8
      %s260 = scalar_lea.vmem %s2, %s259
      // Predicated region
      $region29: #{gat_forward.4} parent=27 // pred_check
        %p261 = pneg %p78
      $region30: #{gat_forward.4} parent=27 // pred_check_branch
        %263 = sbr.rel (%p261) target = $region32
      $region31: #{gat_forward.4} parent=27 // pred_region
        %s264 = smul.u32 4, %s13
      $region32: #{gat_forward.4} parent=27 // pred_fallthru
        _
    $region28: #{gat_forward.4} parent=5 // pred_fallthru
      _
    %p265 = scmp.le.s32.totalorder 2, %s8
    // Predicated region
    $region33: #{gat_forward.4} parent=5 // pred_check
      %p266 = pneg %p265
    $region34: #{gat_forward.4} parent=5 // pred_check_branch
      %268 = sbr.rel (%p266) target = $region36
    $region35: #{gat_forward.4} parent=5 // pred_region
      %s269 = ssub.s32 %s8, 2
      // Predicated region
      $region37: #{gat_forward.4} parent=35 // pred_check
        %p270 = pneg %p84
      $region38: #{gat_forward.4} parent=35 // pred_check_branch
        %272 = sbr.rel (%p270) target = $region40
      $region39: #{gat_forward.4} parent=35 // pred_region
        %s273 = smul.u32 4, %s14
        %p274 = scmp.lt.s32.totalorder %s273, 7
        %s275 = scalar_select %p274, %s273, 7
        %s276 = smul.addr %s275, 8
        %s277 = scalar_lea.vmem %s2, %s276
      $region40: #{gat_forward.4} parent=35 // pred_fallthru
        _
    $region36: #{gat_forward.4} parent=5 // pred_fallthru
      _
  $region6: #{gat_forward.4} parent=0 // loop_footer
    %s12 = sadd.s32 1, %s8
  $region7: #{gat_forward.4} parent=0 // loop_footer_branch
    %7 = sbr.rel target = $region3
  $region8: #{gat_forward.4} parent=0 // loop_exit
    _

// kernel: gat_forward.7
$region0: #{gat_forward.7}
  #allocation0 [shape = 'u32[]', space=smem, size = 0x4, offset = 0x4, fixed_abs, tag = 'smem constant byte address 0x4 - core index']
  #allocation1 [shape = 'u32[144,128]{1,0:T(1,128)}', space=vmem, size = 0x12000, scoped, tag = 'internal scratch']
  #allocation2 [shape = 'f32[32,32]{1,0:T(8,128)}', space=vmem, size = 0x4000, scoped, tag = 'scratch operand']
  %s0 = inlined_call_operand.vmem [shape: f32[64,72], index: 0, kind: input, shape index: {}]
  %s1 = inlined_call_operand.vmem [shape: f32[4,64], index: 1, kind: input, shape index: {}]
  %s2 = inlined_call_operand.vmem [shape: s8[64,64], index: 2, kind: input, shape index: {}]
  %s3 = inlined_call_operand.vmem [shape: f32[1,32], index: 3, kind: input, shape index: {}]
  %s4 = inlined_call_operand.vmem [shape: f32[64,8], index: 4, kind: output, shape index: {}]
  %s5 = sld [smem:[#allocation0]]
  $region49: #{gat_forward.7} parent=0
    _
  %s7 = ssub.s32 1, %s5
  %s8 = scalar_select 0, %s7, %s5
  loop: start=0, step=1, limit=4
  $region2: #{gat_forward.7} parent=0 // loop_pre_header
    _
  $region3: #{gat_forward.7} parent=0 // loop_header
    %s10 = sphi 0, %s14
    %p11 = scmp.ge.s32.totalorder %s10, 4
    %s18 = sphi 0, %s18
    %s20 = sphi 0, %s18
    %s21 = sphi 0, %s20
    %s35 = sphi 0, %s21
    %s39 = sphi 0, %s39
    %s41 = sphi 0, %s39
    %s42 = sphi 0, %s41
    %s56 = sphi 0, %s42
    %s62 = sphi 0, %s64
    %s65 = sphi 0, %s62
    %s66 = sphi 0, %s65
    %s82 = sphi 0, %s66
    %s86 = sphi 0, %s86
    %s88 = sphi 0, %s86
    %s89 = sphi 0, %s88
    %s103 = sphi 0, %s89
    %s109 = sphi 0, %s111
    %s112 = sphi 0, %s109
    %s113 = sphi 0, %s112
    %s129 = sphi 0, %s113
  $region4: #{gat_forward.7} parent=0 // loop_header_branch
    %13 = sbr.rel (%p11) target = $region8
  $region5: #{gat_forward.7} parent=0 // loop_body
    %s15 = ssub.s32 %s10, 1
    %s16 = ssub.s32 %s10, 2
    %s17 = sadd.s32 %s10, 1
    %s19 = sadd.s32 %s18, 1
    %p22 = scmp.eq.s32.totalorder %s10, 1
    %p23 = scmp.ne.s32.totalorder %s18, %s20
    %p24 = scmp.eq.s32.totalorder %s10, 0
    %p25 = por %p23, %p24
    %p26 = scmp.ne.s32.totalorder %s18, %s20
    %p27 = scmp.eq.s32.totalorder %s15, 1
    %p28 = por %p26, %p27
    %p29 = scmp.ne.s32.totalorder %s20, %s21
    %p30 = scmp.eq.s32.totalorder %s15, 0
    %p31 = por %p29, %p30
    %p32 = scmp.ne.s32.totalorder %s20, %s21
    %p33 = scmp.eq.s32.totalorder %s16, 1
    %p34 = por %p32, %p33
    %p36 = scmp.ne.s32.totalorder %s21, %s35
    %p37 = scmp.eq.s32.totalorder %s16, 0
    %p38 = por %p36, %p37
    %s40 = sadd.s32 %s39, 1
    %p43 = scmp.eq.s32.totalorder %s10, 1
    %p44 = scmp.ne.s32.totalorder %s39, %s41
    %p45 = scmp.eq.s32.totalorder %s10, 0
    %p46 = por %p44, %p45
    %p47 = scmp.ne.s32.totalorder %s39, %s41
    %p48 = scmp.eq.s32.totalorder %s15, 1
    %p49 = por %p47, %p48
    %p50 = scmp.ne.s32.totalorder %s41, %s42
    %p51 = scmp.eq.s32.totalorder %s15, 0
    %p52 = por %p50, %p51
    %p53 = scmp.ne.s32.totalorder %s41, %s42
    %p54 = scmp.eq.s32.totalorder %s16, 1
    %p55 = por %p53, %p54
    %p57 = scmp.ne.s32.totalorder %s42, %s56
    %p58 = scmp.eq.s32.totalorder %s16, 0
    %p59 = por %p57, %p58
    %s60 = ssub.s32 %s10, %s17
    %p61 = scmp.eq.s32.totalorder %s60, 0
    %s63 = sadd.s32 %s62, 1
    %s64 = scalar_select %p61, %s62, %s63
    %p67 = pneg %p61
    %p68 = scmp.eq.s32.totalorder %s10, 1
    %p69 = por %p67, %p68
    %p70 = scmp.ne.s32.totalorder %s62, %s65
    %p71 = scmp.eq.s32.totalorder %s10, 0
    %p72 = por %p70, %p71
    %p73 = scmp.ne.s32.totalorder %s62, %s65
    %p74 = scmp.eq.s32.totalorder %s15, 1
    %p75 = por %p73, %p74
    %p76 = scmp.ne.s32.totalorder %s65, %s66
    %p77 = scmp.eq.s32.totalorder %s15, 0
    %p78 = por %p76, %p77
    %p79 = scmp.ne.s32.totalorder %s65, %s66
    %p80 = scmp.eq.s32.totalorder %s16, 1
    %p81 = por %p79, %p80
    %p83 = scmp.ne.s32.totalorder %s66, %s82
    %p84 = scmp.eq.s32.totalorder %s16, 0
    %p85 = por %p83, %p84
    %s87 = sadd.s32 %s86, 1
    %p90 = scmp.eq.s32.totalorder %s10, 1
    %p91 = scmp.ne.s32.totalorder %s86, %s88
    %p92 = scmp.eq.s32.totalorder %s10, 0
    %p93 = por %p91, %p92
    %p94 = scmp.ne.s32.totalorder %s86, %s88
    %p95 = scmp.eq.s32.totalorder %s15, 1
    %p96 = por %p94, %p95
    %p97 = scmp.ne.s32.totalorder %s88, %s89
    %p98 = scmp.eq.s32.totalorder %s15, 0
    %p99 = por %p97, %p98
    %p100 = scmp.ne.s32.totalorder %s88, %s89
    %p101 = scmp.eq.s32.totalorder %s16, 1
    %p102 = por %p100, %p101
    %p104 = scmp.ne.s32.totalorder %s89, %s103
    %p105 = scmp.eq.s32.totalorder %s16, 0
    %p106 = por %p104, %p105
    %s107 = ssub.s32 %s10, %s17
    %p108 = scmp.eq.s32.totalorder %s107, 0
    %s110 = sadd.s32 %s109, 1
    %s111 = scalar_select %p108, %s109, %s110
    %p114 = pneg %p108
    %p115 = scmp.eq.s32.totalorder %s10, 1
    %p116 = por %p114, %p115
    %p117 = scmp.ne.s32.totalorder %s109, %s112
    %p118 = scmp.eq.s32.totalorder %s10, 0
    %p119 = por %p117, %p118
    %p120 = scmp.ne.s32.totalorder %s109, %s112
    %p121 = scmp.eq.s32.totalorder %s15, 1
    %p122 = por %p120, %p121
    %p123 = scmp.ne.s32.totalorder %s112, %s113
    %p124 = scmp.eq.s32.totalorder %s15, 0
    %p125 = por %p123, %p124
    %p126 = scmp.ne.s32.totalorder %s112, %s113
    %p127 = scmp.eq.s32.totalorder %s16, 1
    %p128 = por %p126, %p127
    %p130 = scmp.ne.s32.totalorder %s113, %s129
    %p131 = scmp.eq.s32.totalorder %s16, 0
    %p132 = por %p130, %p131
    %p133 = scmp.le.s32.totalorder 1, %s10
    %p134 = scmp.lt.s32.totalorder %s10, 3
    %p135 = pnand %p133, %p134
    %p136 = pneg %p135
    // Predicated region
    $region9: #{gat_forward.7} parent=5 // pred_check
      _
    $region10: #{gat_forward.7} parent=5 // pred_check_branch
      %138 = sbr.rel (%p135) target = $region12
    $region11: #{gat_forward.7} parent=5 // pred_region
      %s139 = ssub.s32 %s10, 1
      // Predicated region
      $region13: #{gat_forward.7} parent=11 // pred_check
        %p140 = pneg %p31
      $region14: #{gat_forward.7} parent=11 // pred_check_branch
        %142 = sbr.rel (%p140) target = $region16
      $region15: #{gat_forward.7} parent=11 // pred_region
        _
      $region16: #{gat_forward.7} parent=11 // pred_fallthru
        _
      // Predicated region
      $region17: #{gat_forward.7} parent=11 // pred_check
        %p143 = pneg %p52
      $region18: #{gat_forward.7} parent=11 // pred_check_branch
        %145 = sbr.rel (%p143) target = $region20
      $region19: #{gat_forward.7} parent=11 // pred_region
        _
      $region20: #{gat_forward.7} parent=11 // pred_fallthru
        _
      // Predicated region
      $region21: #{gat_forward.7} parent=11 // pred_check
        %p146 = pneg %p99
      $region22: #{gat_forward.7} parent=11 // pred_check_branch
        %148 = sbr.rel (%p146) target = $region24
      $region23: #{gat_forward.7} parent=11 // pred_region
        _
      $region24: #{gat_forward.7} parent=11 // pred_fallthru
        _
    $region12: #{gat_forward.7} parent=5 // pred_fallthru
      _
    %p149 = scmp.lt.s32.totalorder %s10, 2
    // Predicated region
    $region25: #{gat_forward.7} parent=5 // pred_check
      %p150 = pneg %p149
    $region26: #{gat_forward.7} parent=5 // pred_check_branch
      %152 = sbr.rel (%p150) target = $region28
    $region27: #{gat_forward.7} parent=5 // pred_region
      // Predicated region
      $region29: #{gat_forward.7} parent=27 // pred_check
        %p153 = pneg %p72
      $region30: #{gat_forward.7} parent=27 // pred_check_branch
        %155 = sbr.rel (%p153) target = $region32
      $region31: #{gat_forward.7} parent=27 // pred_region
        %p156 = scmp.lt.s32.totalorder %s10, 1
        %s157 = scalar_select %p156, %s10, 1
        %s158 = smul.addr %s157, 8
        %s159 = scalar_lea.vmem %s2, %s158
      $region32: #{gat_forward.7} parent=27 // pred_fallthru
        _
    $region28: #{gat_forward.7} parent=5 // pred_fallthru
      _
    %p160 = scmp.le.s32.totalorder 1, %s10
    %p161 = scmp.lt.s32.totalorder %s10, 3
    %p162 = pnand %p160, %p161
    %p163 = pneg %p162
    // Predicated region
    $region33: #{gat_forward.7} parent=5 // pred_check
      _
    $region34: #{gat_forward.7} parent=5 // pred_check_branch
      %165 = sbr.rel (%p162) target = $region36
    $region35: #{gat_forward.7} parent=5 // pred_region
      %s166 = ssub.s32 %s10, 1
      %p167 = pneg %p31
      %p168 = pneg %p28
      %p169 = pneg %p52
      %p170 = pneg %p49
      %p171 = scmp.lt.s32.totalorder %s15, 1
      %s172 = scalar_select %p171, %s15, 1
      %s173 = smul.addr %s172, 8
      %s174 = scalar_lea.vmem %s2, %s173
      %p175 = pneg %p78
      %p176 = pneg %p75
      %p177 = pneg %p99
      %p178 = pneg %p96
      %p179 = pneg %p125
      %p180 = pneg %p122
      %s181 = smul.u32 4, %s15
      %p182 = scmp.lt.s32.totalorder %s181, 7
      %s183 = scalar_select %p182, %s181, 7
      %s184 = smul.addr %s183, 8
      %s185 = scalar_lea.vmem %s4, %s184
      %p186 = scmp.lt.s32.totalorder %s15, 1
      %s187 = scalar_select %p186, %s15, 1
      %s188 = smul.addr %s187, 8
      %s189 = scalar_lea.vmem %s2, %s188
      %s190 = smul.u32 4, %s15
      %p191 = scmp.lt.s32.totalorder %s190, 7
      %s192 = scalar_select %p191, %s190, 7
      %s193 = smul.addr %s192, 8
      %s194 = scalar_lea.vmem %s4, %s193
      %s195 = smul.u32 4, %s15
      %s197 = smul.u32 %s15, 32
      %s198 = scalar_lea.vmem %s0, %s197
      %v199 = vld [vmem:[%s198] sm:$0xff]
      %v200 = vld [vmem:[%s198 + $0x8] sm:$0xff]
      %v201 = vld [vmem:[%s198 + $0x10] sm:$0xff]
      %v202 = vld [vmem:[%s198 + $0x18] sm:$0xff]
      %v203 = vld [vmem:[%s0] sm:$0xff]
      %v204 = vld [vmem:[%s0 + $0x8] sm:$0xff]
      %v205 = vld [vmem:[%s0 + $0x10] sm:$0xff]
      %v206 = vld [vmem:[%s0 + $0x18] sm:$0xff]
      %v207 = vld [vmem:[%s0 + $0x20] sm:$0xff]
      %v208 = vld [vmem:[%s0 + $0x28] sm:$0xff]
      %v209 = vld [vmem:[%s0 + $0x30] sm:$0xff]
      %v210 = vld [vmem:[%s0 + $0x38] sm:$0xff]
      %v211 = vld [vmem:[%s1] sm:$0xf]
      %v212 = vld [vmem:[%s3] sm:$0x1]
      %v213 = vld [vmem:[%s189] sm:$0xff]
      %v214 = vunpack.c.0.s8 %v213
      %v215 = vunpack.c.1.s8 %v213
      %v216 = vunpack.c.2.s8 %v213
      %v217 = vunpack.c.3.s8 %v213
      %v218 = vcvt.s32.f32 %v214
      %v219 = vcvt.s32.f32 %v215
      %v220 = vcvt.s32.f32 %v216
      %v221 = vcvt.s32.f32 %v217
      %vm222 = vcmp.gt.f32.partialorder %v218, 0.0
      %vm223 = vcmp.gt.f32.partialorder %v219, 0.0
      %vm224 = vcmp.gt.f32.partialorder %v220, 0.0
      %vm225 = vcmp.gt.f32.partialorder %v221, 0.0
      %v226 = vsel %vm222, 0.0, -1e+30
      %v227 = vsel %vm223, 0.0, -1e+30
      %v228 = vsel %vm224, 0.0, -1e+30
      %v229 = vsel %vm225, 0.0, -1e+30
      %v230 = vlaneseq
      %v231 = vshrl.u32 %v230, 7
      %v232 = vsub.s32 0, %v231
      %v233 = vrot.slane %v211, %v232
      %235 = vset.pattern.permute.xlu0 64
      %236 = vperm.xlu0 %235, %v199
      %v237 = vpop.permute.xlu0 %236
      %240 = vset.pattern.permute.xlu0 64
      %241 = vperm.xlu0 %240, %v200
      %v242 = vpop.permute.xlu0 %241
      %245 = vset.pattern.permute.xlu0 64
      %246 = vperm.xlu0 %245, %v201
      %v247 = vpop.permute.xlu0 %246
      %250 = vset.pattern.permute.xlu0 64
      %251 = vperm.xlu0 %250, %v202
      %v252 = vpop.permute.xlu0 %251
      %v254 = vadd.f32 %v233, %v237
      %v255 = vadd.f32 %v233, %v242
      %v256 = vadd.f32 %v233, %v247
      %v257 = vadd.f32 %v233, %v252
      %vm258 = vcmp.gt.f32.partialorder %v254, 0.0
      %vm259 = vcmp.gt.f32.partialorder %v255, 0.0
      %vm260 = vcmp.gt.f32.partialorder %v256, 0.0
      %vm261 = vcmp.gt.f32.partialorder %v257, 0.0
      %v262 = vmul.f32 %v254, 0.2
      %v263 = vmul.f32 %v255, 0.2
      %v264 = vmul.f32 %v256, 0.2
      %v265 = vmul.f32 %v257, 0.2
      %v266 = vsel %vm258, %v254, %v262
      %v267 = vsel %vm259, %v255, %v263
      %v268 = vsel %vm260, %v256, %v264
      %v269 = vsel %vm261, %v257, %v265
      %v270 = vadd.f32 %v266, %v226
      %v271 = vadd.f32 %v267, %v227
      %v272 = vadd.f32 %v268, %v228
      %v273 = vadd.f32 %v269, %v229
      %vm274 = vcmask 523264
      %v275 = vsel %vm274, %v270, -inf
      %276 = vmax.xlane.f32.xlu0 %v275
      %v277 = vpop.xlane.xlu0 %276
      %v278 = vsel %vm274, %v271, -inf
      %279 = vmax.xlane.f32.xlu0 %v278
      %v280 = vpop.xlane.xlu0 %279
      %v281 = vsel %vm274, %v272, -inf
      %282 = vmax.xlane.f32.xlu0 %v281
      %v283 = vpop.xlane.xlu0 %282
      %v284 = vsel %vm274, %v273, -inf
      %285 = vmax.xlane.f32.xlu0 %v284
      %v286 = vpop.xlane.xlu0 %285
      %v287 = vsub.f32 %v270, %v277
      %v288 = vsub.f32 %v271, %v280
      %v289 = vsub.f32 %v272, %v283
      %v290 = vsub.f32 %v273, %v286
      %v291 = vmul.f32 %v287, 1.442695
      %v292 = vpow.pop %v291
      %v293 = vmul.f32 %v288, 1.442695
      %v294 = vpow.pop %v293
      %v295 = vmul.f32 %v289, 1.442695
      %v296 = vpow.pop %v295
      %v297 = vmul.f32 %v290, 1.442695
      %v298 = vpow.pop %v297
      %v299 = vsel %vm274, %v292, 0.0
      %300 = vadd.xlane.f32.xlu0 %v299
      %v301 = vpop.xlane.xlu0 %300
      %v302 = vsel %vm274, %v294, 0.0
      %303 = vadd.xlane.f32.xlu0 %v302
      %v304 = vpop.xlane.xlu0 %303
      %v305 = vsel %vm274, %v296, 0.0
      %306 = vadd.xlane.f32.xlu0 %v305
      %v307 = vpop.xlane.xlu0 %306
      %v308 = vsel %vm274, %v298, 0.0
      %309 = vadd.xlane.f32.xlu0 %v308
      %v310 = vpop.xlane.xlu0 %309
      %v311 = vrcp.pop %v301
      %v312 = vrcp.pop %v304
      %v313 = vrcp.pop %v307
      %v314 = vrcp.pop %v310
      %v315 = vmul.f32 %v292, %v311
      %v316 = vmul.f32 %v294, %v312
      %v317 = vmul.f32 %v296, %v313
      %v318 = vmul.f32 %v298, %v314
      %v319 = vpack.c.bf16 %v316, %v315
      %v320 = vpack.c.bf16 %v318, %v317
      %v321 = vpack.c.bf16 %v204, %v203
      %v322 = vpack.c.bf16 %v206, %v205
      %v323 = vpack.c.bf16 %v208, %v207
      %v324 = vpack.c.bf16 %v210, %v209
      %325 = vrot.lane.b32.xlu0 %v199, 96
      %v326 = vpop.permute.xlu0 %325
      %327 = vrot.lane.b32.xlu0 %v200, 96
      %v328 = vpop.permute.xlu0 %327
      %329 = vrot.lane.b32.xlu0 %v201, 96
      %v330 = vpop.permute.xlu0 %329
      %331 = vrot.lane.b32.xlu0 %v202, 96
      %v332 = vpop.permute.xlu0 %331
      %v338 = vsel %vm274, %v319, 0
      %v341 = vsel %vm274, %v320, 0
      %343 = vmatprep.subr.bf16.mxu0 0
      %344 = vmatpush1.bf16.msra.mxu0 %v321
      %345 = vmatprep.subr.bf16.mxu0 0
      %346 = vmatpush1.bf16.msra.mxu0 %v322
      %347 = vmatprep.subr.bf16.mxu0 0
      %348 = vmatpush1.bf16.msra.mxu0 %v323
      %349 = vmatprep.subr.bf16.mxu0 0
      %350 = vmatpush1.bf16.msra.mxu0 %v324
      %351 = vmatprep.subr.bf16.mxu0 0
      %352 = vmatpush1.bf16.msra.mxu0 0
      %353 = vmatprep.subr.bf16.mxu0 0
      %354 = vmatpush1.bf16.msra.mxu0 0
      %355 = vmatprep.subr.bf16.mxu0 0
      %356 = vmatpush1.bf16.msra.mxu0 0
      %357 = vmatprep.subr.bf16.mxu0 0
      %358 = vmatpush1.bf16.msra.mxu0 0
      %359 = vmatprep.subr.bf16.mxu0 0
      %360 = vmatpush1.bf16.msra.mxu0 0
      %361 = vmatprep.subr.bf16.mxu0 0
      %362 = vmatpush1.bf16.msra.mxu0 0
      %363 = vmatprep.subr.bf16.mxu0 0
      %364 = vmatpush1.bf16.msra.mxu0 0
      %365 = vmatprep.subr.bf16.mxu0 0
      %366 = vmatpush1.bf16.msra.mxu0 0
      %367 = vmatprep.subr.bf16.mxu0 0
      %368 = vmatpush1.bf16.msra.mxu0 0
      %369 = vmatprep.subr.bf16.mxu0 0
      %370 = vmatpush1.bf16.msra.mxu0 0
      %371 = vmatprep.subr.bf16.mxu0 0
      %372 = vmatpush1.bf16.msra.mxu0 0
      %373 = vmatprep.subr.bf16.mxu0 0
      %374 = vmatpush1.bf16.msra.mxu0 0
      %375 = vmatprep.mubr.bf16.mxu0 0
      %376 = vmatmul.mubr.bf16.gmra.mrb[0].mxu0 %v338
      %v377 = vpop.f32.mrb[0].mxu0
      %v378 = vadd.f32 %v326, %v377
      %v379 = vpop.f32.mrb[0].mxu0
      %v380 = vpop.f32.mrb[0].mxu0
      %v381 = vadd.f32 %v328, %v380
      %v382 = vpop.f32.mrb[0].mxu0
      %383 = vmatprep.mubr.bf16.mxu0 0
      %384 = vmatmul.mubr.bf16.gmra.mrb[0].mxu0 %v341
      %v385 = vpop.f32.mrb[0].mxu0
      %v386 = vadd.f32 %v330, %v385
      %v387 = vpop.f32.mrb[0].mxu0
      %v388 = vpop.f32.mrb[0].mxu0
      %v389 = vadd.f32 %v332, %v388
      %v390 = vpop.f32.mrb[0].mxu0
      %391 = vdwg.mxu0
      %v393 = vlaneseq
      %v394 = vshrl.u32 %v393, 7
      %v395 = vsub.s32 0, %v394
      %v396 = vrot.slane %v212, %v395
      %v398 = vadd.f32 %v378, %v396
      %v399 = vadd.f32 %v381, %v396
      %v400 = vadd.f32 %v386, %v396
      %v401 = vadd.f32 %v389, %v396
      %v402 = vadd.f32 %v398, 0.0
      %v403 = vadd.f32 %v399, 0.0
      %v404 = vadd.f32 %v400, 0.0
      %v405 = vadd.f32 %v401, 0.0
      %v406 = vlaneseq
      %v407 = vshrl.u32 %v406, 7
      %v408 = vsub.s32 1, %v407
      %v409 = vrot.slane %v211, %v408
      %410 = vset.pattern.permute.xlu0 65
      %411 = vperm.xlu0 %410, %v199
      %v412 = vpop.permute.xlu0 %411
      %414 = vset.pattern.permute.xlu0 65
      %415 = vperm.xlu0 %414, %v200
      %v416 = vpop.permute.xlu0 %415
      %418 = vset.pattern.permute.xlu0 65
      %419 = vperm.xlu0 %418, %v201
      %v420 = vpop.permute.xlu0 %419
      %422 = vset.pattern.permute.xlu0 65
      %423 = vperm.xlu0 %422, %v202
      %v424 = vpop.permute.xlu0 %423
      %v426 = vadd.f32 %v409, %v412
      %v427 = vadd.f32 %v409, %v416
      %v428 = vadd.f32 %v409, %v420
      %v429 = vadd.f32 %v409, %v424
      %vm430 = vcmp.gt.f32.partialorder %v426, 0.0
      %vm431 = vcmp.gt.f32.partialorder %v427, 0.0
      %vm432 = vcmp.gt.f32.partialorder %v428, 0.0
      %vm433 = vcmp.gt.f32.partialorder %v429, 0.0
      %v434 = vmul.f32 %v426, 0.2
      %v435 = vmul.f32 %v427, 0.2
      %v436 = vmul.f32 %v428, 0.2
      %v437 = vmul.f32 %v429, 0.2
      %v438 = vsel %vm430, %v426, %v434
      %v439 = vsel %vm431, %v427, %v435
      %v440 = vsel %vm432, %v428, %v436
      %v441 = vsel %vm433, %v429, %v437
      %v442 = vadd.f32 %v438, %v226
      %v443 = vadd.f32 %v439, %v227
      %v444 = vadd.f32 %v440, %v228
      %v445 = vadd.f32 %v441, %v229
      %v446 = vsel %vm274, %v442, -inf
      %447 = vmax.xlane.f32.xlu0 %v446
      %v448 = vpop.xlane.xlu0 %447
      %v449 = vsel %vm274, %v443, -inf
      %450 = vmax.xlane.f32.xlu0 %v449
      %v451 = vpop.xlane.xlu0 %450
      %v452 = vsel %vm274, %v444, -inf
      %453 = vmax.xlane.f32.xlu0 %v452
      %v454 = vpop.xlane.xlu0 %453
      %v455 = vsel %vm274, %v445, -inf
      %456 = vmax.xlane.f32.xlu0 %v455
      %v457 = vpop.xlane.xlu0 %456
      %v458 = vsub.f32 %v442, %v448
      %v459 = vsub.f32 %v443, %v451
      %v460 = vsub.f32 %v444, %v454
      %v461 = vsub.f32 %v445, %v457
      %v462 = vmul.f32 %v458, 1.442695
      %v463 = vpow.pop %v462
      %v464 = vmul.f32 %v459, 1.442695
      %v465 = vpow.pop %v464
      %v466 = vmul.f32 %v460, 1.442695
      %v467 = vpow.pop %v466
      %v468 = vmul.f32 %v461, 1.442695
      %v469 = vpow.pop %v468
      %v470 = vsel %vm274, %v463, 0.0
      %471 = vadd.xlane.f32.xlu0 %v470
      %v472 = vpop.xlane.xlu0 %471
      %v473 = vsel %vm274, %v465, 0.0
      %474 = vadd.xlane.f32.xlu0 %v473
      %v475 = vpop.xlane.xlu0 %474
      %v476 = vsel %vm274, %v467, 0.0
      %477 = vadd.xlane.f32.xlu0 %v476
      %v478 = vpop.xlane.xlu0 %477
      %v479 = vsel %vm274, %v469, 0.0
      %480 = vadd.xlane.f32.xlu0 %v479
      %v481 = vpop.xlane.xlu0 %480
      %v482 = vrcp.pop %v472
      %v483 = vrcp.pop %v475
      %v484 = vrcp.pop %v478
      %v485 = vrcp.pop %v481
      %v486 = vmul.f32 %v463, %v482
      %v487 = vmul.f32 %v465, %v483
      %v488 = vmul.f32 %v467, %v484
      %v489 = vmul.f32 %v469, %v485
      %v490 = vpack.c.bf16 %v487, %v486
      %v491 = vpack.c.bf16 %v489, %v488
      %496 = vrot.lane.b32.xlu0 %v321, 120
      %v497 = vpop.permute.xlu0 %496
      %498 = vrot.lane.b32.xlu0 %v322, 120
      %v499 = vpop.permute.xlu0 %498
      %500 = vrot.lane.b32.xlu0 %v323, 120
      %v501 = vpop.permute.xlu0 %500
      %502 = vrot.lane.b32.xlu0 %v324, 120
      %v503 = vpop.permute.xlu0 %502
      %508 = vrot.lane.b32.xlu0 %v199, 88
      %v509 = vpop.permute.xlu0 %508
      %510 = vrot.lane.b32.xlu0 %v200, 88
      %v511 = vpop.permute.xlu0 %510
      %512 = vrot.lane.b32.xlu0 %v201, 88
      %v513 = vpop.permute.xlu0 %512
      %514 = vrot.lane.b32.xlu0 %v202, 88
      %v515 = vpop.permute.xlu0 %514
      %v521 = vsel %vm274, %v490, 0
      %v524 = vsel %vm274, %v491, 0
      %526 = vmatprep.subr.bf16.mxu0 0
      %527 = vmatpush1.bf16.msra.mxu0 %v497
      %528 = vmatprep.subr.bf16.mxu0 0
      %529 = vmatpush1.bf16.msra.mxu0 %v499
      %530 = vmatprep.subr.bf16.mxu0 0
      %531 = vmatpush1.bf16.msra.mxu0 %v501
      %532 = vmatprep.subr.bf16.mxu0 0
      %533 = vmatpush1.bf16.msra.mxu0 %v503
      %534 = vmatprep.subr.bf16.mxu0 0
      %535 = vmatpush1.bf16.msra.mxu0 0
      %536 = vmatprep.subr.bf16.mxu0 0
      %537 = vmatpush1.bf16.msra.mxu0 0
      %538 = vmatprep.subr.bf16.mxu0 0
      %539 = vmatpush1.bf16.msra.mxu0 0
      %540 = vmatprep.subr.bf16.mxu0 0
      %541 = vmatpush1.bf16.msra.mxu0 0
      %542 = vmatprep.subr.bf16.mxu0 0
      %543 = vmatpush1.bf16.msra.mxu0 0
      %544 = vmatprep.subr.bf16.mxu0 0
      %545 = vmatpush1.bf16.msra.mxu0 0
      %546 = vmatprep.subr.bf16.mxu0 0
      %547 = vmatpush1.bf16.msra.mxu0 0
      %548 = vmatprep.subr.bf16.mxu0 0
      %549 = vmatpush1.bf16.msra.mxu0 0
      %550 = vmatprep.subr.bf16.mxu0 0
      %551 = vmatpush1.bf16.msra.mxu0 0
      %552 = vmatprep.subr.bf16.mxu0 0
      %553 = vmatpush1.bf16.msra.mxu0 0
      %554 = vmatprep.subr.bf16.mxu0 0
      %555 = vmatpush1.bf16.msra.mxu0 0
      %556 = vmatprep.subr.bf16.mxu0 0
      %557 = vmatpush1.bf16.msra.mxu0 0
      %558 = vmatprep.mubr.bf16.mxu0 0
      %559 = vmatmul.mubr.bf16.gmra.mrb[0].mxu0 %v521
      %v560 = vpop.f32.mrb[0].mxu0
      %v561 = vadd.f32 %v509, %v560
      %v562 = vpop.f32.mrb[0].mxu0
      %v563 = vpop.f32.mrb[0].mxu0
      %v564 = vadd.f32 %v511, %v563
      %v565 = vpop.f32.mrb[0].mxu0
      %566 = vmatprep.mubr.bf16.mxu0 0
      %567 = vmatmul.mubr.bf16.gmra.mrb[0].mxu0 %v524
      %v568 = vpop.f32.mrb[0].mxu0
      %v569 = vadd.f32 %v513, %v568
      %v570 = vpop.f32.mrb[0].mxu0
      %v571 = vpop.f32.mrb[0].mxu0
      %v572 = vadd.f32 %v515, %v571
      %v573 = vpop.f32.mrb[0].mxu0
      %574 = vdwg.mxu0
      %575 = vrot.lane.b32.xlu0 %v396, 120
      %v576 = vpop.permute.xlu0 %575
      %v578 = vadd.f32 %v561, %v576
      %v579 = vadd.f32 %v564, %v576
      %v580 = vadd.f32 %v569, %v576
      %v581 = vadd.f32 %v572, %v576
      %v582 = vadd.f32 %v402, %v578
      %v583 = vadd.f32 %v403, %v579
      %v584 = vadd.f32 %v404, %v580
      %v585 = vadd.f32 %v405, %v581
      %v586 = vlaneseq
      %v587 = vshrl.u32 %v586, 7
      %v588 = vsub.s32 2, %v587
      %v589 = vrot.slane %v211, %v588
      %590 = vset.pattern.permute.xlu0 66
      %591 = vperm.xlu0 %590, %v199
      %v592 = vpop.permute.xlu0 %591
      %594 = vset.pattern.permute.xlu0 66
      %595 = vperm.xlu0 %594, %v200
      %v596 = vpop.permute.xlu0 %595
      %598 = vset.pattern.permute.xlu0 66
      %599 = vperm.xlu0 %598, %v201
      %v600 = vpop.permute.xlu0 %599
      %602 = vset.pattern.permute.xlu0 66
      %603 = vperm.xlu0 %602, %v202
      %v604 = vpop.permute.xlu0 %603
      %v606 = vadd.f32 %v589, %v592
      %v607 = vadd.f32 %v589, %v596
      %v608 = vadd.f32 %v589, %v600
      %v609 = vadd.f32 %v589, %v604
      %vm610 = vcmp.gt.f32.partialorder %v606, 0.0
      %vm611 = vcmp.gt.f32.partialorder %v607, 0.0
      %vm612 = vcmp.gt.f32.partialorder %v608, 0.0
      %vm613 = vcmp.gt.f32.partialorder %v609, 0.0
      %v614 = vmul.f32 %v606, 0.2
      %v615 = vmul.f32 %v607, 0.2
      %v616 = vmul.f32 %v608, 0.2
      %v617 = vmul.f32 %v609, 0.2
      %v618 = vsel %vm610, %v606, %v614
      %v619 = vsel %vm611, %v607, %v615
      %v620 = vsel %vm612, %v608, %v616
      %v621 = vsel %vm613, %v609, %v617
      %v622 = vadd.f32 %v618, %v226
      %v623 = vadd.f32 %v619, %v227
      %v624 = vadd.f32 %v620, %v228
      %v625 = vadd.f32 %v621, %v229
      %v626 = vsel %vm274, %v622, -inf
      %627 = vmax.xlane.f32.xlu0 %v626
      %v628 = vpop.xlane.xlu0 %627
      %v629 = vsel %vm274, %v623, -inf
      %630 = vmax.xlane.f32.xlu0 %v629
      %v631 = vpop.xlane.xlu0 %630
      %v632 = vsel %vm274, %v624, -inf
      %633 = vmax.xlane.f32.xlu0 %v632
      %v634 = vpop.xlane.xlu0 %633
      %v635 = vsel %vm274, %v625, -inf
      %636 = vmax.xlane.f32.xlu0 %v635
      %v637 = vpop.xlane.xlu0 %636
      %v638 = vsub.f32 %v622, %v628
      %v639 = vsub.f32 %v623, %v631
      %v640 = vsub.f32 %v624, %v634
      %v641 = vsub.f32 %v625, %v637
      %v642 = vmul.f32 %v638, 1.442695
      %v643 = vpow.pop %v642
      %v644 = vmul.f32 %v639, 1.442695
      %v645 = vpow.pop %v644
      %v646 = vmul.f32 %v640, 1.442695
      %v647 = vpow.pop %v646
      %v648 = vmul.f32 %v641, 1.442695
      %v649 = vpow.pop %v648
      %v650 = vsel %vm274, %v643, 0.0
      %651 = vadd.xlane.f32.xlu0 %v650
      %v652 = vpop.xlane.xlu0 %651
      %v653 = vsel %vm274, %v645, 0.0
      %654 = vadd.xlane.f32.xlu0 %v653
      %v655 = vpop.xlane.xlu0 %654
      %v656 = vsel %vm274, %v647, 0.0
      %657 = vadd.xlane.f32.xlu0 %v656
      %v658 = vpop.xlane.xlu0 %657
      %v659 = vsel %vm274, %v649, 0.0
      %660 = vadd.xlane.f32.xlu0 %v659
      %v661 = vpop.xlane.xlu0 %660
      %v662 = vrcp.pop %v652
      %v663 = vrcp.pop %v655
      %v664 = vrcp.pop %v658
      %v665 = vrcp.pop %v661
      %v666 = vmul.f32 %v643, %v662
      %v667 = vmul.f32 %v645, %v663
      %v668 = vmul.f32 %v647, %v664
      %v669 = vmul.f32 %v649, %v665
      %v670 = vpack.c.bf16 %v667, %v666
      %v671 = vpack.c.bf16 %v669, %v668
      %672 = vrot.lane.b32.xlu0 %v321, 112
      %v673 = vpop.permute.xlu0 %672
      %674 = vrot.lane.b32.xlu0 %v322, 112
      %v675 = vpop.permute.xlu0 %674
      %676 = vrot.lane.b32.xlu0 %v323, 112
      %v677 = vpop.permute.xlu0 %676
      %678 = vrot.lane.b32.xlu0 %v324, 112
      %v679 = vpop.permute.xlu0 %678
      %684 = vrot.lane.b32.xlu0 %v199, 80
      %v685 = vpop.permute.xlu0 %684
      %686 = vrot.lane.b32.xlu0 %v200, 80
      %v687 = vpop.permute.xlu0 %686
      %688 = vrot.lane.b32.xlu0 %v201, 80
      %v689 = vpop.permute.xlu0 %688
      %690 = vrot.lane.b32.xlu0 %v202, 80
      %v691 = vpop.permute.xlu0 %690
      %v697 = vsel %vm274, %v670, 0
      %v700 = vsel %vm274, %v671, 0
      %702 = vmatprep.subr.bf16.mxu0 0
      %703 = vmatpush1.bf16.msra.mxu0 %v673
      %704 = vmatprep.subr.bf16.mxu0 0
      %705 = vmatpush1.bf16.msra.mxu0 %v675
      %706 = vmatprep.subr.bf16.mxu0 0
      %707 = vmatpush1.bf16.msra.mxu0 %v677
      %708 = vmatprep.subr.bf16.mxu0 0
      %709 = vmatpush1.bf16.msra.mxu0 %v679
      %710 = vmatprep.subr.bf16.mxu0 0
      %711 = vmatpush1.bf16.msra.mxu0 0
      %712 = vmatprep.subr.bf16.mxu0 0
      %713 = vmatpush1.bf16.msra.mxu0 0
      %714 = vmatprep.subr.bf16.mxu0 0
      %715 = vmatpush1.bf16.msra.mxu0 0
      %716 = vmatprep.subr.bf16.mxu0 0
      %717 = vmatpush1.bf16.msra.mxu0 0
      %718 = vmatprep.subr.bf16.mxu0 0
      %719 = vmatpush1.bf16.msra.mxu0 0
      %720 = vmatprep.subr.bf16.mxu0 0
      %721 = vmatpush1.bf16.msra.mxu0 0
      %722 = vmatprep.subr.bf16.mxu0 0
      %723 = vmatpush1.bf16.msra.mxu0 0
      %724 = vmatprep.subr.bf16.mxu0 0
      %725 = vmatpush1.bf16.msra.mxu0 0
      %726 = vmatprep.subr.bf16.mxu0 0
      %727 = vmatpush1.bf16.msra.mxu0 0
      %728 = vmatprep.subr.bf16.mxu0 0
      %729 = vmatpush1.bf16.msra.mxu0 0
      %730 = vmatprep.subr.bf16.mxu0 0
      %731 = vmatpush1.bf16.msra.mxu0 0
      %732 = vmatprep.subr.bf16.mxu0 0
      %733 = vmatpush1.bf16.msra.mxu0 0
      %734 = vmatprep.mubr.bf16.mxu0 0
      %735 = vmatmul.mubr.bf16.gmra.mrb[0].mxu0 %v697
      %v736 = vpop.f32.mrb[0].mxu0
      %v737 = vadd.f32 %v685, %v736
      %v738 = vpop.f32.mrb[0].mxu0
      %v739 = vpop.f32.mrb[0].mxu0
      %v740 = vadd.f32 %v687, %v739
      %v741 = vpop.f32.mrb[0].mxu0
      %742 = vmatprep.mubr.bf16.mxu0 0
      %743 = vmatmul.mubr.bf16.gmra.mrb[0].mxu0 %v700
      %v744 = vpop.f32.mrb[0].mxu0
      %v745 = vadd.f32 %v689, %v744
      %v746 = vpop.f32.mrb[0].mxu0
      %v747 = vpop.f32.mrb[0].mxu0
      %v748 = vadd.f32 %v691, %v747
      %v749 = vpop.f32.mrb[0].mxu0
      %750 = vdwg.mxu0
      %751 = vrot.lane.b32.xlu0 %v396, 112
      %v752 = vpop.permute.xlu0 %751
      %v754 = vadd.f32 %v737, %v752
      %v755 = vadd.f32 %v740, %v752
      %v756 = vadd.f32 %v745, %v752
      %v757 = vadd.f32 %v748, %v752
      %v758 = vadd.f32 %v582, %v754
      %v759 = vadd.f32 %v583, %v755
      %v760 = vadd.f32 %v584, %v756
      %v761 = vadd.f32 %v585, %v757
      %v762 = vlaneseq
      %v763 = vshrl.u32 %v762, 7
      %v764 = vsub.s32 3, %v763
      %v765 = vrot.slane %v211, %v764
      %766 = vset.pattern.permute.xlu0 67
      %767 = vperm.xlu0 %766, %v199
      %v768 = vpop.permute.xlu0 %767
      %770 = vset.pattern.permute.xlu0 67
      %771 = vperm.xlu0 %770, %v200
      %v772 = vpop.permute.xlu0 %771
      %774 = vset.pattern.permute.xlu0 67
      %775 = vperm.xlu0 %774, %v201
      %v776 = vpop.permute.xlu0 %775
      %778 = vset.pattern.permute.xlu0 67
      %779 = vperm.xlu0 %778, %v202
      %v780 = vpop.permute.xlu0 %779
      %v782 = vadd.f32 %v765, %v768
      %v783 = vadd.f32 %v765, %v772
      %v784 = vadd.f32 %v765, %v776
      %v785 = vadd.f32 %v765, %v780
      %vm786 = vcmp.gt.f32.partialorder %v782, 0.0
      %vm787 = vcmp.gt.f32.partialorder %v783, 0.0
      %vm788 = vcmp.gt.f32.partialorder %v784, 0.0
      %vm789 = vcmp.gt.f32.partialorder %v785, 0.0
      %v790 = vmul.f32 %v782, 0.2
      %v791 = vmul.f32 %v783, 0.2
      %v792 = vmul.f32 %v784, 0.2
      %v793 = vmul.f32 %v785, 0.2
      %v794 = vsel %vm786, %v782, %v790
      %v795 = vsel %vm787, %v783, %v791
      %v796 = vsel %vm788, %v784, %v792
      %v797 = vsel %vm789, %v785, %v793
      %v798 = vadd.f32 %v794, %v226
      %v799 = vadd.f32 %v795, %v227
      %v800 = vadd.f32 %v796, %v228
      %v801 = vadd.f32 %v797, %v229
      %v802 = vsel %vm274, %v798, -inf
      %803 = vmax.xlane.f32.xlu0 %v802
      %v804 = vpop.xlane.xlu0 %803
      %v805 = vsel %vm274, %v799, -inf
      %806 = vmax.xlane.f32.xlu0 %v805
      %v807 = vpop.xlane.xlu0 %806
      %v808 = vsel %vm274, %v800, -inf
      %809 = vmax.xlane.f32.xlu0 %v808
      %v810 = vpop.xlane.xlu0 %809
      %v811 = vsel %vm274, %v801, -inf
      %812 = vmax.xlane.f32.xlu0 %v811
      %v813 = vpop.xlane.xlu0 %812
      %v814 = vsub.f32 %v798, %v804
      %v815 = vsub.f32 %v799, %v807
      %v816 = vsub.f32 %v800, %v810
      %v817 = vsub.f32 %v801, %v813
      %v818 = vmul.f32 %v814, 1.442695
      %v819 = vpow.pop %v818
      %v820 = vmul.f32 %v815, 1.442695
      %v821 = vpow.pop %v820
      %v822 = vmul.f32 %v816, 1.442695
      %v823 = vpow.pop %v822
      %v824 = vmul.f32 %v817, 1.442695
      %v825 = vpow.pop %v824
      %v826 = vsel %vm274, %v819, 0.0
      %827 = vadd.xlane.f32.xlu0 %v826
      %v828 = vpop.xlane.xlu0 %827
      %v829 = vsel %vm274, %v821, 0.0
      %830 = vadd.xlane.f32.xlu0 %v829
      %v831 = vpop.xlane.xlu0 %830
      %v832 = vsel %vm274, %v823, 0.0
      %833 = vadd.xlane.f32.xlu0 %v832
      %v834 = vpop.xlane.xlu0 %833
      %v835 = vsel %vm274, %v825, 0.0
      %836 = vadd.xlane.f32.xlu0 %v835
      %v837 = vpop.xlane.xlu0 %836
      %v838 = vrcp.pop %v828
      %v839 = vrcp.pop %v831
      %v840 = vrcp.pop %v834
      %v841 = vrcp.pop %v837
      %v842 = vmul.f32 %v819, %v838
      %v843 = vmul.f32 %v821, %v839
      %v844 = vmul.f32 %v823, %v840
      %v845 = vmul.f32 %v825, %v841
      %v846 = vpack.c.bf16 %v843, %v842
      %v847 = vpack.c.bf16 %v845, %v844
      %848 = vrot.lane.b32.xlu0 %v321, 104
      %v849 = vpop.permute.xlu0 %848
      %850 = vrot.lane.b32.xlu0 %v322, 104
      %v851 = vpop.permute.xlu0 %850
      %852 = vrot.lane.b32.xlu0 %v323, 104
      %v853 = vpop.permute.xlu0 %852
      %854 = vrot.lane.b32.xlu0 %v324, 104
      %v855 = vpop.permute.xlu0 %854
      %860 = vrot.lane.b32.xlu0 %v199, 72
      %v861 = vpop.permute.xlu0 %860
      %862 = vrot.lane.b32.xlu0 %v200, 72
      %v863 = vpop.permute.xlu0 %862
      %864 = vrot.lane.b32.xlu0 %v201, 72
      %v865 = vpop.permute.xlu0 %864
      %866 = vrot.lane.b32.xlu0 %v202, 72
      %v867 = vpop.permute.xlu0 %866
      %v873 = vsel %vm274, %v846, 0
      %v876 = vsel %vm274, %v847, 0
      %878 = vmatprep.subr.bf16.mxu0 0
      %879 = vmatpush1.bf16.msra.mxu0 %v849
      %880 = vmatprep.subr.bf16.mxu0 0
      %881 = vmatpush1.bf16.msra.mxu0 %v851
      %882 = vmatprep.subr.bf16.mxu0 0
      %883 = vmatpush1.bf16.msra.mxu0 %v853
      %884 = vmatprep.subr.bf16.mxu0 0
      %885 = vmatpush1.bf16.msra.mxu0 %v855
      %886 = vmatprep.subr.bf16.mxu0 0
      %887 = vmatpush1.bf16.msra.mxu0 0
      %888 = vmatprep.subr.bf16.mxu0 0
      %889 = vmatpush1.bf16.msra.mxu0 0
      %890 = vmatprep.subr.bf16.mxu0 0
      %891 = vmatpush1.bf16.msra.mxu0 0
      %892 = vmatprep.subr.bf16.mxu0 0
      %893 = vmatpush1.bf16.msra.mxu0 0
      %894 = vmatprep.subr.bf16.mxu0 0
      %895 = vmatpush1.bf16.msra.mxu0 0
      %896 = vmatprep.subr.bf16.mxu0 0
      %897 = vmatpush1.bf16.msra.mxu0 0
      %898 = vmatprep.subr.bf16.mxu0 0
      %899 = vmatpush1.bf16.msra.mxu0 0
      %900 = vmatprep.subr.bf16.mxu0 0
      %901 = vmatpush1.bf16.msra.mxu0 0
      %902 = vmatprep.subr.bf16.mxu0 0
      %903 = vmatpush1.bf16.msra.mxu0 0
      %904 = vmatprep.subr.bf16.mxu0 0
      %905 = vmatpush1.bf16.msra.mxu0 0
      %906 = vmatprep.subr.bf16.mxu0 0
      %907 = vmatpush1.bf16.msra.mxu0 0
      %908 = vmatprep.subr.bf16.mxu0 0
      %909 = vmatpush1.bf16.msra.mxu0 0
      %910 = vmatprep.mubr.bf16.mxu0 0
      %911 = vmatmul.mubr.bf16.gmra.mrb[0].mxu0 %v873
      %v912 = vpop.f32.mrb[0].mxu0
      %v913 = vadd.f32 %v861, %v912
      %v914 = vpop.f32.mrb[0].mxu0
      %v915 = vpop.f32.mrb[0].mxu0
      %v916 = vadd.f32 %v863, %v915
      %v917 = vpop.f32.mrb[0].mxu0
      %918 = vmatprep.mubr.bf16.mxu0 0
      %919 = vmatmul.mubr.bf16.gmra.mrb[0].mxu0 %v876
      %v920 = vpop.f32.mrb[0].mxu0
      %v921 = vadd.f32 %v865, %v920
      %v922 = vpop.f32.mrb[0].mxu0
      %v923 = vpop.f32.mrb[0].mxu0
      %v924 = vadd.f32 %v867, %v923
      %v925 = vpop.f32.mrb[0].mxu0
      %926 = vdwg.mxu0
      %927 = vrot.lane.b32.xlu0 %v396, 104
      %v928 = vpop.permute.xlu0 %927
      %v930 = vadd.f32 %v913, %v928
      %v931 = vadd.f32 %v916, %v928
      %v932 = vadd.f32 %v921, %v928
      %v933 = vadd.f32 %v924, %v928
      %v934 = vadd.f32 %v758, %v930
      %v935 = vadd.f32 %v759, %v931
      %v936 = vadd.f32 %v760, %v932
      %v937 = vadd.f32 %v761, %v933
      %v938 = vmul.f32 %v934, 0.25
      %v939 = vmul.f32 %v935, 0.25
      %v940 = vmul.f32 %v936, 0.25
      %v941 = vmul.f32 %v937, 0.25
      %vm942 = vcmask 64512
      %943 = vst.msk [vmem:[%s194] sm:$0xff] %vm942, %v938
      %944 = vst.msk [vmem:[%s194 + $0x8] sm:$0xff] %vm942, %v939
      %945 = vst.msk [vmem:[%s194 + $0x10] sm:$0xff] %vm942, %v940
      %946 = vst.msk [vmem:[%s194 + $0x18] sm:$0xff] %vm942, %v941
      %s947 = smul.u32 4, %s15
      %p948 = scmp.lt.s32.totalorder %s947, 7
      %s949 = scalar_select %p948, %s947, 7
      %s950 = smul.addr %s949, 8
      %s951 = scalar_lea.vmem %s4, %s950
      // Predicated region
      $region37: #{gat_forward.7} parent=35 // pred_check
        %p952 = pneg %p122
      $region38: #{gat_forward.7} parent=35 // pred_check_branch
        %954 = sbr.rel (%p952) target = $region40
      $region39: #{gat_forward.7} parent=35 // pred_region
        %s955 = smul.u32 4, %s15
      $region40: #{gat_forward.7} parent=35 // pred_fallthru
        _
    $region36: #{gat_forward.7} parent=5 // pred_fallthru
      _
    %p956 = scmp.le.s32.totalorder 2, %s10
    // Predicated region
    $region41: #{gat_forward.7} parent=5 // pred_check
      %p957 = pneg %p956
    $region42: #{gat_forward.7} parent=5 // pred_check_branch
      %959 = sbr.rel (%p957) target = $region44
    $region43: #{gat_forward.7} parent=5 // pred_region
      %s960 = ssub.s32 %s10, 2
      // Predicated region
      $region45: #{gat_forward.7} parent=43 // pred_check
        %p961 = pneg %p128
      $region46: #{gat_forward.7} parent=43 // pred_check_branch
        %963 = sbr.rel (%p961) target = $region48
      $region47: #{gat_forward.7} parent=43 // pred_region
        %s964 = smul.u32 4, %s16
        %p965 = scmp.lt.s32.totalorder %s964, 7
        %s966 = scalar_select %p965, %s964, 7
        %s967 = smul.addr %s966, 8
        %s968 = scalar_lea.vmem %s4, %s967
      $region48: #{gat_forward.7} parent=43 // pred_fallthru
        _
    $region44: #{gat_forward.7} parent=5 // pred_fallthru
      _
  $region6: #{gat_forward.7} parent=0 // loop_footer
    %s14 = sadd.s32 1, %s10
  $region7: #{gat_forward.7} parent=0 // loop_footer_branch
    %9 = sbr.rel target = $region3
  $region8: #{gat_forward.7} parent=0 // loop_exit
    _

// kernel: gat_forward.5
$region0: #{gat_forward.5}
  #allocation0 [shape = 'u32[]', space=smem, size = 0x4, offset = 0x4, fixed_abs, tag = 'smem constant byte address 0x4 - core index']
  #allocation1 [shape = 'u32[144,128]{1,0:T(1,128)}', space=vmem, size = 0x12000, scoped, tag = 'internal scratch']
  #allocation2 [shape = 'f32[32,32]{1,0:T(8,128)}', space=vmem, size = 0x4000, scoped, tag = 'scratch operand']
  %s0 = inlined_call_operand.vmem [shape: f32[64,72], index: 0, kind: input, shape index: {}]
  %s1 = inlined_call_operand.vmem [shape: f32[4,64], index: 1, kind: input, shape index: {}]
  %s2 = inlined_call_operand.vmem [shape: s8[64,64], index: 2, kind: input, shape index: {}]
  %s3 = inlined_call_operand.vmem [shape: f32[1,32], index: 3, kind: input, shape index: {}]
  %s4 = inlined_call_operand.vmem [shape: f32[1,32], index: 4, kind: input, shape index: {}]
  %s5 = inlined_call_operand.vmem [shape: f32[1,32], index: 5, kind: input, shape index: {}]
  %s6 = inlined_call_operand.vmem [shape: f32[64,32], index: 6, kind: output, shape index: {}]
  %s7 = sld [smem:[#allocation0]]
  $region57: #{gat_forward.5} parent=0
    _
  %s9 = ssub.s32 1, %s7
  %s10 = scalar_select 0, %s9, %s7
  loop: start=0, step=1, limit=4
  $region2: #{gat_forward.5} parent=0 // loop_pre_header
    _
  $region3: #{gat_forward.5} parent=0 // loop_header
    %s12 = sphi 0, %s16
    %p13 = scmp.ge.s32.totalorder %s12, 4
    %s20 = sphi 0, %s20
    %s22 = sphi 0, %s20
    %s23 = sphi 0, %s22
    %s37 = sphi 0, %s23
    %s41 = sphi 0, %s41
    %s43 = sphi 0, %s41
    %s44 = sphi 0, %s43
    %s58 = sphi 0, %s44
    %s64 = sphi 0, %s66
    %s67 = sphi 0, %s64
    %s68 = sphi 0, %s67
    %s84 = sphi 0, %s68
    %s88 = sphi 0, %s88
    %s90 = sphi 0, %s88
    %s91 = sphi 0, %s90
    %s105 = sphi 0, %s91
    %s109 = sphi 0, %s109
    %s111 = sphi 0, %s109
    %s112 = sphi 0, %s111
    %s126 = sphi 0, %s112
    %s130 = sphi 0, %s130
    %s132 = sphi 0, %s130
    %s133 = sphi 0, %s132
    %s147 = sphi 0, %s133
    %s153 = sphi 0, %s155
    %s156 = sphi 0, %s153
    %s157 = sphi 0, %s156
    %s173 = sphi 0, %s157
  $region4: #{gat_forward.5} parent=0 // loop_header_branch
    %15 = sbr.rel (%p13) target = $region8
  $region5: #{gat_forward.5} parent=0 // loop_body
    %s17 = ssub.s32 %s12, 1
    %s18 = ssub.s32 %s12, 2
    %s19 = sadd.s32 %s12, 1
    %s21 = sadd.s32 %s20, 1
    %p24 = scmp.eq.s32.totalorder %s12, 1
    %p25 = scmp.ne.s32.totalorder %s20, %s22
    %p26 = scmp.eq.s32.totalorder %s12, 0
    %p27 = por %p25, %p26
    %p28 = scmp.ne.s32.totalorder %s20, %s22
    %p29 = scmp.eq.s32.totalorder %s17, 1
    %p30 = por %p28, %p29
    %p31 = scmp.ne.s32.totalorder %s22, %s23
    %p32 = scmp.eq.s32.totalorder %s17, 0
    %p33 = por %p31, %p32
    %p34 = scmp.ne.s32.totalorder %s22, %s23
    %p35 = scmp.eq.s32.totalorder %s18, 1
    %p36 = por %p34, %p35
    %p38 = scmp.ne.s32.totalorder %s23, %s37
    %p39 = scmp.eq.s32.totalorder %s18, 0
    %p40 = por %p38, %p39
    %s42 = sadd.s32 %s41, 1
    %p45 = scmp.eq.s32.totalorder %s12, 1
    %p46 = scmp.ne.s32.totalorder %s41, %s43
    %p47 = scmp.eq.s32.totalorder %s12, 0
    %p48 = por %p46, %p47
    %p49 = scmp.ne.s32.totalorder %s41, %s43
    %p50 = scmp.eq.s32.totalorder %s17, 1
    %p51 = por %p49, %p50
    %p52 = scmp.ne.s32.totalorder %s43, %s44
    %p53 = scmp.eq.s32.totalorder %s17, 0
    %p54 = por %p52, %p53
    %p55 = scmp.ne.s32.totalorder %s43, %s44
    %p56 = scmp.eq.s32.totalorder %s18, 1
    %p57 = por %p55, %p56
    %p59 = scmp.ne.s32.totalorder %s44, %s58
    %p60 = scmp.eq.s32.totalorder %s18, 0
    %p61 = por %p59, %p60
    %s62 = ssub.s32 %s12, %s19
    %p63 = scmp.eq.s32.totalorder %s62, 0
    %s65 = sadd.s32 %s64, 1
    %s66 = scalar_select %p63, %s64, %s65
    %p69 = pneg %p63
    %p70 = scmp.eq.s32.totalorder %s12, 1
    %p71 = por %p69, %p70
    %p72 = scmp.ne.s32.totalorder %s64, %s67
    %p73 = scmp.eq.s32.totalorder %s12, 0
    %p74 = por %p72, %p73
    %p75 = scmp.ne.s32.totalorder %s64, %s67
    %p76 = scmp.eq.s32.totalorder %s17, 1
    %p77 = por %p75, %p76
    %p78 = scmp.ne.s32.totalorder %s67, %s68
    %p79 = scmp.eq.s32.totalorder %s17, 0
    %p80 = por %p78, %p79
    %p81 = scmp.ne.s32.totalorder %s67, %s68
    %p82 = scmp.eq.s32.totalorder %s18, 1
    %p83 = por %p81, %p82
    %p85 = scmp.ne.s32.totalorder %s68, %s84
    %p86 = scmp.eq.s32.totalorder %s18, 0
    %p87 = por %p85, %p86
    %s89 = sadd.s32 %s88, 1
    %p92 = scmp.eq.s32.totalorder %s12, 1
    %p93 = scmp.ne.s32.totalorder %s88, %s90
    %p94 = scmp.eq.s32.totalorder %s12, 0
    %p95 = por %p93, %p94
    %p96 = scmp.ne.s32.totalorder %s88, %s90
    %p97 = scmp.eq.s32.totalorder %s17, 1
    %p98 = por %p96, %p97
    %p99 = scmp.ne.s32.totalorder %s90, %s91
    %p100 = scmp.eq.s32.totalorder %s17, 0
    %p101 = por %p99, %p100
    %p102 = scmp.ne.s32.totalorder %s90, %s91
    %p103 = scmp.eq.s32.totalorder %s18, 1
    %p104 = por %p102, %p103
    %p106 = scmp.ne.s32.totalorder %s91, %s105
    %p107 = scmp.eq.s32.totalorder %s18, 0
    %p108 = por %p106, %p107
    %s110 = sadd.s32 %s109, 1
    %p113 = scmp.eq.s32.totalorder %s12, 1
    %p114 = scmp.ne.s32.totalorder %s109, %s111
    %p115 = scmp.eq.s32.totalorder %s12, 0
    %p116 = por %p114, %p115
    %p117 = scmp.ne.s32.totalorder %s109, %s111
    %p118 = scmp.eq.s32.totalorder %s17, 1
    %p119 = por %p117, %p118
    %p120 = scmp.ne.s32.totalorder %s111, %s112
    %p121 = scmp.eq.s32.totalorder %s17, 0
    %p122 = por %p120, %p121
    %p123 = scmp.ne.s32.totalorder %s111, %s112
    %p124 = scmp.eq.s32.totalorder %s18, 1
    %p125 = por %p123, %p124
    %p127 = scmp.ne.s32.totalorder %s112, %s126
    %p128 = scmp.eq.s32.totalorder %s18, 0
    %p129 = por %p127, %p128
    %s131 = sadd.s32 %s130, 1
    %p134 = scmp.eq.s32.totalorder %s12, 1
    %p135 = scmp.ne.s32.totalorder %s130, %s132
    %p136 = scmp.eq.s32.totalorder %s12, 0
    %p137 = por %p135, %p136
    %p138 = scmp.ne.s32.totalorder %s130, %s132
    %p139 = scmp.eq.s32.totalorder %s17, 1
    %p140 = por %p138, %p139
    %p141 = scmp.ne.s32.totalorder %s132, %s133
    %p142 = scmp.eq.s32.totalorder %s17, 0
    %p143 = por %p141, %p142
    %p144 = scmp.ne.s32.totalorder %s132, %s133
    %p145 = scmp.eq.s32.totalorder %s18, 1
    %p146 = por %p144, %p145
    %p148 = scmp.ne.s32.totalorder %s133, %s147
    %p149 = scmp.eq.s32.totalorder %s18, 0
    %p150 = por %p148, %p149
    %s151 = ssub.s32 %s12, %s19
    %p152 = scmp.eq.s32.totalorder %s151, 0
    %s154 = sadd.s32 %s153, 1
    %s155 = scalar_select %p152, %s153, %s154
    %p158 = pneg %p152
    %p159 = scmp.eq.s32.totalorder %s12, 1
    %p160 = por %p158, %p159
    %p161 = scmp.ne.s32.totalorder %s153, %s156
    %p162 = scmp.eq.s32.totalorder %s12, 0
    %p163 = por %p161, %p162
    %p164 = scmp.ne.s32.totalorder %s153, %s156
    %p165 = scmp.eq.s32.totalorder %s17, 1
    %p166 = por %p164, %p165
    %p167 = scmp.ne.s32.totalorder %s156, %s157
    %p168 = scmp.eq.s32.totalorder %s17, 0
    %p169 = por %p167, %p168
    %p170 = scmp.ne.s32.totalorder %s156, %s157
    %p171 = scmp.eq.s32.totalorder %s18, 1
    %p172 = por %p170, %p171
    %p174 = scmp.ne.s32.totalorder %s157, %s173
    %p175 = scmp.eq.s32.totalorder %s18, 0
    %p176 = por %p174, %p175
    %p177 = scmp.le.s32.totalorder 1, %s12
    %p178 = scmp.lt.s32.totalorder %s12, 3
    %p179 = pnand %p177, %p178
    %p180 = pneg %p179
    // Predicated region
    $region9: #{gat_forward.5} parent=5 // pred_check
      _
    $region10: #{gat_forward.5} parent=5 // pred_check_branch
      %182 = sbr.rel (%p179) target = $region12
    $region11: #{gat_forward.5} parent=5 // pred_region
      %s183 = ssub.s32 %s12, 1
      // Predicated region
      $region13: #{gat_forward.5} parent=11 // pred_check
        %p184 = pneg %p33
      $region14: #{gat_forward.5} parent=11 // pred_check_branch
        %186 = sbr.rel (%p184) target = $region16
      $region15: #{gat_forward.5} parent=11 // pred_region
        _
      $region16: #{gat_forward.5} parent=11 // pred_fallthru
        _
      // Predicated region
      $region17: #{gat_forward.5} parent=11 // pred_check
        %p187 = pneg %p54
      $region18: #{gat_forward.5} parent=11 // pred_check_branch
        %189 = sbr.rel (%p187) target = $region20
      $region19: #{gat_forward.5} parent=11 // pred_region
        _
      $region20: #{gat_forward.5} parent=11 // pred_fallthru
        _
      // Predicated region
      $region21: #{gat_forward.5} parent=11 // pred_check
        %p190 = pneg %p101
      $region22: #{gat_forward.5} parent=11 // pred_check_branch
        %192 = sbr.rel (%p190) target = $region24
      $region23: #{gat_forward.5} parent=11 // pred_region
        _
      $region24: #{gat_forward.5} parent=11 // pred_fallthru
        _
      // Predicated region
      $region25: #{gat_forward.5} parent=11 // pred_check
        %p193 = pneg %p122
      $region26: #{gat_forward.5} parent=11 // pred_check_branch
        %195 = sbr.rel (%p193) target = $region28
      $region27: #{gat_forward.5} parent=11 // pred_region
        _
      $region28: #{gat_forward.5} parent=11 // pred_fallthru
        _
      // Predicated region
      $region29: #{gat_forward.5} parent=11 // pred_check
        %p196 = pneg %p143
      $region30: #{gat_forward.5} parent=11 // pred_check_branch
        %198 = sbr.rel (%p196) target = $region32
      $region31: #{gat_forward.5} parent=11 // pred_region
        _
      $region32: #{gat_forward.5} parent=11 // pred_fallthru
        _
    $region12: #{gat_forward.5} parent=5 // pred_fallthru
      _
    %p199 = scmp.lt.s32.totalorder %s12, 2
    // Predicated region
    $region33: #{gat_forward.5} parent=5 // pred_check
      %p200 = pneg %p199
    $region34: #{gat_forward.5} parent=5 // pred_check_branch
      %202 = sbr.rel (%p200) target = $region36
    $region35: #{gat_forward.5} parent=5 // pred_region
      // Predicated region
      $region37: #{gat_forward.5} parent=35 // pred_check
        %p203 = pneg %p74
      $region38: #{gat_forward.5} parent=35 // pred_check_branch
        %205 = sbr.rel (%p203) target = $region40
      $region39: #{gat_forward.5} parent=35 // pred_region
        %p206 = scmp.lt.s32.totalorder %s12, 1
        %s207 = scalar_select %p206, %s12, 1
        %s208 = smul.addr %s207, 8
        %s209 = scalar_lea.vmem %s2, %s208
      $region40: #{gat_forward.5} parent=35 // pred_fallthru
        _
    $region36: #{gat_forward.5} parent=5 // pred_fallthru
      _
    %p210 = scmp.le.s32.totalorder 1, %s12
    %p211 = scmp.lt.s32.totalorder %s12, 3
    %p212 = pnand %p210, %p211
    %p213 = pneg %p212
    // Predicated region
    $region41: #{gat_forward.5} parent=5 // pred_check
      _
    $region42: #{gat_forward.5} parent=5 // pred_check_branch
      %215 = sbr.rel (%p212) target = $region44
    $region43: #{gat_forward.5} parent=5 // pred_region
      %s216 = ssub.s32 %s12, 1
      %p217 = pneg %p33
      %p218 = pneg %p30
      %p219 = pneg %p54
      %p220 = pneg %p51
      %p221 = scmp.lt.s32.totalorder %s17, 1
      %s222 = scalar_select %p221, %s17, 1
      %s223 = smul.addr %s222, 8
      %s224 = scalar_lea.vmem %s2, %s223
      %p225 = pneg %p80
      %p226 = pneg %p77
      %p227 = pneg %p101
      %p228 = pneg %p98
      %p229 = pneg %p122
      %p230 = pneg %p119
      %p231 = pneg %p143
      %p232 = pneg %p140
      %p233 = pneg %p169
      %p234 = pneg %p166
      %s235 = smul.u32 4, %s17
      %p236 = scmp.lt.s32.totalorder %s235, 7
      %s237 = scalar_select %p236, %s235, 7
      %s238 = smul.addr %s237, 8
      %s239 = scalar_lea.vmem %s6, %s238
      %p240 = scmp.lt.s32.totalorder %s17, 1
      %s241 = scalar_select %p240, %s17, 1
      %s242 = smul.addr %s241, 8
      %s243 = scalar_lea.vmem %s2, %s242
      %s244 = smul.u32 4, %s17
      %p245 = scmp.lt.s32.totalorder %s244, 7
      %s246 = scalar_select %p245, %s244, 7
      %s247 = smul.addr %s246, 8
      %s248 = scalar_lea.vmem %s6, %s247
      %s249 = smul.u32 4, %s17
      %s251 = smul.u32 %s17, 32
      %s252 = scalar_lea.vmem %s0, %s251
      %v253 = vld [vmem:[%s252] sm:$0xff]
      %v254 = vld [vmem:[%s252 + $0x8] sm:$0xff]
      %v255 = vld [vmem:[%s252 + $0x10] sm:$0xff]
      %v256 = vld [vmem:[%s252 + $0x18] sm:$0xff]
      %v257 = vld [vmem:[%s0] sm:$0xff]
      %v258 = vld [vmem:[%s0 + $0x8] sm:$0xff]
      %v259 = vld [vmem:[%s0 + $0x10] sm:$0xff]
      %v260 = vld [vmem:[%s0 + $0x18] sm:$0xff]
      %v261 = vld [vmem:[%s0 + $0x20] sm:$0xff]
      %v262 = vld [vmem:[%s0 + $0x28] sm:$0xff]
      %v263 = vld [vmem:[%s0 + $0x30] sm:$0xff]
      %v264 = vld [vmem:[%s0 + $0x38] sm:$0xff]
      %v265 = vld [vmem:[%s1] sm:$0xf]
      %v266 = vld [vmem:[%s3] sm:$0x1]
      %v267 = vld [vmem:[%s243] sm:$0xff]
      %v268 = vunpack.c.0.s8 %v267
      %v269 = vunpack.c.1.s8 %v267
      %v270 = vunpack.c.2.s8 %v267
      %v271 = vunpack.c.3.s8 %v267
      %v272 = vcvt.s32.f32 %v268
      %v273 = vcvt.s32.f32 %v269
      %v274 = vcvt.s32.f32 %v270
      %v275 = vcvt.s32.f32 %v271
      %vm276 = vcmp.gt.f32.partialorder %v272, 0.0
      %vm277 = vcmp.gt.f32.partialorder %v273, 0.0
      %vm278 = vcmp.gt.f32.partialorder %v274, 0.0
      %vm279 = vcmp.gt.f32.partialorder %v275, 0.0
      %v280 = vsel %vm276, 0.0, -1e+30
      %v281 = vsel %vm277, 0.0, -1e+30
      %v282 = vsel %vm278, 0.0, -1e+30
      %v283 = vsel %vm279, 0.0, -1e+30
      %v284 = vlaneseq
      %v285 = vshrl.u32 %v284, 7
      %v286 = vsub.s32 0, %v285
      %v287 = vrot.slane %v265, %v286
      %289 = vset.pattern.permute.xlu0 64
      %290 = vperm.xlu0 %289, %v253
      %v291 = vpop.permute.xlu0 %290
      %294 = vset.pattern.permute.xlu0 64
      %295 = vperm.xlu0 %294, %v254
      %v296 = vpop.permute.xlu0 %295
      %299 = vset.pattern.permute.xlu0 64
      %300 = vperm.xlu0 %299, %v255
      %v301 = vpop.permute.xlu0 %300
      %304 = vset.pattern.permute.xlu0 64
      %305 = vperm.xlu0 %304, %v256
      %v306 = vpop.permute.xlu0 %305
      %v308 = vadd.f32 %v287, %v291
      %v309 = vadd.f32 %v287, %v296
      %v310 = vadd.f32 %v287, %v301
      %v311 = vadd.f32 %v287, %v306
      %vm312 = vcmp.gt.f32.partialorder %v308, 0.0
      %vm313 = vcmp.gt.f32.partialorder %v309, 0.0
      %vm314 = vcmp.gt.f32.partialorder %v310, 0.0
      %vm315 = vcmp.gt.f32.partialorder %v311, 0.0
      %v316 = vmul.f32 %v308, 0.2
      %v317 = vmul.f32 %v309, 0.2
      %v318 = vmul.f32 %v310, 0.2
      %v319 = vmul.f32 %v311, 0.2
      %v320 = vsel %vm312, %v308, %v316
      %v321 = vsel %vm313, %v309, %v317
      %v322 = vsel %vm314, %v310, %v318
      %v323 = vsel %vm315, %v311, %v319
      %v324 = vadd.f32 %v320, %v280
      %v325 = vadd.f32 %v321, %v281
      %v326 = vadd.f32 %v322, %v282
      %v327 = vadd.f32 %v323, %v283
      %vm328 = vcmask 523264
      %v329 = vsel %vm328, %v324, -inf
      %330 = vmax.xlane.f32.xlu0 %v329
      %v331 = vpop.xlane.xlu0 %330
      %v332 = vsel %vm328, %v325, -inf
      %333 = vmax.xlane.f32.xlu0 %v332
      %v334 = vpop.xlane.xlu0 %333
      %v335 = vsel %vm328, %v326, -inf
      %336 = vmax.xlane.f32.xlu0 %v335
      %v337 = vpop.xlane.xlu0 %336
      %v338 = vsel %vm328, %v327, -inf
      %339 = vmax.xlane.f32.xlu0 %v338
      %v340 = vpop.xlane.xlu0 %339
      %v341 = vsub.f32 %v324, %v331
      %v342 = vsub.f32 %v325, %v334
      %v343 = vsub.f32 %v326, %v337
      %v344 = vsub.f32 %v327, %v340
      %v345 = vmul.f32 %v341, 1.442695
      %v346 = vpow.pop %v345
      %v347 = vmul.f32 %v342, 1.442695
      %v348 = vpow.pop %v347
      %v349 = vmul.f32 %v343, 1.442695
      %v350 = vpow.pop %v349
      %v351 = vmul.f32 %v344, 1.442695
      %v352 = vpow.pop %v351
      %v353 = vsel %vm328, %v346, 0.0
      %354 = vadd.xlane.f32.xlu0 %v353
      %v355 = vpop.xlane.xlu0 %354
      %v356 = vsel %vm328, %v348, 0.0
      %357 = vadd.xlane.f32.xlu0 %v356
      %v358 = vpop.xlane.xlu0 %357
      %v359 = vsel %vm328, %v350, 0.0
      %360 = vadd.xlane.f32.xlu0 %v359
      %v361 = vpop.xlane.xlu0 %360
      %v362 = vsel %vm328, %v352, 0.0
      %363 = vadd.xlane.f32.xlu0 %v362
      %v364 = vpop.xlane.xlu0 %363
      %v365 = vrcp.pop %v355
      %v366 = vrcp.pop %v358
      %v367 = vrcp.pop %v361
      %v368 = vrcp.pop %v364
      %v369 = vmul.f32 %v346, %v365
      %v370 = vmul.f32 %v348, %v366
      %v371 = vmul.f32 %v350, %v367
      %v372 = vmul.f32 %v352, %v368
      %v373 = vpack.c.bf16 %v370, %v369
      %v374 = vpack.c.bf16 %v372, %v371
      %v375 = vpack.c.bf16 %v258, %v257
      %v376 = vpack.c.bf16 %v260, %v259
      %v377 = vpack.c.bf16 %v262, %v261
      %v378 = vpack.c.bf16 %v264, %v263
      %379 = vrot.lane.b32.xlu0 %v253, 96
      %v380 = vpop.permute.xlu0 %379
      %381 = vrot.lane.b32.xlu0 %v254, 96
      %v382 = vpop.permute.xlu0 %381
      %383 = vrot.lane.b32.xlu0 %v255, 96
      %v384 = vpop.permute.xlu0 %383
      %385 = vrot.lane.b32.xlu0 %v256, 96
      %v386 = vpop.permute.xlu0 %385
      %v392 = vsel %vm328, %v373, 0
      %v395 = vsel %vm328, %v374, 0
      %397 = vmatprep.subr.bf16.mxu0 0
      %398 = vmatpush1.bf16.msra.mxu0 %v375
      %399 = vmatprep.subr.bf16.mxu0 0
      %400 = vmatpush1.bf16.msra.mxu0 %v376
      %401 = vmatprep.subr.bf16.mxu0 0
      %402 = vmatpush1.bf16.msra.mxu0 %v377
      %403 = vmatprep.subr.bf16.mxu0 0
      %404 = vmatpush1.bf16.msra.mxu0 %v378
      %405 = vmatprep.subr.bf16.mxu0 0
      %406 = vmatpush1.bf16.msra.mxu0 0
      %407 = vmatprep.subr.bf16.mxu0 0
      %408 = vmatpush1.bf16.msra.mxu0 0
      %409 = vmatprep.subr.bf16.mxu0 0
      %410 = vmatpush1.bf16.msra.mxu0 0
      %411 = vmatprep.subr.bf16.mxu0 0
      %412 = vmatpush1.bf16.msra.mxu0 0
      %413 = vmatprep.subr.bf16.mxu0 0
      %414 = vmatpush1.bf16.msra.mxu0 0
      %415 = vmatprep.subr.bf16.mxu0 0
      %416 = vmatpush1.bf16.msra.mxu0 0
      %417 = vmatprep.subr.bf16.mxu0 0
      %418 = vmatpush1.bf16.msra.mxu0 0
      %419 = vmatprep.subr.bf16.mxu0 0
      %420 = vmatpush1.bf16.msra.mxu0 0
      %421 = vmatprep.subr.bf16.mxu0 0
      %422 = vmatpush1.bf16.msra.mxu0 0
      %423 = vmatprep.subr.bf16.mxu0 0
      %424 = vmatpush1.bf16.msra.mxu0 0
      %425 = vmatprep.subr.bf16.mxu0 0
      %426 = vmatpush1.bf16.msra.mxu0 0
      %427 = vmatprep.subr.bf16.mxu0 0
      %428 = vmatpush1.bf16.msra.mxu0 0
      %429 = vmatprep.mubr.bf16.mxu0 0
      %430 = vmatmul.mubr.bf16.gmra.mrb[0].mxu0 %v392
      %v431 = vpop.f32.mrb[0].mxu0
      %v432 = vadd.f32 %v380, %v431
      %v433 = vpop.f32.mrb[0].mxu0
      %v434 = vpop.f32.mrb[0].mxu0
      %v435 = vadd.f32 %v382, %v434
      %v436 = vpop.f32.mrb[0].mxu0
      %437 = vmatprep.mubr.bf16.mxu0 0
      %438 = vmatmul.mubr.bf16.gmra.mrb[0].mxu0 %v395
      %v439 = vpop.f32.mrb[0].mxu0
      %v440 = vadd.f32 %v384, %v439
      %v441 = vpop.f32.mrb[0].mxu0
      %v442 = vpop.f32.mrb[0].mxu0
      %v443 = vadd.f32 %v386, %v442
      %v444 = vpop.f32.mrb[0].mxu0
      %445 = vdwg.mxu0
      %v447 = vlaneseq
      %v448 = vshrl.u32 %v447, 7
      %v449 = vsub.s32 0, %v448
      %v450 = vrot.slane %v266, %v449
      %v452 = vadd.f32 %v432, %v450
      %v453 = vadd.f32 %v435, %v450
      %v454 = vadd.f32 %v440, %v450
      %v455 = vadd.f32 %v443, %v450
      %vm456 = vcmask 64512
      %457 = vst.msk [vmem:[#allocation2] sm:$0xff] %vm456, %v452
      %458 = vst.msk [vmem:[#allocation2 + $0x8] sm:$0xff] %vm456, %v453
      %459 = vst.msk [vmem:[#allocation2 + $0x10] sm:$0xff] %vm456, %v454
      %460 = vst.msk [vmem:[#allocation2 + $0x18] sm:$0xff] %vm456, %v455
      %v461 = vlaneseq
      %v462 = vshrl.u32 %v461, 7
      %v463 = vsub.s32 1, %v462
      %v464 = vrot.slane %v265, %v463
      %465 = vset.pattern.permute.xlu0 65
      %466 = vperm.xlu0 %465, %v253
      %v467 = vpop.permute.xlu0 %466
      %469 = vset.pattern.permute.xlu0 65
      %470 = vperm.xlu0 %469, %v254
      %v471 = vpop.permute.xlu0 %470
      %473 = vset.pattern.permute.xlu0 65
      %474 = vperm.xlu0 %473, %v255
      %v475 = vpop.permute.xlu0 %474
      %477 = vset.pattern.permute.xlu0 65
      %478 = vperm.xlu0 %477, %v256
      %v479 = vpop.permute.xlu0 %478
      %v481 = vadd.f32 %v464, %v467
      %v482 = vadd.f32 %v464, %v471
      %v483 = vadd.f32 %v464, %v475
      %v484 = vadd.f32 %v464, %v479
      %vm485 = vcmp.gt.f32.partialorder %v481, 0.0
      %vm486 = vcmp.gt.f32.partialorder %v482, 0.0
      %vm487 = vcmp.gt.f32.partialorder %v483, 0.0
      %vm488 = vcmp.gt.f32.partialorder %v484, 0.0
      %v489 = vmul.f32 %v481, 0.2
      %v490 = vmul.f32 %v482, 0.2
      %v491 = vmul.f32 %v483, 0.2
      %v492 = vmul.f32 %v484, 0.2
      %v493 = vsel %vm485, %v481, %v489
      %v494 = vsel %vm486, %v482, %v490
      %v495 = vsel %vm487, %v483, %v491
      %v496 = vsel %vm488, %v484, %v492
      %v497 = vadd.f32 %v493, %v280
      %v498 = vadd.f32 %v494, %v281
      %v499 = vadd.f32 %v495, %v282
      %v500 = vadd.f32 %v496, %v283
      %v501 = vsel %vm328, %v497, -inf
      %502 = vmax.xlane.f32.xlu0 %v501
      %v503 = vpop.xlane.xlu0 %502
      %v504 = vsel %vm328, %v498, -inf
      %505 = vmax.xlane.f32.xlu0 %v504
      %v506 = vpop.xlane.xlu0 %505
      %v507 = vsel %vm328, %v499, -inf
      %508 = vmax.xlane.f32.xlu0 %v507
      %v509 = vpop.xlane.xlu0 %508
      %v510 = vsel %vm328, %v500, -inf
      %511 = vmax.xlane.f32.xlu0 %v510
      %v512 = vpop.xlane.xlu0 %511
      %v513 = vsub.f32 %v497, %v503
      %v514 = vsub.f32 %v498, %v506
      %v515 = vsub.f32 %v499, %v509
      %v516 = vsub.f32 %v500, %v512
      %v517 = vmul.f32 %v513, 1.442695
      %v518 = vpow.pop %v517
      %v519 = vmul.f32 %v514, 1.442695
      %v520 = vpow.pop %v519
      %v521 = vmul.f32 %v515, 1.442695
      %v522 = vpow.pop %v521
      %v523 = vmul.f32 %v516, 1.442695
      %v524 = vpow.pop %v523
      %v525 = vsel %vm328, %v518, 0.0
      %526 = vadd.xlane.f32.xlu0 %v525
      %v527 = vpop.xlane.xlu0 %526
      %v528 = vsel %vm328, %v520, 0.0
      %529 = vadd.xlane.f32.xlu0 %v528
      %v530 = vpop.xlane.xlu0 %529
      %v531 = vsel %vm328, %v522, 0.0
      %532 = vadd.xlane.f32.xlu0 %v531
      %v533 = vpop.xlane.xlu0 %532
      %v534 = vsel %vm328, %v524, 0.0
      %535 = vadd.xlane.f32.xlu0 %v534
      %v536 = vpop.xlane.xlu0 %535
      %v537 = vrcp.pop %v527
      %v538 = vrcp.pop %v530
      %v539 = vrcp.pop %v533
      %v540 = vrcp.pop %v536
      %v541 = vmul.f32 %v518, %v537
      %v542 = vmul.f32 %v520, %v538
      %v543 = vmul.f32 %v522, %v539
      %v544 = vmul.f32 %v524, %v540
      %v545 = vpack.c.bf16 %v542, %v541
      %v546 = vpack.c.bf16 %v544, %v543
      %551 = vrot.lane.b32.xlu0 %v375, 120
      %v552 = vpop.permute.xlu0 %551
      %553 = vrot.lane.b32.xlu0 %v376, 120
      %v554 = vpop.permute.xlu0 %553
      %555 = vrot.lane.b32.xlu0 %v377, 120
      %v556 = vpop.permute.xlu0 %555
      %557 = vrot.lane.b32.xlu0 %v378, 120
      %v558 = vpop.permute.xlu0 %557
      %563 = vrot.lane.b32.xlu0 %v253, 88
      %v564 = vpop.permute.xlu0 %563
      %565 = vrot.lane.b32.xlu0 %v254, 88
      %v566 = vpop.permute.xlu0 %565
      %567 = vrot.lane.b32.xlu0 %v255, 88
      %v568 = vpop.permute.xlu0 %567
      %569 = vrot.lane.b32.xlu0 %v256, 88
      %v570 = vpop.permute.xlu0 %569
      %v576 = vsel %vm328, %v545, 0
      %v579 = vsel %vm328, %v546, 0
      %581 = vmatprep.subr.bf16.mxu0 0
      %582 = vmatpush1.bf16.msra.mxu0 %v552
      %583 = vmatprep.subr.bf16.mxu0 0
      %584 = vmatpush1.bf16.msra.mxu0 %v554
      %585 = vmatprep.subr.bf16.mxu0 0
      %586 = vmatpush1.bf16.msra.mxu0 %v556
      %587 = vmatprep.subr.bf16.mxu0 0
      %588 = vmatpush1.bf16.msra.mxu0 %v558
      %589 = vmatprep.subr.bf16.mxu0 0
      %590 = vmatpush1.bf16.msra.mxu0 0
      %591 = vmatprep.subr.bf16.mxu0 0
      %592 = vmatpush1.bf16.msra.mxu0 0
      %593 = vmatprep.subr.bf16.mxu0 0
      %594 = vmatpush1.bf16.msra.mxu0 0
      %595 = vmatprep.subr.bf16.mxu0 0
      %596 = vmatpush1.bf16.msra.mxu0 0
      %597 = vmatprep.subr.bf16.mxu0 0
      %598 = vmatpush1.bf16.msra.mxu0 0
      %599 = vmatprep.subr.bf16.mxu0 0
      %600 = vmatpush1.bf16.msra.mxu0 0
      %601 = vmatprep.subr.bf16.mxu0 0
      %602 = vmatpush1.bf16.msra.mxu0 0
      %603 = vmatprep.subr.bf16.mxu0 0
      %604 = vmatpush1.bf16.msra.mxu0 0
      %605 = vmatprep.subr.bf16.mxu0 0
      %606 = vmatpush1.bf16.msra.mxu0 0
      %607 = vmatprep.subr.bf16.mxu0 0
      %608 = vmatpush1.bf16.msra.mxu0 0
      %609 = vmatprep.subr.bf16.mxu0 0
      %610 = vmatpush1.bf16.msra.mxu0 0
      %611 = vmatprep.subr.bf16.mxu0 0
      %612 = vmatpush1.bf16.msra.mxu0 0
      %613 = vmatprep.mubr.bf16.mxu0 0
      %614 = vmatmul.mubr.bf16.gmra.mrb[0].mxu0 %v576
      %v615 = vpop.f32.mrb[0].mxu0
      %v616 = vadd.f32 %v564, %v615
      %v617 = vpop.f32.mrb[0].mxu0
      %v618 = vpop.f32.mrb[0].mxu0
      %v619 = vadd.f32 %v566, %v618
      %v620 = vpop.f32.mrb[0].mxu0
      %621 = vmatprep.mubr.bf16.mxu0 0
      %622 = vmatmul.mubr.bf16.gmra.mrb[0].mxu0 %v579
      %v623 = vpop.f32.mrb[0].mxu0
      %v624 = vadd.f32 %v568, %v623
      %v625 = vpop.f32.mrb[0].mxu0
      %v626 = vpop.f32.mrb[0].mxu0
      %v627 = vadd.f32 %v570, %v626
      %v628 = vpop.f32.mrb[0].mxu0
      %629 = vdwg.mxu0
      %630 = vrot.lane.b32.xlu0 %v450, 120
      %v631 = vpop.permute.xlu0 %630
      %v633 = vadd.f32 %v616, %v631
      %v634 = vadd.f32 %v619, %v631
      %v635 = vadd.f32 %v624, %v631
      %v636 = vadd.f32 %v627, %v631
      %641 = vrot.lane.b32.xlu0 %v633, 8
      %v642 = vpop.permute.xlu0 %641
      %643 = vrot.lane.b32.xlu0 %v634, 8
      %v644 = vpop.permute.xlu0 %643
      %645 = vrot.lane.b32.xlu0 %v635, 8
      %v646 = vpop.permute.xlu0 %645
      %647 = vrot.lane.b32.xlu0 %v636, 8
      %v648 = vpop.permute.xlu0 %647
      %vm653 = vcmask 130112
      %654 = vst.msk [vmem:[#allocation2] sm:$0xff] %vm653, %v642
      %655 = vst.msk [vmem:[#allocation2 + $0x8] sm:$0xff] %vm653, %v644
      %656 = vst.msk [vmem:[#allocation2 + $0x10] sm:$0xff] %vm653, %v646
      %657 = vst.msk [vmem:[#allocation2 + $0x18] sm:$0xff] %vm653, %v648
      %v658 = vlaneseq
      %v659 = vshrl.u32 %v658, 7
      %v660 = vsub.s32 2, %v659
      %v661 = vrot.slane %v265, %v660
      %662 = vset.pattern.permute.xlu0 66
      %663 = vperm.xlu0 %662, %v253
      %v664 = vpop.permute.xlu0 %663
      %666 = vset.pattern.permute.xlu0 66
      %667 = vperm.xlu0 %666, %v254
      %v668 = vpop.permute.xlu0 %667
      %670 = vset.pattern.permute.xlu0 66
      %671 = vperm.xlu0 %670, %v255
      %v672 = vpop.permute.xlu0 %671
      %674 = vset.pattern.permute.xlu0 66
      %675 = vperm.xlu0 %674, %v256
      %v676 = vpop.permute.xlu0 %675
      %v678 = vadd.f32 %v661, %v664
      %v679 = vadd.f32 %v661, %v668
      %v680 = vadd.f32 %v661, %v672
      %v681 = vadd.f32 %v661, %v676
      %vm682 = vcmp.gt.f32.partialorder %v678, 0.0
      %vm683 = vcmp.gt.f32.partialorder %v679, 0.0
      %vm684 = vcmp.gt.f32.partialorder %v680, 0.0
      %vm685 = vcmp.gt.f32.partialorder %v681, 0.0
      %v686 = vmul.f32 %v678, 0.2
      %v687 = vmul.f32 %v679, 0.2
      %v688 = vmul.f32 %v680, 0.2
      %v689 = vmul.f32 %v681, 0.2
      %v690 = vsel %vm682, %v678, %v686
      %v691 = vsel %vm683, %v679, %v687
      %v692 = vsel %vm684, %v680, %v688
      %v693 = vsel %vm685, %v681, %v689
      %v694 = vadd.f32 %v690, %v280
      %v695 = vadd.f32 %v691, %v281
      %v696 = vadd.f32 %v692, %v282
      %v697 = vadd.f32 %v693, %v283
      %v698 = vsel %vm328, %v694, -inf
      %699 = vmax.xlane.f32.xlu0 %v698
      %v700 = vpop.xlane.xlu0 %699
      %v701 = vsel %vm328, %v695, -inf
      %702 = vmax.xlane.f32.xlu0 %v701
      %v703 = vpop.xlane.xlu0 %702
      %v704 = vsel %vm328, %v696, -inf
      %705 = vmax.xlane.f32.xlu0 %v704
      %v706 = vpop.xlane.xlu0 %705
      %v707 = vsel %vm328, %v697, -inf
      %708 = vmax.xlane.f32.xlu0 %v707
      %v709 = vpop.xlane.xlu0 %708
      %v710 = vsub.f32 %v694, %v700
      %v711 = vsub.f32 %v695, %v703
      %v712 = vsub.f32 %v696, %v706
      %v713 = vsub.f32 %v697, %v709
      %v714 = vmul.f32 %v710, 1.442695
      %v715 = vpow.pop %v714
      %v716 = vmul.f32 %v711, 1.442695
      %v717 = vpow.pop %v716
      %v718 = vmul.f32 %v712, 1.442695
      %v719 = vpow.pop %v718
      %v720 = vmul.f32 %v713, 1.442695
      %v721 = vpow.pop %v720
      %v722 = vsel %vm328, %v715, 0.0
      %723 = vadd.xlane.f32.xlu0 %v722
      %v724 = vpop.xlane.xlu0 %723
      %v725 = vsel %vm328, %v717, 0.0
      %726 = vadd.xlane.f32.xlu0 %v725
      %v727 = vpop.xlane.xlu0 %726
      %v728 = vsel %vm328, %v719, 0.0
      %729 = vadd.xlane.f32.xlu0 %v728
      %v730 = vpop.xlane.xlu0 %729
      %v731 = vsel %vm328, %v721, 0.0
      %732 = vadd.xlane.f32.xlu0 %v731
      %v733 = vpop.xlane.xlu0 %732
      %v734 = vrcp.pop %v724
      %v735 = vrcp.pop %v727
      %v736 = vrcp.pop %v730
      %v737 = vrcp.pop %v733
      %v738 = vmul.f32 %v715, %v734
      %v739 = vmul.f32 %v717, %v735
      %v740 = vmul.f32 %v719, %v736
      %v741 = vmul.f32 %v721, %v737
      %v742 = vpack.c.bf16 %v739, %v738
      %v743 = vpack.c.bf16 %v741, %v740
      %744 = vrot.lane.b32.xlu0 %v375, 112
      %v745 = vpop.permute.xlu0 %744
      %746 = vrot.lane.b32.xlu0 %v376, 112
      %v747 = vpop.permute.xlu0 %746
      %748 = vrot.lane.b32.xlu0 %v377, 112
      %v749 = vpop.permute.xlu0 %748
      %750 = vrot.lane.b32.xlu0 %v378, 112
      %v751 = vpop.permute.xlu0 %750
      %756 = vrot.lane.b32.xlu0 %v253, 80
      %v757 = vpop.permute.xlu0 %756
      %758 = vrot.lane.b32.xlu0 %v254, 80
      %v759 = vpop.permute.xlu0 %758
      %760 = vrot.lane.b32.xlu0 %v255, 80
      %v761 = vpop.permute.xlu0 %760
      %762 = vrot.lane.b32.xlu0 %v256, 80
      %v763 = vpop.permute.xlu0 %762
      %v769 = vsel %vm328, %v742, 0
      %v772 = vsel %vm328, %v743, 0
      %774 = vmatprep.subr.bf16.mxu0 0
      %775 = vmatpush1.bf16.msra.mxu0 %v745
      %776 = vmatprep.subr.bf16.mxu0 0
      %777 = vmatpush1.bf16.msra.mxu0 %v747
      %778 = vmatprep.subr.bf16.mxu0 0
      %779 = vmatpush1.bf16.msra.mxu0 %v749
      %780 = vmatprep.subr.bf16.mxu0 0
      %781 = vmatpush1.bf16.msra.mxu0 %v751
      %782 = vmatprep.subr.bf16.mxu0 0
      %783 = vmatpush1.bf16.msra.mxu0 0
      %784 = vmatprep.subr.bf16.mxu0 0
      %785 = vmatpush1.bf16.msra.mxu0 0
      %786 = vmatprep.subr.bf16.mxu0 0
      %787 = vmatpush1.bf16.msra.mxu0 0
      %788 = vmatprep.subr.bf16.mxu0 0
      %789 = vmatpush1.bf16.msra.mxu0 0
      %790 = vmatprep.subr.bf16.mxu0 0
      %791 = vmatpush1.bf16.msra.mxu0 0
      %792 = vmatprep.subr.bf16.mxu0 0
      %793 = vmatpush1.bf16.msra.mxu0 0
      %794 = vmatprep.subr.bf16.mxu0 0
      %795 = vmatpush1.bf16.msra.mxu0 0
      %796 = vmatprep.subr.bf16.mxu0 0
      %797 = vmatpush1.bf16.msra.mxu0 0
      %798 = vmatprep.subr.bf16.mxu0 0
      %799 = vmatpush1.bf16.msra.mxu0 0
      %800 = vmatprep.subr.bf16.mxu0 0
      %801 = vmatpush1.bf16.msra.mxu0 0
      %802 = vmatprep.subr.bf16.mxu0 0
      %803 = vmatpush1.bf16.msra.mxu0 0
      %804 = vmatprep.subr.bf16.mxu0 0
      %805 = vmatpush1.bf16.msra.mxu0 0
      %806 = vmatprep.mubr.bf16.mxu0 0
      %807 = vmatmul.mubr.bf16.gmra.mrb[0].mxu0 %v769
      %v808 = vpop.f32.mrb[0].mxu0
      %v809 = vadd.f32 %v757, %v808
      %v810 = vpop.f32.mrb[0].mxu0
      %v811 = vpop.f32.mrb[0].mxu0
      %v812 = vadd.f32 %v759, %v811
      %v813 = vpop.f32.mrb[0].mxu0
      %814 = vmatprep.mubr.bf16.mxu0 0
      %815 = vmatmul.mubr.bf16.gmra.mrb[0].mxu0 %v772
      %v816 = vpop.f32.mrb[0].mxu0
      %v817 = vadd.f32 %v761, %v816
      %v818 = vpop.f32.mrb[0].mxu0
      %v819 = vpop.f32.mrb[0].mxu0
      %v820 = vadd.f32 %v763, %v819
      %v821 = vpop.f32.mrb[0].mxu0
      %822 = vdwg.mxu0
      %823 = vrot.lane.b32.xlu0 %v450, 112
      %v824 = vpop.permute.xlu0 %823
      %v826 = vadd.f32 %v809, %v824
      %v827 = vadd.f32 %v812, %v824
      %v828 = vadd.f32 %v817, %v824
      %v829 = vadd.f32 %v820, %v824
      %834 = vrot.lane.b32.xlu0 %v826, 16
      %v835 = vpop.permute.xlu0 %834
      %836 = vrot.lane.b32.xlu0 %v827, 16
      %v837 = vpop.permute.xlu0 %836
      %838 = vrot.lane.b32.xlu0 %v828, 16
      %v839 = vpop.permute.xlu0 %838
      %840 = vrot.lane.b32.xlu0 %v829, 16
      %v841 = vpop.permute.xlu0 %840
      %vm846 = vcmask 195712
      %847 = vst.msk [vmem:[#allocation2] sm:$0xff] %vm846, %v835
      %848 = vst.msk [vmem:[#allocation2 + $0x8] sm:$0xff] %vm846, %v837
      %849 = vst.msk [vmem:[#allocation2 + $0x10] sm:$0xff] %vm846, %v839
      %850 = vst.msk [vmem:[#allocation2 + $0x18] sm:$0xff] %vm846, %v841
      %v851 = vlaneseq
      %v852 = vshrl.u32 %v851, 7
      %v853 = vsub.s32 3, %v852
      %v854 = vrot.slane %v265, %v853
      %855 = vset.pattern.permute.xlu0 67
      %856 = vperm.xlu0 %855, %v253
      %v857 = vpop.permute.xlu0 %856
      %859 = vset.pattern.permute.xlu0 67
      %860 = vperm.xlu0 %859, %v254
      %v861 = vpop.permute.xlu0 %860
      %863 = vset.pattern.permute.xlu0 67
      %864 = vperm.xlu0 %863, %v255
      %v865 = vpop.permute.xlu0 %864
      %867 = vset.pattern.permute.xlu0 67
      %868 = vperm.xlu0 %867, %v256
      %v869 = vpop.permute.xlu0 %868
      %v871 = vadd.f32 %v854, %v857
      %v872 = vadd.f32 %v854, %v861
      %v873 = vadd.f32 %v854, %v865
      %v874 = vadd.f32 %v854, %v869
      %vm875 = vcmp.gt.f32.partialorder %v871, 0.0
      %vm876 = vcmp.gt.f32.partialorder %v872, 0.0
      %vm877 = vcmp.gt.f32.partialorder %v873, 0.0
      %vm878 = vcmp.gt.f32.partialorder %v874, 0.0
      %v879 = vmul.f32 %v871, 0.2
      %v880 = vmul.f32 %v872, 0.2
      %v881 = vmul.f32 %v873, 0.2
      %v882 = vmul.f32 %v874, 0.2
      %v883 = vsel %vm875, %v871, %v879
      %v884 = vsel %vm876, %v872, %v880
      %v885 = vsel %vm877, %v873, %v881
      %v886 = vsel %vm878, %v874, %v882
      %v887 = vadd.f32 %v883, %v280
      %v888 = vadd.f32 %v884, %v281
      %v889 = vadd.f32 %v885, %v282
      %v890 = vadd.f32 %v886, %v283
      %v891 = vsel %vm328, %v887, -inf
      %892 = vmax.xlane.f32.xlu0 %v891
      %v893 = vpop.xlane.xlu0 %892
      %v894 = vsel %vm328, %v888, -inf
      %895 = vmax.xlane.f32.xlu0 %v894
      %v896 = vpop.xlane.xlu0 %895
      %v897 = vsel %vm328, %v889, -inf
      %898 = vmax.xlane.f32.xlu0 %v897
      %v899 = vpop.xlane.xlu0 %898
      %v900 = vsel %vm328, %v890, -inf
      %901 = vmax.xlane.f32.xlu0 %v900
      %v902 = vpop.xlane.xlu0 %901
      %v903 = vsub.f32 %v887, %v893
      %v904 = vsub.f32 %v888, %v896
      %v905 = vsub.f32 %v889, %v899
      %v906 = vsub.f32 %v890, %v902
      %v907 = vmul.f32 %v903, 1.442695
      %v908 = vpow.pop %v907
      %v909 = vmul.f32 %v904, 1.442695
      %v910 = vpow.pop %v909
      %v911 = vmul.f32 %v905, 1.442695
      %v912 = vpow.pop %v911
      %v913 = vmul.f32 %v906, 1.442695
      %v914 = vpow.pop %v913
      %v915 = vsel %vm328, %v908, 0.0
      %916 = vadd.xlane.f32.xlu0 %v915
      %v917 = vpop.xlane.xlu0 %916
      %v918 = vsel %vm328, %v910, 0.0
      %919 = vadd.xlane.f32.xlu0 %v918
      %v920 = vpop.xlane.xlu0 %919
      %v921 = vsel %vm328, %v912, 0.0
      %922 = vadd.xlane.f32.xlu0 %v921
      %v923 = vpop.xlane.xlu0 %922
      %v924 = vsel %vm328, %v914, 0.0
      %925 = vadd.xlane.f32.xlu0 %v924
      %v926 = vpop.xlane.xlu0 %925
      %v927 = vrcp.pop %v917
      %v928 = vrcp.pop %v920
      %v929 = vrcp.pop %v923
      %v930 = vrcp.pop %v926
      %v931 = vmul.f32 %v908, %v927
      %v932 = vmul.f32 %v910, %v928
      %v933 = vmul.f32 %v912, %v929
      %v934 = vmul.f32 %v914, %v930
      %v935 = vpack.c.bf16 %v932, %v931
      %v936 = vpack.c.bf16 %v934, %v933
      %937 = vrot.lane.b32.xlu0 %v375, 104
      %v938 = vpop.permute.xlu0 %937
      %939 = vrot.lane.b32.xlu0 %v376, 104
      %v940 = vpop.permute.xlu0 %939
      %941 = vrot.lane.b32.xlu0 %v377, 104
      %v942 = vpop.permute.xlu0 %941
      %943 = vrot.lane.b32.xlu0 %v378, 104
      %v944 = vpop.permute.xlu0 %943
      %949 = vrot.lane.b32.xlu0 %v253, 72
      %v950 = vpop.permute.xlu0 %949
      %951 = vrot.lane.b32.xlu0 %v254, 72
      %v952 = vpop.permute.xlu0 %951
      %953 = vrot.lane.b32.xlu0 %v255, 72
      %v954 = vpop.permute.xlu0 %953
      %955 = vrot.lane.b32.xlu0 %v256, 72
      %v956 = vpop.permute.xlu0 %955
      %v962 = vsel %vm328, %v935, 0
      %v965 = vsel %vm328, %v936, 0
      %967 = vmatprep.subr.bf16.mxu0 0
      %968 = vmatpush1.bf16.msra.mxu0 %v938
      %969 = vmatprep.subr.bf16.mxu0 0
      %970 = vmatpush1.bf16.msra.mxu0 %v940
      %971 = vmatprep.subr.bf16.mxu0 0
      %972 = vmatpush1.bf16.msra.mxu0 %v942
      %973 = vmatprep.subr.bf16.mxu0 0
      %974 = vmatpush1.bf16.msra.mxu0 %v944
      %975 = vmatprep.subr.bf16.mxu0 0
      %976 = vmatpush1.bf16.msra.mxu0 0
      %977 = vmatprep.subr.bf16.mxu0 0
      %978 = vmatpush1.bf16.msra.mxu0 0
      %979 = vmatprep.subr.bf16.mxu0 0
      %980 = vmatpush1.bf16.msra.mxu0 0
      %981 = vmatprep.subr.bf16.mxu0 0
      %982 = vmatpush1.bf16.msra.mxu0 0
      %983 = vmatprep.subr.bf16.mxu0 0
      %984 = vmatpush1.bf16.msra.mxu0 0
      %985 = vmatprep.subr.bf16.mxu0 0
      %986 = vmatpush1.bf16.msra.mxu0 0
      %987 = vmatprep.subr.bf16.mxu0 0
      %988 = vmatpush1.bf16.msra.mxu0 0
      %989 = vmatprep.subr.bf16.mxu0 0
      %990 = vmatpush1.bf16.msra.mxu0 0
      %991 = vmatprep.subr.bf16.mxu0 0
      %992 = vmatpush1.bf16.msra.mxu0 0
      %993 = vmatprep.subr.bf16.mxu0 0
      %994 = vmatpush1.bf16.msra.mxu0 0
      %995 = vmatprep.subr.bf16.mxu0 0
      %996 = vmatpush1.bf16.msra.mxu0 0
      %997 = vmatprep.subr.bf16.mxu0 0
      %998 = vmatpush1.bf16.msra.mxu0 0
      %999 = vmatprep.mubr.bf16.mxu0 0
      %1000 = vmatmul.mubr.bf16.gmra.mrb[0].mxu0 %v962
      %v1001 = vpop.f32.mrb[0].mxu0
      %v1002 = vadd.f32 %v950, %v1001
      %v1003 = vpop.f32.mrb[0].mxu0
      %v1004 = vpop.f32.mrb[0].mxu0
      %v1005 = vadd.f32 %v952, %v1004
      %v1006 = vpop.f32.mrb[0].mxu0
      %1007 = vmatprep.mubr.bf16.mxu0 0
      %1008 = vmatmul.mubr.bf16.gmra.mrb[0].mxu0 %v965
      %v1009 = vpop.f32.mrb[0].mxu0
      %v1010 = vadd.f32 %v954, %v1009
      %v1011 = vpop.f32.mrb[0].mxu0
      %v1012 = vpop.f32.mrb[0].mxu0
      %v1013 = vadd.f32 %v956, %v1012
      %v1014 = vpop.f32.mrb[0].mxu0
      %1015 = vdwg.mxu0
      %1016 = vrot.lane.b32.xlu0 %v450, 104
      %v1017 = vpop.permute.xlu0 %1016
      %v1019 = vadd.f32 %v1002, %v1017
      %v1020 = vadd.f32 %v1005, %v1017
      %v1021 = vadd.f32 %v1010, %v1017
      %v1022 = vadd.f32 %v1013, %v1017
      %1027 = vrot.lane.b32.xlu0 %v1019, 24
      %v1028 = vpop.permute.xlu0 %1027
      %1029 = vrot.lane.b32.xlu0 %v1020, 24
      %v1030 = vpop.permute.xlu0 %1029
      %1031 = vrot.lane.b32.xlu0 %v1021, 24
      %v1032 = vpop.permute.xlu0 %1031
      %1033 = vrot.lane.b32.xlu0 %v1022, 24
      %v1034 = vpop.permute.xlu0 %1033
      %vm1039 = vcmask 261312
      %1040 = vst.msk [vmem:[#allocation2] sm:$0xff] %vm1039, %v1028
      %1041 = vst.msk [vmem:[#allocation2 + $0x8] sm:$0xff] %vm1039, %v1030
      %1042 = vst.msk [vmem:[#allocation2 + $0x10] sm:$0xff] %vm1039, %v1032
      %1043 = vst.msk [vmem:[#allocation2 + $0x18] sm:$0xff] %vm1039, %v1034
      %v1044 = vld [vmem:[#allocation2] sm:$0xff]
      %v1045 = vld [vmem:[#allocation2 + $0x8] sm:$0xff]
      %v1046 = vld [vmem:[#allocation2 + $0x10] sm:$0xff]
      %v1047 = vld [vmem:[#allocation2 + $0x18] sm:$0xff]
      %v1048 = vld [vmem:[%s4] sm:$0x1]
      %v1050 = vlaneseq
      %v1051 = vshrl.u32 %v1050, 7
      %v1052 = vsub.s32 0, %v1051
      %v1053 = vrot.slane %v1048, %v1052
      %v1055 = vmul.f32 %v1044, %v1053
      %v1056 = vmul.f32 %v1045, %v1053
      %v1057 = vmul.f32 %v1046, %v1053
      %v1058 = vmul.f32 %v1047, %v1053
      %v1059 = vld [vmem:[%s5] sm:$0x1]
      %v1061 = vlaneseq
      %v1062 = vshrl.u32 %v1061, 7
      %v1063 = vsub.s32 0, %v1062
      %v1064 = vrot.slane %v1059, %v1063
      %v1066 = vadd.f32 %v1055, %v1064
      %v1067 = vadd.f32 %v1056, %v1064
      %v1068 = vadd.f32 %v1057, %v1064
      %v1069 = vadd.f32 %v1058, %v1064
      %v1070 = vmax.f32 %v1066, 0.0
      %v1071 = vmax.f32 %v1067, 0.0
      %v1072 = vmax.f32 %v1068, 0.0
      %v1073 = vmax.f32 %v1069, 0.0
      %vm1074 = vcmask 261120
      %1075 = vst.msk [vmem:[%s248] sm:$0xff] %vm1074, %v1070
      %1076 = vst.msk [vmem:[%s248 + $0x8] sm:$0xff] %vm1074, %v1071
      %1077 = vst.msk [vmem:[%s248 + $0x10] sm:$0xff] %vm1074, %v1072
      %1078 = vst.msk [vmem:[%s248 + $0x18] sm:$0xff] %vm1074, %v1073
      %s1079 = smul.u32 4, %s17
      %p1080 = scmp.lt.s32.totalorder %s1079, 7
      %s1081 = scalar_select %p1080, %s1079, 7
      %s1082 = smul.addr %s1081, 8
      %s1083 = scalar_lea.vmem %s6, %s1082
      // Predicated region
      $region45: #{gat_forward.5} parent=43 // pred_check
        %p1084 = pneg %p166
      $region46: #{gat_forward.5} parent=43 // pred_check_branch
        %1086 = sbr.rel (%p1084) target = $region48
      $region47: #{gat_forward.5} parent=43 // pred_region
        %s1087 = smul.u32 4, %s17
      $region48: #{gat_forward.5} parent=43 // pred_fallthru
        _
    $region44: #{gat_forward.5} parent=5 // pred_fallthru
      _
    %p1088 = scmp.le.s32.totalorder 2, %s12
    // Predicated region
    $region49: #{gat_forward.5} parent=5 // pred_check
      %p1089 = pneg %p1088
    $region50: #{gat_forward.5} parent=5 // pred_check_branch
      %1091 = sbr.rel (%p1089) target = $region52
    $region51: #{gat_forward.5} parent=5 // pred_region
      %s1092 = ssub.s32 %s12, 2
      // Predicated region
      $region53: #{gat_forward.5} parent=51 // pred_check
        %p1093 = pneg %p172
      $region54: #{gat_forward.5} parent=51 // pred_check_branch
        %1095 = sbr.rel (%p1093) target = $region56
      $region55: #{gat_forward.5} parent=51 // pred_region
        %s1096 = smul.u32 4, %s18
        %p1097 = scmp.lt.s32.totalorder %s1096, 7
        %s1098 = scalar_select %p1097, %s1096, 7
        %s1099 = smul.addr %s1098, 8
        %s1100 = scalar_lea.vmem %s6, %s1099
      $region56: #{gat_forward.5} parent=51 // pred_fallthru
        _
    $region52: #{gat_forward.5} parent=5 // pred_fallthru
      _
  $region6: #{gat_forward.5} parent=0 // loop_footer
    %s16 = sadd.s32 1, %s12
  $region7: #{gat_forward.5} parent=0 // loop_footer_branch
    %11 = sbr.rel target = $region3
  $region8: #{gat_forward.5} parent=0 // loop_exit
    _

</llo_original>
